<compile_context>
chip_gen: v7x
topology: tpu7x:2x2x1
jax: 0.10.0
libtpu: 0.0.40
codegen_flags: <defaults>
</compile_context>

<pallas_src>
import functools

import numpy as np
import jax
import jax.numpy as jnp
from jax.experimental import pallas as pl
from jax.experimental.pallas import tpu as pltpu


# ----------------------------------------------------------------------------
# Static model dimensions (SingleMultiViewModel(in_channels=50, channels=32))
# ----------------------------------------------------------------------------
V1, C1 = 17, 2                      # 17 joints x 2D coords
V2, C2 = 16, 1                      # 16 bone angles
IN_CH = V1 * C1 + V2 * C2           # 50
CHANNELS = 32
VIEW_OUP = 100
POSE_OUP = CHANNELS                 # 32
OUT_CH = 17 * 3                     # 51

LANE = 128


def _pad_up(n, m):
    return ((n + m - 1) // m) * m


IN_PAD = _pad_up(IN_CH, LANE)       # 128
CH_PAD = _pad_up(CHANNELS, LANE)    # 128
VO_PAD = _pad_up(VIEW_OUP, LANE)    # 128
PO_PAD = _pad_up(POSE_OUP, LANE)    # 128
OUT_PAD = _pad_up(OUT_CH, LANE)     # 128

_BN_EPS = 1e-5


# ----------------------------------------------------------------------------
# Fused Pallas kernel: the entire forward pass for one batch block.
# refs = (x1, x2, <49 padded params in fixed order>, o1, o2)
# ----------------------------------------------------------------------------
def _fused_forward_kernel(*refs):
    x1_ref, x2_ref = refs[0], refs[1]
    o1_ref, o2_ref = refs[-2], refs[-1]
    it = iter(refs[2:-2])

    def nxt():
        return next(it)[...]

    def lin(x, W):
        return jnp.dot(x, W, preferred_element_type=jnp.float32)

    def bn_relu(h, s, b):
        return jnp.maximum(h * s + b, 0.0)          # dropout = identity (eval)

    # ---------------- BackBone (shared weights, applied to both views) ------
    Wb0, sb0, bb0 = nxt(), nxt(), nxt()
    Wb1, sb1, bb1 = nxt(), nxt(), nxt()
    Wb2, sb2, bb2 = nxt(), nxt(), nxt()

    def backbone(x):
        h = bn_relu(lin(x, Wb0), sb0, bb0)
        r = h
        h = bn_relu(lin(h, Wb1), sb1, bb1)
        h = bn_relu(lin(h, Wb2), sb2, bb2)
        return r + h

    f1 = backbone(x1_ref[...])
    f2 = backbone(x2_ref[...])

    # ---------------- ViewBranch --------------------------------------------
    Wv0, sv0, bv0 = nxt(), nxt(), nxt()
    Wv1, sv1, bv1 = nxt(), nxt(), nxt()
    Wv2, sv2, bv2 = nxt(), nxt(), nxt()
    Wvs, bvs = nxt(), nxt()

    def viewbranch(f):
        h = bn_relu(lin(f, Wv0), sv0, bv0)
        r = h
        h = bn_relu(lin(h, Wv1), sv1, bv1)
        h = bn_relu(lin(h, Wv2), sv2, bv2)
        h = r + h
        return lin(h, Wvs) + bvs

    xv1 = viewbranch(f1)
    xv2 = viewbranch(f2)

    # ---------------- Pose3DBranch -------------------------------------------
    Wp0, sp0, bp0 = nxt(), nxt(), nxt()
    Wp1, sp1, bp1 = nxt(), nxt(), nxt()
    Wp2, sp2, bp2 = nxt(), nxt(), nxt()
    Wps, bps = nxt(), nxt()

    def posebranch(f):
        h = bn_relu(lin(f, Wp0), sp0, bp0)
        r = h
        h = bn_relu(lin(h, Wp1), sp1, bp1)
        h = bn_relu(lin(h, Wp2), sp2, bp2)
        h = r + h
        return lin(h, Wps) + bps

    p3d1 = posebranch(f1)
    p3d2 = posebranch(f2)

    # ---------------- MultiViewAttention (concat -> split matmul) -----------
    Wa0a, Wa0b, sa0, ba0 = nxt(), nxt(), nxt(), nxt()
    Wa1, sa1, ba1 = nxt(), nxt(), nxt()
    Wa2, sa2, ba2 = nxt(), nxt(), nxt()
    Was, bas = nxt(), nxt()

    h = bn_relu(lin(xv1, Wa0a) + lin(xv2, Wa0b), sa0, ba0)
    r = h
    h = bn_relu(lin(h, Wa1), sa1, ba1)
    h = bn_relu(lin(h, Wa2), sa2, ba2)
    h = r + h
    att = jax.nn.sigmoid(lin(h, Was) + bas)

    # ---------------- FuseMultiView ------------------------------------------
    pose = p3d1 * att + p3d2 * (1.0 - att)

    # ---------------- Shrink (shared weights; concat -> split matmul) -------
    Ws0p, Ws0v, ss0, bs0 = nxt(), nxt(), nxt(), nxt()
    Wss, bss = nxt(), nxt()

    hp = lin(pose, Ws0p)                      # pose contribution, shared by both views

    def shrink(xv):
        h = bn_relu(hp + lin(xv, Ws0v), ss0, bs0)
        return lin(h, Wss) + bss

    o1_ref[...] = shrink(xv1).astype(o1_ref.dtype)
    o2_ref[...] = shrink(xv2).astype(o2_ref.dtype)


# ----------------------------------------------------------------------------
# pallas_call wrappers
# ----------------------------------------------------------------------------
def _fused_call(x1p, x2p, flat_params, block_rows):
    B = x1p.shape[0]
    args = (x1p, x2p) + tuple(flat_params)
    out_shape = (jax.ShapeDtypeStruct((B, OUT_PAD), jnp.float32),
                 jax.ShapeDtypeStruct((B, OUT_PAD), jnp.float32))

    if block_rows is None or block_rows >= B:
        # Grid-less: everything (weights ~1.2 MiB + tiny activations) in VMEM.
        vmem = pl.BlockSpec(memory_space=pltpu.MemorySpace.VMEM)
        return pl.pallas_call(
            _fused_forward_kernel,
            out_shape=out_shape,
            in_specs=[vmem] * len(args),
            out_specs=(vmem, vmem),
        )(*args)

    # Batch grid for large B: block the batch dim, keep weights resident.
    assert block_rows % 8 == 0 and B % block_rows == 0, (B, block_rows)
    grid = (B // block_rows,)

    def act_spec(c):
        return pl.BlockSpec((block_rows, c), lambda i: (i, 0))

    def resident_spec(a):
        return pl.BlockSpec(a.shape, lambda i: (0, 0))   # same block every step

    in_specs = ([act_spec(IN_PAD), act_spec(IN_PAD)]
                + [resident_spec(a) for a in flat_params])
    out_specs = (act_spec(OUT_PAD), act_spec(OUT_PAD))

    return pl.pallas_call(
        _fused_forward_kernel,
        out_shape=out_shape,
        grid=grid,
        in_specs=in_specs,
        out_specs=out_specs,
        compiler_params=pltpu.CompilerParams(
            dimension_semantics=("parallel",)),        # megacore sharding on v7x
    )(*args)


@functools.partial(jax.jit, static_argnames=("block_rows",))
def single_multi_view_forward(flat_params, pos_2d, bone_angle,
                              pos_2d_other_view, bone_angle_other_view,
                              *, block_rows=None):
    B = pos_2d.shape[0]
    x1 = jnp.concatenate([pos_2d.reshape(B, -1), bone_angle.reshape(B, -1)], axis=1)
    x2 = jnp.concatenate([pos_2d_other_view.reshape(B, -1),
                          bone_angle_other_view.reshape(B, -1)], axis=1)
    x1p = jnp.pad(x1, ((0, 0), (0, IN_PAD - IN_CH)))
    x2p = jnp.pad(x2, ((0, 0), (0, IN_PAD - IN_CH)))
    o1p, o2p = _fused_call(x1p, x2p, flat_params, block_rows)
    o1 = o1p[:, :OUT_CH].reshape(B, 17, 3)
    o2 = o2p[:, :OUT_CH].reshape(B, 17, 3)
    return o1, o2


# ----------------------------------------------------------------------------
# Deterministic parameter construction (mimics module __init__ shapes)
# ----------------------------------------------------------------------------
def _init_conv_w(key, cin, cout):
    bound = 1.0 / float(np.sqrt(cin))
    return jax.random.uniform(key, (cin, cout), jnp.float32, -bound, bound)


def _init_conv_b(key, cin, cout):
    bound = 1.0 / float(np.sqrt(cin))
    return jax.random.uniform(key, (1, cout), jnp.float32, -bound, bound)


def _init_bn_folded(key, c):
    k1, k2, k3, k4 = jax.random.split(key, 4)
    gamma = 1.0 + 0.1 * jax.random.normal(k1, (c,), jnp.float32)
    beta = 0.1 * jax.random.normal(k2, (c,), jnp.float32)
    mean = 0.1 * jax.random.normal(k3, (c,), jnp.float32)
    var = 1.0 + 0.1 * jax.random.uniform(k4, (c,), jnp.float32)
    scale = gamma / jnp.sqrt(var + _BN_EPS)
    shift = beta - mean * scale
    return scale.reshape(1, c), shift.reshape(1, c)


def _init_branch_raw(key, cin, ch, num_layers, shrink_out=None):
    keys = iter(jax.random.split(key, 16))
    params = [_init_conv_w(next(keys), cin, ch), *_init_bn_folded(next(keys), ch)]
    for _ in range(num_layers):
        params += [_init_conv_w(next(keys), ch, ch), *_init_bn_folded(next(keys), ch)]
        params += [_init_conv_w(next(keys), ch, ch), *_init_bn_folded(next(keys), ch)]
    if shrink_out is not None:
        params += [_init_conv_w(next(keys), ch, shrink_out),
                   _init_conv_b(next(keys), ch, shrink_out)]
    return tuple(params)


def init_raw_params(key):
    k = jax.random.split(key, 5)
    return {
        "backbone": _init_branch_raw(k[0], IN_CH, CHANNELS, 1),
        "view":     _init_branch_raw(k[1], CHANNELS, CHANNELS, 1, VIEW_OUP),
        "pose":     _init_branch_raw(k[2], CHANNELS, CHANNELS, 1, POSE_OUP),
        "attn":     _init_branch_raw(k[3], 2 * VIEW_OUP, CHANNELS, 1, POSE_OUP),
        "shrink":   _init_branch_raw(k[4], POSE_OUP + VIEW_OUP, CHANNELS, 0, OUT_CH),
    }


def _pad2(a, rows, cols):
    return jnp.pad(a, ((0, rows - a.shape[0]), (0, cols - a.shape[1])))


def pad_params_for_kernel(raw):
    """Zero-pad all params to lane-dense (multiple-of-128) shapes, split the
    concat-fed expand weights, and flatten in kernel-consumption order."""
    fp = []

    # BackBone
    W0, s0, b0, W1, s1, b1, W2, s2, b2 = raw["backbone"]
    fp += [_pad2(W0, IN_PAD, CH_PAD), _pad2(s0, 1, CH_PAD), _pad2(b0, 1, CH_PAD),
           _pad2(W1, CH_PAD, CH_PAD), _pad2(s1, 1, CH_PAD), _pad2(b1, 1, CH_PAD),
           _pad2(W2, CH_PAD, CH_PAD), _pad2(s2, 1, CH_PAD), _pad2(b2, 1, CH_PAD)]

    # ViewBranch
    W0, s0, b0, W1, s1, b1, W2, s2, b2, Ws, bs = raw["view"]
    fp += [_pad2(W0, CH_PAD, CH_PAD), _pad2(s0, 1, CH_PAD), _pad2(b0, 1, CH_PAD),
           _pad2(W1, CH_PAD, CH_PAD), _pad2(s1, 1, CH_PAD), _pad2(b1, 1, CH_PAD),
           _pad2(W2, CH_PAD, CH_PAD), _pad2(s2, 1, CH_PAD), _pad2(b2, 1, CH_PAD),
           _pad2(Ws, CH_PAD, VO_PAD), _pad2(bs, 1, VO_PAD)]

    # Pose3DBranch
    W0, s0, b0, W1, s1, b1, W2, s2, b2, Ws, bs = raw["pose"]
    fp += [_pad2(W0, CH_PAD, CH_PAD), _pad2(s0, 1, CH_PAD), _pad2(b0, 1, CH_PAD),
           _pad2(W1, CH_PAD, CH_PAD), _pad2(s1, 1, CH_PAD), _pad2(b1, 1, CH_PAD),
           _pad2(W2, CH_PAD, CH_PAD), _pad2(s2, 1, CH_PAD), _pad2(b2, 1, CH_PAD),
           _pad2(Ws, CH_PAD, PO_PAD), _pad2(bs, 1, PO_PAD)]

    # MultiViewAttention: expand weight (200, 32) split into the x1 / x2 halves
    W0, s0, b0, W1, s1, b1, W2, s2, b2, Ws, bs = raw["attn"]
    fp += [_pad2(W0[:VIEW_OUP], VO_PAD, CH_PAD), _pad2(W0[VIEW_OUP:], VO_PAD, CH_PAD),
           _pad2(s0, 1, CH_PAD), _pad2(b0, 1, CH_PAD),
           _pad2(W1, CH_PAD, CH_PAD), _pad2(s1, 1, CH_PAD), _pad2(b1, 1, CH_PAD),
           _pad2(W2, CH_PAD, CH_PAD), _pad2(s2, 1, CH_PAD), _pad2(b2, 1, CH_PAD),
           _pad2(Ws, CH_PAD, PO_PAD), _pad2(bs, 1, PO_PAD)]

    # Shrink: expand weight (132, 32) split into pose(32) / view(100) halves
    W0, s0, b0, Ws, bs = raw["shrink"]
    fp += [_pad2(W0[:POSE_OUP], PO_PAD, CH_PAD), _pad2(W0[POSE_OUP:], VO_PAD, CH_PAD),
           _pad2(s0, 1, CH_PAD), _pad2(b0, 1, CH_PAD),
           _pad2(Ws, CH_PAD, OUT_PAD), _pad2(bs, 1, OUT_PAD)]

    return tuple(fp)


# ----------------------------------------------------------------------------
# Pure-JAX reference (mirrors the PyTorch module exactly; unpadded params)
# ----------------------------------------------------------------------------
_HI = jax.lax.Precision.HIGHEST


def _ref_branch(x, params, num_layers, has_shrink, sigmoid=False):
    it = iter(params)
    W0, s0, b0 = next(it), next(it), next(it)
    h = jnp.maximum(jnp.dot(x, W0, precision=_HI) * s0 + b0, 0.0)
    for _ in range(num_layers):
        W1, s1, b1 = next(it), next(it), next(it)
        W2, s2, b2 = next(it), next(it), next(it)
        r = h
        h = jnp.maximum(jnp.dot(h, W1, precision=_HI) * s1 + b1, 0.0)
        h = jnp.maximum(jnp.dot(h, W2, precision=_HI) * s2 + b2, 0.0)
        h = r + h
    if has_shrink:
        Ws, bs = next(it), next(it)
        h = jnp.dot(h, Ws, precision=_HI) + bs
        if sigmoid:
            h = jax.nn.sigmoid(h)
    return h


def _ref_forward(raw, pos_2d, bone_angle, pos_2d_ov, bone_angle_ov):
    B = pos_2d.shape[0]
    inp1 = jnp.concatenate([pos_2d.reshape(B, -1), bone_angle.reshape(B, -1)], axis=1)
    inp2 = jnp.concatenate([pos_2d_ov.reshape(B, -1), bone_angle_ov.reshape(B, -1)], axis=1)
    f1 = _ref_branch(inp1, raw["backbone"], 1, False)
    f2 = _ref_branch(inp2, raw["backbone"], 1, False)
    x1 = _ref_branch(f1, raw["view"], 1, True)
    p1 = _ref_branch(f1, raw["pose"], 1, True)
    x2 = _ref_branch(f2, raw["view"], 1, True)
    p2 = _ref_branch(f2, raw["pose"], 1, True)
    att = _ref_branch(jnp.concatenate([x1, x2], axis=1), raw["attn"], 1, True, sigmoid=True)
    pose = p1 * att + p2 * (1.0 - att)
    o1 = _ref_branch(jnp.concatenate([pose, x1], axis=1), raw["shrink"], 0, True)
    o2 = _ref_branch(jnp.concatenate([pose, x2], axis=1), raw["shrink"], 0, True)
    return o1.reshape(B, 17, 3), o2.reshape(B, 17, 3)


# ----------------------------------------------------------------------------
if __name__ == "__main__":
    key = jax.random.PRNGKey(0)
    kparams, kdata = jax.random.split(key)

    raw_params = init_raw_params(kparams)
    flat_params = pad_params_for_kernel(raw_params)

    def make_inputs(k, B):
        k1, k2, k3, k4 = jax.random.split(k, 4)
        return (jax.random.normal(k1, (B, V1, C1), jnp.float32),
                jax.random.normal(k2, (B, V2, C2), jnp.float32),
                jax.random.normal(k3, (B, V1, C1), jnp.float32),
                jax.random.normal(k4, (B, V2, C2), jnp.float32))

    # --- small batch: single fused grid-less kernel --------------------------
    B = 2
    inputs = make_inputs(kdata, B)
    out1, out2 = single_multi_view_forward(flat_params, *inputs, block_rows=None)
    out1 = jax.block_until_ready(out1)
    out2 = jax.block_until_ready(out2)
    assert out1.shape == (B, 17, 3) and out2.shape == (B, 17, 3)
    assert bool(jnp.all(jnp.isfinite(out1))) and bool(jnp.all(jnp.isfinite(out2)))

    ref1, ref2 = _ref_forward(raw_params, *inputs)
    assert jnp.allclose(out1, ref1, rtol=1e-4, atol=1e-5), \
        float(jnp.max(jnp.abs(out1 - ref1)))
    assert jnp.allclose(out2, ref2, rtol=1e-4, atol=1e-5), \
        float(jnp.max(jnp.abs(out2 - ref2)))

    # --- large batch: exercise the batch-gridded (megacore-parallel) path ----
    B2 = 512
    inputs2 = make_inputs(jax.random.fold_in(kdata, 1), B2)
    out1b, out2b = single_multi_view_forward(flat_params, *inputs2, block_rows=256)
    out1b = jax.block_until_ready(out1b)
    out2b = jax.block_until_ready(out2b)
    ref1b, ref2b = _ref_forward(raw_params, *inputs2)
    assert jnp.allclose(out1b, ref1b, rtol=1e-4, atol=1e-5), \
        float(jnp.max(jnp.abs(out1b - ref1b)))
    assert jnp.allclose(out2b, ref2b, rtol=1e-4, atol=1e-5), \
        float(jnp.max(jnp.abs(out2b - ref2b)))

    # TODO(synk): optional bf16 weight cast for v6e/v7x (keep f32 VPU epilogue).
    print("KERNEL_OK")
</pallas_src>

<mosaic_0001>
module attributes {stable_mosaic.version = 11 : i64} {
  func.func @_fused_forward_kernel(%arg0: memref<2x128xf32, #tpu.memory_space<vmem>>, %arg1: memref<2x128xf32, #tpu.memory_space<vmem>>, %arg2: memref<128x128xf32, #tpu.memory_space<vmem>>, %arg3: memref<1x128xf32, #tpu.memory_space<vmem>>, %arg4: memref<1x128xf32, #tpu.memory_space<vmem>>, %arg5: memref<128x128xf32, #tpu.memory_space<vmem>>, %arg6: memref<1x128xf32, #tpu.memory_space<vmem>>, %arg7: memref<1x128xf32, #tpu.memory_space<vmem>>, %arg8: memref<128x128xf32, #tpu.memory_space<vmem>>, %arg9: memref<1x128xf32, #tpu.memory_space<vmem>>, %arg10: memref<1x128xf32, #tpu.memory_space<vmem>>, %arg11: memref<128x128xf32, #tpu.memory_space<vmem>>, %arg12: memref<1x128xf32, #tpu.memory_space<vmem>>, %arg13: memref<1x128xf32, #tpu.memory_space<vmem>>, %arg14: memref<128x128xf32, #tpu.memory_space<vmem>>, %arg15: memref<1x128xf32, #tpu.memory_space<vmem>>, %arg16: memref<1x128xf32, #tpu.memory_space<vmem>>, %arg17: memref<128x128xf32, #tpu.memory_space<vmem>>, %arg18: memref<1x128xf32, #tpu.memory_space<vmem>>, %arg19: memref<1x128xf32, #tpu.memory_space<vmem>>, %arg20: memref<128x128xf32, #tpu.memory_space<vmem>>, %arg21: memref<1x128xf32, #tpu.memory_space<vmem>>, %arg22: memref<128x128xf32, #tpu.memory_space<vmem>>, %arg23: memref<1x128xf32, #tpu.memory_space<vmem>>, %arg24: memref<1x128xf32, #tpu.memory_space<vmem>>, %arg25: memref<128x128xf32, #tpu.memory_space<vmem>>, %arg26: memref<1x128xf32, #tpu.memory_space<vmem>>, %arg27: memref<1x128xf32, #tpu.memory_space<vmem>>, %arg28: memref<128x128xf32, #tpu.memory_space<vmem>>, %arg29: memref<1x128xf32, #tpu.memory_space<vmem>>, %arg30: memref<1x128xf32, #tpu.memory_space<vmem>>, %arg31: memref<128x128xf32, #tpu.memory_space<vmem>>, %arg32: memref<1x128xf32, #tpu.memory_space<vmem>>, %arg33: memref<128x128xf32, #tpu.memory_space<vmem>>, %arg34: memref<128x128xf32, #tpu.memory_space<vmem>>, %arg35: memref<1x128xf32, #tpu.memory_space<vmem>>, %arg36: memref<1x128xf32, #tpu.memory_space<vmem>>, %arg37: memref<128x128xf32, #tpu.memory_space<vmem>>, %arg38: memref<1x128xf32, #tpu.memory_space<vmem>>, %arg39: memref<1x128xf32, #tpu.memory_space<vmem>>, %arg40: memref<128x128xf32, #tpu.memory_space<vmem>>, %arg41: memref<1x128xf32, #tpu.memory_space<vmem>>, %arg42: memref<1x128xf32, #tpu.memory_space<vmem>>, %arg43: memref<128x128xf32, #tpu.memory_space<vmem>>, %arg44: memref<1x128xf32, #tpu.memory_space<vmem>>, %arg45: memref<128x128xf32, #tpu.memory_space<vmem>>, %arg46: memref<128x128xf32, #tpu.memory_space<vmem>>, %arg47: memref<1x128xf32, #tpu.memory_space<vmem>>, %arg48: memref<1x128xf32, #tpu.memory_space<vmem>>, %arg49: memref<128x128xf32, #tpu.memory_space<vmem>>, %arg50: memref<1x128xf32, #tpu.memory_space<vmem>>, %arg51: memref<2x128xf32, #tpu.memory_space<vmem>>, %arg52: memref<2x128xf32, #tpu.memory_space<vmem>>) attributes {dimension_semantics = [], scalar_prefetch = 0 : i64, scratch_operands = 0 : i64, tpu.core_type = #tpu.core_type<tc>} {
    %c0 = arith.constant 0 : index
    %c0_0 = arith.constant 0 : index
    %0 = vector.load %arg2[%c0, %c0_0] : memref<128x128xf32, #tpu.memory_space<vmem>>, vector<128x128xf32>
    %c0_1 = arith.constant 0 : index
    %c0_2 = arith.constant 0 : index
    %1 = vector.load %arg3[%c0_1, %c0_2] : memref<1x128xf32, #tpu.memory_space<vmem>>, vector<1x128xf32>
    %c0_3 = arith.constant 0 : index
    %c0_4 = arith.constant 0 : index
    %2 = vector.load %arg4[%c0_3, %c0_4] : memref<1x128xf32, #tpu.memory_space<vmem>>, vector<1x128xf32>
    %c0_5 = arith.constant 0 : index
    %c0_6 = arith.constant 0 : index
    %3 = vector.load %arg5[%c0_5, %c0_6] : memref<128x128xf32, #tpu.memory_space<vmem>>, vector<128x128xf32>
    %c0_7 = arith.constant 0 : index
    %c0_8 = arith.constant 0 : index
    %4 = vector.load %arg6[%c0_7, %c0_8] : memref<1x128xf32, #tpu.memory_space<vmem>>, vector<1x128xf32>
    %c0_9 = arith.constant 0 : index
    %c0_10 = arith.constant 0 : index
    %5 = vector.load %arg7[%c0_9, %c0_10] : memref<1x128xf32, #tpu.memory_space<vmem>>, vector<1x128xf32>
    %c0_11 = arith.constant 0 : index
    %c0_12 = arith.constant 0 : index
    %6 = vector.load %arg8[%c0_11, %c0_12] : memref<128x128xf32, #tpu.memory_space<vmem>>, vector<128x128xf32>
    %c0_13 = arith.constant 0 : index
    %c0_14 = arith.constant 0 : index
    %7 = vector.load %arg9[%c0_13, %c0_14] : memref<1x128xf32, #tpu.memory_space<vmem>>, vector<1x128xf32>
    %c0_15 = arith.constant 0 : index
    %c0_16 = arith.constant 0 : index
    %8 = vector.load %arg10[%c0_15, %c0_16] : memref<1x128xf32, #tpu.memory_space<vmem>>, vector<1x128xf32>
    %c0_17 = arith.constant 0 : index
    %c0_18 = arith.constant 0 : index
    %9 = vector.load %arg0[%c0_17, %c0_18] : memref<2x128xf32, #tpu.memory_space<vmem>>, vector<2x128xf32>
    %cst = arith.constant dense<0.000000e+00> : vector<2x128xf32>
    %10 = tpu.matmul %9, %0, %cst {dimension_numbers = #tpu.dot_dimension_numbers<[1], [0], [0], [1], [0, 0, 1, 1], [], []>} : vector<2x128xf32>, vector<128x128xf32>, vector<2x128xf32> -> vector<2x128xf32>
    %11 = vector.broadcast %1 : vector<1x128xf32> to vector<2x128xf32>
    %12 = arith.mulf %10, %11 : vector<2x128xf32>
    %13 = vector.broadcast %2 : vector<1x128xf32> to vector<2x128xf32>
    %14 = arith.addf %12, %13 : vector<2x128xf32>
    %cst_19 = arith.constant 0.000000e+00 : f32
    %15 = vector.broadcast %cst_19 : f32 to vector<2x128xf32>
    %16 = arith.maximumf %14, %15 : vector<2x128xf32>
    %cst_20 = arith.constant dense<0.000000e+00> : vector<2x128xf32>
    %17 = tpu.matmul %16, %3, %cst_20 {dimension_numbers = #tpu.dot_dimension_numbers<[1], [0], [0], [1], [0, 0, 1, 1], [], []>} : vector<2x128xf32>, vector<128x128xf32>, vector<2x128xf32> -> vector<2x128xf32>
    %18 = vector.broadcast %4 : vector<1x128xf32> to vector<2x128xf32>
    %19 = arith.mulf %17, %18 : vector<2x128xf32>
    %20 = vector.broadcast %5 : vector<1x128xf32> to vector<2x128xf32>
    %21 = arith.addf %19, %20 : vector<2x128xf32>
    %cst_21 = arith.constant 0.000000e+00 : f32
    %22 = vector.broadcast %cst_21 : f32 to vector<2x128xf32>
    %23 = arith.maximumf %21, %22 : vector<2x128xf32>
    %cst_22 = arith.constant dense<0.000000e+00> : vector<2x128xf32>
    %24 = tpu.matmul %23, %6, %cst_22 {dimension_numbers = #tpu.dot_dimension_numbers<[1], [0], [0], [1], [0, 0, 1, 1], [], []>} : vector<2x128xf32>, vector<128x128xf32>, vector<2x128xf32> -> vector<2x128xf32>
    %25 = vector.broadcast %7 : vector<1x128xf32> to vector<2x128xf32>
    %26 = arith.mulf %24, %25 : vector<2x128xf32>
    %27 = vector.broadcast %8 : vector<1x128xf32> to vector<2x128xf32>
    %28 = arith.addf %26, %27 : vector<2x128xf32>
    %cst_23 = arith.constant 0.000000e+00 : f32
    %29 = vector.broadcast %cst_23 : f32 to vector<2x128xf32>
    %30 = arith.maximumf %28, %29 : vector<2x128xf32>
    %31 = arith.addf %16, %30 : vector<2x128xf32>
    %c0_24 = arith.constant 0 : index
    %c0_25 = arith.constant 0 : index
    %32 = vector.load %arg1[%c0_24, %c0_25] : memref<2x128xf32, #tpu.memory_space<vmem>>, vector<2x128xf32>
    %cst_26 = arith.constant dense<0.000000e+00> : vector<2x128xf32>
    %33 = tpu.matmul %32, %0, %cst_26 {dimension_numbers = #tpu.dot_dimension_numbers<[1], [0], [0], [1], [0, 0, 1, 1], [], []>} : vector<2x128xf32>, vector<128x128xf32>, vector<2x128xf32> -> vector<2x128xf32>
    %34 = vector.broadcast %1 : vector<1x128xf32> to vector<2x128xf32>
    %35 = arith.mulf %33, %34 : vector<2x128xf32>
    %36 = vector.broadcast %2 : vector<1x128xf32> to vector<2x128xf32>
    %37 = arith.addf %35, %36 : vector<2x128xf32>
    %cst_27 = arith.constant 0.000000e+00 : f32
    %38 = vector.broadcast %cst_27 : f32 to vector<2x128xf32>
    %39 = arith.maximumf %37, %38 : vector<2x128xf32>
    %cst_28 = arith.constant dense<0.000000e+00> : vector<2x128xf32>
    %40 = tpu.matmul %39, %3, %cst_28 {dimension_numbers = #tpu.dot_dimension_numbers<[1], [0], [0], [1], [0, 0, 1, 1], [], []>} : vector<2x128xf32>, vector<128x128xf32>, vector<2x128xf32> -> vector<2x128xf32>
    %41 = vector.broadcast %4 : vector<1x128xf32> to vector<2x128xf32>
    %42 = arith.mulf %40, %41 : vector<2x128xf32>
    %43 = vector.broadcast %5 : vector<1x128xf32> to vector<2x128xf32>
    %44 = arith.addf %42, %43 : vector<2x128xf32>
    %cst_29 = arith.constant 0.000000e+00 : f32
    %45 = vector.broadcast %cst_29 : f32 to vector<2x128xf32>
    %46 = arith.maximumf %44, %45 : vector<2x128xf32>
    %cst_30 = arith.constant dense<0.000000e+00> : vector<2x128xf32>
    %47 = tpu.matmul %46, %6, %cst_30 {dimension_numbers = #tpu.dot_dimension_numbers<[1], [0], [0], [1], [0, 0, 1, 1], [], []>} : vector<2x128xf32>, vector<128x128xf32>, vector<2x128xf32> -> vector<2x128xf32>
    %48 = vector.broadcast %7 : vector<1x128xf32> to vector<2x128xf32>
    %49 = arith.mulf %47, %48 : vector<2x128xf32>
    %50 = vector.broadcast %8 : vector<1x128xf32> to vector<2x128xf32>
    %51 = arith.addf %49, %50 : vector<2x128xf32>
    %cst_31 = arith.constant 0.000000e+00 : f32
    %52 = vector.broadcast %cst_31 : f32 to vector<2x128xf32>
    %53 = arith.maximumf %51, %52 : vector<2x128xf32>
    %54 = arith.addf %39, %53 : vector<2x128xf32>
    %c0_32 = arith.constant 0 : index
    %c0_33 = arith.constant 0 : index
    %55 = vector.load %arg11[%c0_32, %c0_33] : memref<128x128xf32, #tpu.memory_space<vmem>>, vector<128x128xf32>
    %c0_34 = arith.constant 0 : index
    %c0_35 = arith.constant 0 : index
    %56 = vector.load %arg12[%c0_34, %c0_35] : memref<1x128xf32, #tpu.memory_space<vmem>>, vector<1x128xf32>
    %c0_36 = arith.constant 0 : index
    %c0_37 = arith.constant 0 : index
    %57 = vector.load %arg13[%c0_36, %c0_37] : memref<1x128xf32, #tpu.memory_space<vmem>>, vector<1x128xf32>
    %c0_38 = arith.constant 0 : index
    %c0_39 = arith.constant 0 : index
    %58 = vector.load %arg14[%c0_38, %c0_39] : memref<128x128xf32, #tpu.memory_space<vmem>>, vector<128x128xf32>
    %c0_40 = arith.constant 0 : index
    %c0_41 = arith.constant 0 : index
    %59 = vector.load %arg15[%c0_40, %c0_41] : memref<1x128xf32, #tpu.memory_space<vmem>>, vector<1x128xf32>
    %c0_42 = arith.constant 0 : index
    %c0_43 = arith.constant 0 : index
    %60 = vector.load %arg16[%c0_42, %c0_43] : memref<1x128xf32, #tpu.memory_space<vmem>>, vector<1x128xf32>
    %c0_44 = arith.constant 0 : index
    %c0_45 = arith.constant 0 : index
    %61 = vector.load %arg17[%c0_44, %c0_45] : memref<128x128xf32, #tpu.memory_space<vmem>>, vector<128x128xf32>
    %c0_46 = arith.constant 0 : index
    %c0_47 = arith.constant 0 : index
    %62 = vector.load %arg18[%c0_46, %c0_47] : memref<1x128xf32, #tpu.memory_space<vmem>>, vector<1x128xf32>
    %c0_48 = arith.constant 0 : index
    %c0_49 = arith.constant 0 : index
    %63 = vector.load %arg19[%c0_48, %c0_49] : memref<1x128xf32, #tpu.memory_space<vmem>>, vector<1x128xf32>
    %c0_50 = arith.constant 0 : index
    %c0_51 = arith.constant 0 : index
    %64 = vector.load %arg20[%c0_50, %c0_51] : memref<128x128xf32, #tpu.memory_space<vmem>>, vector<128x128xf32>
    %c0_52 = arith.constant 0 : index
    %c0_53 = arith.constant 0 : index
    %65 = vector.load %arg21[%c0_52, %c0_53] : memref<1x128xf32, #tpu.memory_space<vmem>>, vector<1x128xf32>
    %cst_54 = arith.constant dense<0.000000e+00> : vector<2x128xf32>
    %66 = tpu.matmul %31, %55, %cst_54 {dimension_numbers = #tpu.dot_dimension_numbers<[1], [0], [0], [1], [0, 0, 1, 1], [], []>} : vector<2x128xf32>, vector<128x128xf32>, vector<2x128xf32> -> vector<2x128xf32>
    %67 = vector.broadcast %56 : vector<1x128xf32> to vector<2x128xf32>
    %68 = arith.mulf %66, %67 : vector<2x128xf32>
    %69 = vector.broadcast %57 : vector<1x128xf32> to vector<2x128xf32>
    %70 = arith.addf %68, %69 : vector<2x128xf32>
    %cst_55 = arith.constant 0.000000e+00 : f32
    %71 = vector.broadcast %cst_55 : f32 to vector<2x128xf32>
    %72 = arith.maximumf %70, %71 : vector<2x128xf32>
    %cst_56 = arith.constant dense<0.000000e+00> : vector<2x128xf32>
    %73 = tpu.matmul %72, %58, %cst_56 {dimension_numbers = #tpu.dot_dimension_numbers<[1], [0], [0], [1], [0, 0, 1, 1], [], []>} : vector<2x128xf32>, vector<128x128xf32>, vector<2x128xf32> -> vector<2x128xf32>
    %74 = vector.broadcast %59 : vector<1x128xf32> to vector<2x128xf32>
    %75 = arith.mulf %73, %74 : vector<2x128xf32>
    %76 = vector.broadcast %60 : vector<1x128xf32> to vector<2x128xf32>
    %77 = arith.addf %75, %76 : vector<2x128xf32>
    %cst_57 = arith.constant 0.000000e+00 : f32
    %78 = vector.broadcast %cst_57 : f32 to vector<2x128xf32>
    %79 = arith.maximumf %77, %78 : vector<2x128xf32>
    %cst_58 = arith.constant dense<0.000000e+00> : vector<2x128xf32>
    %80 = tpu.matmul %79, %61, %cst_58 {dimension_numbers = #tpu.dot_dimension_numbers<[1], [0], [0], [1], [0, 0, 1, 1], [], []>} : vector<2x128xf32>, vector<128x128xf32>, vector<2x128xf32> -> vector<2x128xf32>
    %81 = vector.broadcast %62 : vector<1x128xf32> to vector<2x128xf32>
    %82 = arith.mulf %80, %81 : vector<2x128xf32>
    %83 = vector.broadcast %63 : vector<1x128xf32> to vector<2x128xf32>
    %84 = arith.addf %82, %83 : vector<2x128xf32>
    %cst_59 = arith.constant 0.000000e+00 : f32
    %85 = vector.broadcast %cst_59 : f32 to vector<2x128xf32>
    %86 = arith.maximumf %84, %85 : vector<2x128xf32>
    %87 = arith.addf %72, %86 : vector<2x128xf32>
    %cst_60 = arith.constant dense<0.000000e+00> : vector<2x128xf32>
    %88 = tpu.matmul %87, %64, %cst_60 {dimension_numbers = #tpu.dot_dimension_numbers<[1], [0], [0], [1], [0, 0, 1, 1], [], []>} : vector<2x128xf32>, vector<128x128xf32>, vector<2x128xf32> -> vector<2x128xf32>
    %89 = vector.broadcast %65 : vector<1x128xf32> to vector<2x128xf32>
    %90 = arith.addf %88, %89 : vector<2x128xf32>
    %cst_61 = arith.constant dense<0.000000e+00> : vector<2x128xf32>
    %91 = tpu.matmul %54, %55, %cst_61 {dimension_numbers = #tpu.dot_dimension_numbers<[1], [0], [0], [1], [0, 0, 1, 1], [], []>} : vector<2x128xf32>, vector<128x128xf32>, vector<2x128xf32> -> vector<2x128xf32>
    %92 = vector.broadcast %56 : vector<1x128xf32> to vector<2x128xf32>
    %93 = arith.mulf %91, %92 : vector<2x128xf32>
    %94 = vector.broadcast %57 : vector<1x128xf32> to vector<2x128xf32>
    %95 = arith.addf %93, %94 : vector<2x128xf32>
    %cst_62 = arith.constant 0.000000e+00 : f32
    %96 = vector.broadcast %cst_62 : f32 to vector<2x128xf32>
    %97 = arith.maximumf %95, %96 : vector<2x128xf32>
    %cst_63 = arith.constant dense<0.000000e+00> : vector<2x128xf32>
    %98 = tpu.matmul %97, %58, %cst_63 {dimension_numbers = #tpu.dot_dimension_numbers<[1], [0], [0], [1], [0, 0, 1, 1], [], []>} : vector<2x128xf32>, vector<128x128xf32>, vector<2x128xf32> -> vector<2x128xf32>
    %99 = vector.broadcast %59 : vector<1x128xf32> to vector<2x128xf32>
    %100 = arith.mulf %98, %99 : vector<2x128xf32>
    %101 = vector.broadcast %60 : vector<1x128xf32> to vector<2x128xf32>
    %102 = arith.addf %100, %101 : vector<2x128xf32>
    %cst_64 = arith.constant 0.000000e+00 : f32
    %103 = vector.broadcast %cst_64 : f32 to vector<2x128xf32>
    %104 = arith.maximumf %102, %103 : vector<2x128xf32>
    %cst_65 = arith.constant dense<0.000000e+00> : vector<2x128xf32>
    %105 = tpu.matmul %104, %61, %cst_65 {dimension_numbers = #tpu.dot_dimension_numbers<[1], [0], [0], [1], [0, 0, 1, 1], [], []>} : vector<2x128xf32>, vector<128x128xf32>, vector<2x128xf32> -> vector<2x128xf32>
    %106 = vector.broadcast %62 : vector<1x128xf32> to vector<2x128xf32>
    %107 = arith.mulf %105, %106 : vector<2x128xf32>
    %108 = vector.broadcast %63 : vector<1x128xf32> to vector<2x128xf32>
    %109 = arith.addf %107, %108 : vector<2x128xf32>
    %cst_66 = arith.constant 0.000000e+00 : f32
    %110 = vector.broadcast %cst_66 : f32 to vector<2x128xf32>
    %111 = arith.maximumf %109, %110 : vector<2x128xf32>
    %112 = arith.addf %97, %111 : vector<2x128xf32>
    %cst_67 = arith.constant dense<0.000000e+00> : vector<2x128xf32>
    %113 = tpu.matmul %112, %64, %cst_67 {dimension_numbers = #tpu.dot_dimension_numbers<[1], [0], [0], [1], [0, 0, 1, 1], [], []>} : vector<2x128xf32>, vector<128x128xf32>, vector<2x128xf32> -> vector<2x128xf32>
    %114 = vector.broadcast %65 : vector<1x128xf32> to vector<2x128xf32>
    %115 = arith.addf %113, %114 : vector<2x128xf32>
    %c0_68 = arith.constant 0 : index
    %c0_69 = arith.constant 0 : index
    %116 = vector.load %arg22[%c0_68, %c0_69] : memref<128x128xf32, #tpu.memory_space<vmem>>, vector<128x128xf32>
    %c0_70 = arith.constant 0 : index
    %c0_71 = arith.constant 0 : index
    %117 = vector.load %arg23[%c0_70, %c0_71] : memref<1x128xf32, #tpu.memory_space<vmem>>, vector<1x128xf32>
    %c0_72 = arith.constant 0 : index
    %c0_73 = arith.constant 0 : index
    %118 = vector.load %arg24[%c0_72, %c0_73] : memref<1x128xf32, #tpu.memory_space<vmem>>, vector<1x128xf32>
    %c0_74 = arith.constant 0 : index
    %c0_75 = arith.constant 0 : index
    %119 = vector.load %arg25[%c0_74, %c0_75] : memref<128x128xf32, #tpu.memory_space<vmem>>, vector<128x128xf32>
    %c0_76 = arith.constant 0 : index
    %c0_77 = arith.constant 0 : index
    %120 = vector.load %arg26[%c0_76, %c0_77] : memref<1x128xf32, #tpu.memory_space<vmem>>, vector<1x128xf32>
    %c0_78 = arith.constant 0 : index
    %c0_79 = arith.constant 0 : index
    %121 = vector.load %arg27[%c0_78, %c0_79] : memref<1x128xf32, #tpu.memory_space<vmem>>, vector<1x128xf32>
    %c0_80 = arith.constant 0 : index
    %c0_81 = arith.constant 0 : index
    %122 = vector.load %arg28[%c0_80, %c0_81] : memref<128x128xf32, #tpu.memory_space<vmem>>, vector<128x128xf32>
    %c0_82 = arith.constant 0 : index
    %c0_83 = arith.constant 0 : index
    %123 = vector.load %arg29[%c0_82, %c0_83] : memref<1x128xf32, #tpu.memory_space<vmem>>, vector<1x128xf32>
    %c0_84 = arith.constant 0 : index
    %c0_85 = arith.constant 0 : index
    %124 = vector.load %arg30[%c0_84, %c0_85] : memref<1x128xf32, #tpu.memory_space<vmem>>, vector<1x128xf32>
    %c0_86 = arith.constant 0 : index
    %c0_87 = arith.constant 0 : index
    %125 = vector.load %arg31[%c0_86, %c0_87] : memref<128x128xf32, #tpu.memory_space<vmem>>, vector<128x128xf32>
    %c0_88 = arith.constant 0 : index
    %c0_89 = arith.constant 0 : index
    %126 = vector.load %arg32[%c0_88, %c0_89] : memref<1x128xf32, #tpu.memory_space<vmem>>, vector<1x128xf32>
    %cst_90 = arith.constant dense<0.000000e+00> : vector<2x128xf32>
    %127 = tpu.matmul %31, %116, %cst_90 {dimension_numbers = #tpu.dot_dimension_numbers<[1], [0], [0], [1], [0, 0, 1, 1], [], []>} : vector<2x128xf32>, vector<128x128xf32>, vector<2x128xf32> -> vector<2x128xf32>
    %128 = vector.broadcast %117 : vector<1x128xf32> to vector<2x128xf32>
    %129 = arith.mulf %127, %128 : vector<2x128xf32>
    %130 = vector.broadcast %118 : vector<1x128xf32> to vector<2x128xf32>
    %131 = arith.addf %129, %130 : vector<2x128xf32>
    %cst_91 = arith.constant 0.000000e+00 : f32
    %132 = vector.broadcast %cst_91 : f32 to vector<2x128xf32>
    %133 = arith.maximumf %131, %132 : vector<2x128xf32>
    %cst_92 = arith.constant dense<0.000000e+00> : vector<2x128xf32>
    %134 = tpu.matmul %133, %119, %cst_92 {dimension_numbers = #tpu.dot_dimension_numbers<[1], [0], [0], [1], [0, 0, 1, 1], [], []>} : vector<2x128xf32>, vector<128x128xf32>, vector<2x128xf32> -> vector<2x128xf32>
    %135 = vector.broadcast %120 : vector<1x128xf32> to vector<2x128xf32>
    %136 = arith.mulf %134, %135 : vector<2x128xf32>
    %137 = vector.broadcast %121 : vector<1x128xf32> to vector<2x128xf32>
    %138 = arith.addf %136, %137 : vector<2x128xf32>
    %cst_93 = arith.constant 0.000000e+00 : f32
    %139 = vector.broadcast %cst_93 : f32 to vector<2x128xf32>
    %140 = arith.maximumf %138, %139 : vector<2x128xf32>
    %cst_94 = arith.constant dense<0.000000e+00> : vector<2x128xf32>
    %141 = tpu.matmul %140, %122, %cst_94 {dimension_numbers = #tpu.dot_dimension_numbers<[1], [0], [0], [1], [0, 0, 1, 1], [], []>} : vector<2x128xf32>, vector<128x128xf32>, vector<2x128xf32> -> vector<2x128xf32>
    %142 = vector.broadcast %123 : vector<1x128xf32> to vector<2x128xf32>
    %143 = arith.mulf %141, %142 : vector<2x128xf32>
    %144 = vector.broadcast %124 : vector<1x128xf32> to vector<2x128xf32>
    %145 = arith.addf %143, %144 : vector<2x128xf32>
    %cst_95 = arith.constant 0.000000e+00 : f32
    %146 = vector.broadcast %cst_95 : f32 to vector<2x128xf32>
    %147 = arith.maximumf %145, %146 : vector<2x128xf32>
    %148 = arith.addf %133, %147 : vector<2x128xf32>
    %cst_96 = arith.constant dense<0.000000e+00> : vector<2x128xf32>
    %149 = tpu.matmul %148, %125, %cst_96 {dimension_numbers = #tpu.dot_dimension_numbers<[1], [0], [0], [1], [0, 0, 1, 1], [], []>} : vector<2x128xf32>, vector<128x128xf32>, vector<2x128xf32> -> vector<2x128xf32>
    %150 = vector.broadcast %126 : vector<1x128xf32> to vector<2x128xf32>
    %151 = arith.addf %149, %150 : vector<2x128xf32>
    %cst_97 = arith.constant dense<0.000000e+00> : vector<2x128xf32>
    %152 = tpu.matmul %54, %116, %cst_97 {dimension_numbers = #tpu.dot_dimension_numbers<[1], [0], [0], [1], [0, 0, 1, 1], [], []>} : vector<2x128xf32>, vector<128x128xf32>, vector<2x128xf32> -> vector<2x128xf32>
    %153 = vector.broadcast %117 : vector<1x128xf32> to vector<2x128xf32>
    %154 = arith.mulf %152, %153 : vector<2x128xf32>
    %155 = vector.broadcast %118 : vector<1x128xf32> to vector<2x128xf32>
    %156 = arith.addf %154, %155 : vector<2x128xf32>
    %cst_98 = arith.constant 0.000000e+00 : f32
    %157 = vector.broadcast %cst_98 : f32 to vector<2x128xf32>
    %158 = arith.maximumf %156, %157 : vector<2x128xf32>
    %cst_99 = arith.constant dense<0.000000e+00> : vector<2x128xf32>
    %159 = tpu.matmul %158, %119, %cst_99 {dimension_numbers = #tpu.dot_dimension_numbers<[1], [0], [0], [1], [0, 0, 1, 1], [], []>} : vector<2x128xf32>, vector<128x128xf32>, vector<2x128xf32> -> vector<2x128xf32>
    %160 = vector.broadcast %120 : vector<1x128xf32> to vector<2x128xf32>
    %161 = arith.mulf %159, %160 : vector<2x128xf32>
    %162 = vector.broadcast %121 : vector<1x128xf32> to vector<2x128xf32>
    %163 = arith.addf %161, %162 : vector<2x128xf32>
    %cst_100 = arith.constant 0.000000e+00 : f32
    %164 = vector.broadcast %cst_100 : f32 to vector<2x128xf32>
    %165 = arith.maximumf %163, %164 : vector<2x128xf32>
    %cst_101 = arith.constant dense<0.000000e+00> : vector<2x128xf32>
    %166 = tpu.matmul %165, %122, %cst_101 {dimension_numbers = #tpu.dot_dimension_numbers<[1], [0], [0], [1], [0, 0, 1, 1], [], []>} : vector<2x128xf32>, vector<128x128xf32>, vector<2x128xf32> -> vector<2x128xf32>
    %167 = vector.broadcast %123 : vector<1x128xf32> to vector<2x128xf32>
    %168 = arith.mulf %166, %167 : vector<2x128xf32>
    %169 = vector.broadcast %124 : vector<1x128xf32> to vector<2x128xf32>
    %170 = arith.addf %168, %169 : vector<2x128xf32>
    %cst_102 = arith.constant 0.000000e+00 : f32
    %171 = vector.broadcast %cst_102 : f32 to vector<2x128xf32>
    %172 = arith.maximumf %170, %171 : vector<2x128xf32>
    %173 = arith.addf %158, %172 : vector<2x128xf32>
    %cst_103 = arith.constant dense<0.000000e+00> : vector<2x128xf32>
    %174 = tpu.matmul %173, %125, %cst_103 {dimension_numbers = #tpu.dot_dimension_numbers<[1], [0], [0], [1], [0, 0, 1, 1], [], []>} : vector<2x128xf32>, vector<128x128xf32>, vector<2x128xf32> -> vector<2x128xf32>
    %175 = vector.broadcast %126 : vector<1x128xf32> to vector<2x128xf32>
    %176 = arith.addf %174, %175 : vector<2x128xf32>
    %c0_104 = arith.constant 0 : index
    %c0_105 = arith.constant 0 : index
    %177 = vector.load %arg33[%c0_104, %c0_105] : memref<128x128xf32, #tpu.memory_space<vmem>>, vector<128x128xf32>
    %c0_106 = arith.constant 0 : index
    %c0_107 = arith.constant 0 : index
    %178 = vector.load %arg34[%c0_106, %c0_107] : memref<128x128xf32, #tpu.memory_space<vmem>>, vector<128x128xf32>
    %c0_108 = arith.constant 0 : index
    %c0_109 = arith.constant 0 : index
    %179 = vector.load %arg35[%c0_108, %c0_109] : memref<1x128xf32, #tpu.memory_space<vmem>>, vector<1x128xf32>
    %c0_110 = arith.constant 0 : index
    %c0_111 = arith.constant 0 : index
    %180 = vector.load %arg36[%c0_110, %c0_111] : memref<1x128xf32, #tpu.memory_space<vmem>>, vector<1x128xf32>
    %c0_112 = arith.constant 0 : index
    %c0_113 = arith.constant 0 : index
    %181 = vector.load %arg37[%c0_112, %c0_113] : memref<128x128xf32, #tpu.memory_space<vmem>>, vector<128x128xf32>
    %c0_114 = arith.constant 0 : index
    %c0_115 = arith.constant 0 : index
    %182 = vector.load %arg38[%c0_114, %c0_115] : memref<1x128xf32, #tpu.memory_space<vmem>>, vector<1x128xf32>
    %c0_116 = arith.constant 0 : index
    %c0_117 = arith.constant 0 : index
    %183 = vector.load %arg39[%c0_116, %c0_117] : memref<1x128xf32, #tpu.memory_space<vmem>>, vector<1x128xf32>
    %c0_118 = arith.constant 0 : index
    %c0_119 = arith.constant 0 : index
    %184 = vector.load %arg40[%c0_118, %c0_119] : memref<128x128xf32, #tpu.memory_space<vmem>>, vector<128x128xf32>
    %c0_120 = arith.constant 0 : index
    %c0_121 = arith.constant 0 : index
    %185 = vector.load %arg41[%c0_120, %c0_121] : memref<1x128xf32, #tpu.memory_space<vmem>>, vector<1x128xf32>
    %c0_122 = arith.constant 0 : index
    %c0_123 = arith.constant 0 : index
    %186 = vector.load %arg42[%c0_122, %c0_123] : memref<1x128xf32, #tpu.memory_space<vmem>>, vector<1x128xf32>
    %c0_124 = arith.constant 0 : index
    %c0_125 = arith.constant 0 : index
    %187 = vector.load %arg43[%c0_124, %c0_125] : memref<128x128xf32, #tpu.memory_space<vmem>>, vector<128x128xf32>
    %c0_126 = arith.constant 0 : index
    %c0_127 = arith.constant 0 : index
    %188 = vector.load %arg44[%c0_126, %c0_127] : memref<1x128xf32, #tpu.memory_space<vmem>>, vector<1x128xf32>
    %cst_128 = arith.constant dense<0.000000e+00> : vector<2x128xf32>
    %189 = tpu.matmul %90, %177, %cst_128 {dimension_numbers = #tpu.dot_dimension_numbers<[1], [0], [0], [1], [0, 0, 1, 1], [], []>} : vector<2x128xf32>, vector<128x128xf32>, vector<2x128xf32> -> vector<2x128xf32>
    %cst_129 = arith.constant dense<0.000000e+00> : vector<2x128xf32>
    %190 = tpu.matmul %115, %178, %cst_129 {dimension_numbers = #tpu.dot_dimension_numbers<[1], [0], [0], [1], [0, 0, 1, 1], [], []>} : vector<2x128xf32>, vector<128x128xf32>, vector<2x128xf32> -> vector<2x128xf32>
    %191 = arith.addf %189, %190 : vector<2x128xf32>
    %192 = vector.broadcast %179 : vector<1x128xf32> to vector<2x128xf32>
    %193 = arith.mulf %191, %192 : vector<2x128xf32>
    %194 = vector.broadcast %180 : vector<1x128xf32> to vector<2x128xf32>
    %195 = arith.addf %193, %194 : vector<2x128xf32>
    %cst_130 = arith.constant 0.000000e+00 : f32
    %196 = vector.broadcast %cst_130 : f32 to vector<2x128xf32>
    %197 = arith.maximumf %195, %196 : vector<2x128xf32>
    %cst_131 = arith.constant dense<0.000000e+00> : vector<2x128xf32>
    %198 = tpu.matmul %197, %181, %cst_131 {dimension_numbers = #tpu.dot_dimension_numbers<[1], [0], [0], [1], [0, 0, 1, 1], [], []>} : vector<2x128xf32>, vector<128x128xf32>, vector<2x128xf32> -> vector<2x128xf32>
    %199 = vector.broadcast %182 : vector<1x128xf32> to vector<2x128xf32>
    %200 = arith.mulf %198, %199 : vector<2x128xf32>
    %201 = vector.broadcast %183 : vector<1x128xf32> to vector<2x128xf32>
    %202 = arith.addf %200, %201 : vector<2x128xf32>
    %cst_132 = arith.constant 0.000000e+00 : f32
    %203 = vector.broadcast %cst_132 : f32 to vector<2x128xf32>
    %204 = arith.maximumf %202, %203 : vector<2x128xf32>
    %cst_133 = arith.constant dense<0.000000e+00> : vector<2x128xf32>
    %205 = tpu.matmul %204, %184, %cst_133 {dimension_numbers = #tpu.dot_dimension_numbers<[1], [0], [0], [1], [0, 0, 1, 1], [], []>} : vector<2x128xf32>, vector<128x128xf32>, vector<2x128xf32> -> vector<2x128xf32>
    %206 = vector.broadcast %185 : vector<1x128xf32> to vector<2x128xf32>
    %207 = arith.mulf %205, %206 : vector<2x128xf32>
    %208 = vector.broadcast %186 : vector<1x128xf32> to vector<2x128xf32>
    %209 = arith.addf %207, %208 : vector<2x128xf32>
    %cst_134 = arith.constant 0.000000e+00 : f32
    %210 = vector.broadcast %cst_134 : f32 to vector<2x128xf32>
    %211 = arith.maximumf %209, %210 : vector<2x128xf32>
    %212 = arith.addf %197, %211 : vector<2x128xf32>
    %cst_135 = arith.constant dense<0.000000e+00> : vector<2x128xf32>
    %213 = tpu.matmul %212, %187, %cst_135 {dimension_numbers = #tpu.dot_dimension_numbers<[1], [0], [0], [1], [0, 0, 1, 1], [], []>} : vector<2x128xf32>, vector<128x128xf32>, vector<2x128xf32> -> vector<2x128xf32>
    %214 = vector.broadcast %188 : vector<1x128xf32> to vector<2x128xf32>
    %215 = arith.addf %213, %214 : vector<2x128xf32>
    %216 = arith.negf %215 : vector<2x128xf32>
    %217 = math.exp %216 : vector<2x128xf32>
    %cst_136 = arith.constant 1.000000e+00 : f32
    %218 = vector.broadcast %cst_136 : f32 to vector<2x128xf32>
    %219 = arith.addf %218, %217 : vector<2x128xf32>
    %220 = arith.divf %218, %219 : vector<2x128xf32>
    %221 = arith.mulf %151, %220 : vector<2x128xf32>
    %cst_137 = arith.constant 1.000000e+00 : f32
    %222 = vector.broadcast %cst_137 : f32 to vector<2x128xf32>
    %223 = arith.subf %222, %220 : vector<2x128xf32>
    %224 = arith.mulf %176, %223 : vector<2x128xf32>
    %225 = arith.addf %221, %224 : vector<2x128xf32>
    %c0_138 = arith.constant 0 : index
    %c0_139 = arith.constant 0 : index
    %226 = vector.load %arg45[%c0_138, %c0_139] : memref<128x128xf32, #tpu.memory_space<vmem>>, vector<128x128xf32>
    %c0_140 = arith.constant 0 : index
    %c0_141 = arith.constant 0 : index
    %227 = vector.load %arg46[%c0_140, %c0_141] : memref<128x128xf32, #tpu.memory_space<vmem>>, vector<128x128xf32>
    %c0_142 = arith.constant 0 : index
    %c0_143 = arith.constant 0 : index
    %228 = vector.load %arg47[%c0_142, %c0_143] : memref<1x128xf32, #tpu.memory_space<vmem>>, vector<1x128xf32>
    %c0_144 = arith.constant 0 : index
    %c0_145 = arith.constant 0 : index
    %229 = vector.load %arg48[%c0_144, %c0_145] : memref<1x128xf32, #tpu.memory_space<vmem>>, vector<1x128xf32>
    %c0_146 = arith.constant 0 : index
    %c0_147 = arith.constant 0 : index
    %230 = vector.load %arg49[%c0_146, %c0_147] : memref<128x128xf32, #tpu.memory_space<vmem>>, vector<128x128xf32>
    %c0_148 = arith.constant 0 : index
    %c0_149 = arith.constant 0 : index
    %231 = vector.load %arg50[%c0_148, %c0_149] : memref<1x128xf32, #tpu.memory_space<vmem>>, vector<1x128xf32>
    %cst_150 = arith.constant dense<0.000000e+00> : vector<2x128xf32>
    %232 = tpu.matmul %225, %226, %cst_150 {dimension_numbers = #tpu.dot_dimension_numbers<[1], [0], [0], [1], [0, 0, 1, 1], [], []>} : vector<2x128xf32>, vector<128x128xf32>, vector<2x128xf32> -> vector<2x128xf32>
    %cst_151 = arith.constant dense<0.000000e+00> : vector<2x128xf32>
    %233 = tpu.matmul %90, %227, %cst_151 {dimension_numbers = #tpu.dot_dimension_numbers<[1], [0], [0], [1], [0, 0, 1, 1], [], []>} : vector<2x128xf32>, vector<128x128xf32>, vector<2x128xf32> -> vector<2x128xf32>
    %234 = arith.addf %232, %233 : vector<2x128xf32>
    %235 = vector.broadcast %228 : vector<1x128xf32> to vector<2x128xf32>
    %236 = arith.mulf %234, %235 : vector<2x128xf32>
    %237 = vector.broadcast %229 : vector<1x128xf32> to vector<2x128xf32>
    %238 = arith.addf %236, %237 : vector<2x128xf32>
    %cst_152 = arith.constant 0.000000e+00 : f32
    %239 = vector.broadcast %cst_152 : f32 to vector<2x128xf32>
    %240 = arith.maximumf %238, %239 : vector<2x128xf32>
    %cst_153 = arith.constant dense<0.000000e+00> : vector<2x128xf32>
    %241 = tpu.matmul %240, %230, %cst_153 {dimension_numbers = #tpu.dot_dimension_numbers<[1], [0], [0], [1], [0, 0, 1, 1], [], []>} : vector<2x128xf32>, vector<128x128xf32>, vector<2x128xf32> -> vector<2x128xf32>
    %242 = vector.broadcast %231 : vector<1x128xf32> to vector<2x128xf32>
    %243 = arith.addf %241, %242 : vector<2x128xf32>
    %c0_154 = arith.constant 0 : index
    %c0_155 = arith.constant 0 : index
    %244 = vector.load %arg51[%c0_154, %c0_155] : memref<2x128xf32, #tpu.memory_space<vmem>>, vector<2x128xf32>
    tpu.vector_store %arg51[%c0_154, %c0_155], %243 {strides = array<i32>} : memref<2x128xf32, #tpu.memory_space<vmem>>, vector<2x128xf32>,
    %cst_156 = arith.constant dense<0.000000e+00> : vector<2x128xf32>
    %245 = tpu.matmul %115, %227, %cst_156 {dimension_numbers = #tpu.dot_dimension_numbers<[1], [0], [0], [1], [0, 0, 1, 1], [], []>} : vector<2x128xf32>, vector<128x128xf32>, vector<2x128xf32> -> vector<2x128xf32>
    %246 = arith.addf %232, %245 : vector<2x128xf32>
    %247 = vector.broadcast %228 : vector<1x128xf32> to vector<2x128xf32>
    %248 = arith.mulf %246, %247 : vector<2x128xf32>
    %249 = vector.broadcast %229 : vector<1x128xf32> to vector<2x128xf32>
    %250 = arith.addf %248, %249 : vector<2x128xf32>
    %cst_157 = arith.constant 0.000000e+00 : f32
    %251 = vector.broadcast %cst_157 : f32 to vector<2x128xf32>
    %252 = arith.maximumf %250, %251 : vector<2x128xf32>
    %cst_158 = arith.constant dense<0.000000e+00> : vector<2x128xf32>
    %253 = tpu.matmul %252, %230, %cst_158 {dimension_numbers = #tpu.dot_dimension_numbers<[1], [0], [0], [1], [0, 0, 1, 1], [], []>} : vector<2x128xf32>, vector<128x128xf32>, vector<2x128xf32> -> vector<2x128xf32>
    %254 = vector.broadcast %231 : vector<1x128xf32> to vector<2x128xf32>
    %255 = arith.addf %253, %254 : vector<2x128xf32>
    %c0_159 = arith.constant 0 : index
    %c0_160 = arith.constant 0 : index
    %256 = vector.load %arg52[%c0_159, %c0_160] : memref<2x128xf32, #tpu.memory_space<vmem>>, vector<2x128xf32>
    tpu.vector_store %arg52[%c0_159, %c0_160], %255 {strides = array<i32>} : memref<2x128xf32, #tpu.memory_space<vmem>>, vector<2x128xf32>,
    return
  }
}

</mosaic_0001>

<llo_original>
// kernel: single_multi_view_forward.1
$region0: #{single_multi_view_forward.1}
  #allocation0 [shape = 'u32[]', space=smem, size = 0x4, offset = 0x4, fixed_abs, tag = 'smem constant byte address 0x4 - core index']
  #allocation1 [shape = 'u32[144,128]{1,0:T(1,128)}', space=vmem, size = 0x12000, scoped, tag = 'internal scratch']
  %s0 = inlined_call_operand.smem [shape: u32[53], index: -1, kind: input, shape index: {}]
  %s1 = sld [smem:[%s0]]
  %s2 = scalar_lea.smem %s0, 1
  %s3 = sld [smem:[%s2]]
  %s4 = scalar_lea.smem %s0, 2
  %s5 = sld [smem:[%s4]]
  %s6 = scalar_lea.smem %s0, 3
  %s7 = sld [smem:[%s6]]
  %s8 = scalar_lea.smem %s0, 4
  %s9 = sld [smem:[%s8]]
  %s10 = scalar_lea.smem %s0, 5
  %s11 = sld [smem:[%s10]]
  %s12 = scalar_lea.smem %s0, 6
  %s13 = sld [smem:[%s12]]
  %s14 = scalar_lea.smem %s0, 7
  %s15 = sld [smem:[%s14]]
  %s16 = scalar_lea.smem %s0, 8
  %s17 = sld [smem:[%s16]]
  %s18 = scalar_lea.smem %s0, 9
  %s19 = sld [smem:[%s18]]
  %s20 = scalar_lea.smem %s0, 10
  %s21 = sld [smem:[%s20]]
  %s22 = scalar_lea.smem %s0, 11
  %s23 = sld [smem:[%s22]]
  %s24 = scalar_lea.smem %s0, 12
  %s25 = sld [smem:[%s24]]
  %s26 = scalar_lea.smem %s0, 13
  %s27 = sld [smem:[%s26]]
  %s28 = scalar_lea.smem %s0, 14
  %s29 = sld [smem:[%s28]]
  %s30 = scalar_lea.smem %s0, 15
  %s31 = sld [smem:[%s30]]
  %s32 = scalar_lea.smem %s0, 16
  %s33 = sld [smem:[%s32]]
  %s34 = scalar_lea.smem %s0, 17
  %s35 = sld [smem:[%s34]]
  %s36 = scalar_lea.smem %s0, 18
  %s37 = sld [smem:[%s36]]
  %s38 = scalar_lea.smem %s0, 19
  %s39 = sld [smem:[%s38]]
  %s40 = scalar_lea.smem %s0, 20
  %s41 = sld [smem:[%s40]]
  %s42 = scalar_lea.smem %s0, 21
  %s43 = sld [smem:[%s42]]
  %s44 = scalar_lea.smem %s0, 22
  %s45 = sld [smem:[%s44]]
  %s46 = scalar_lea.smem %s0, 23
  %s47 = sld [smem:[%s46]]
  %s48 = scalar_lea.smem %s0, 24
  %s49 = sld [smem:[%s48]]
  %s50 = scalar_lea.smem %s0, 25
  %s51 = sld [smem:[%s50]]
  %s52 = scalar_lea.smem %s0, 26
  %s53 = sld [smem:[%s52]]
  %s54 = scalar_lea.smem %s0, 27
  %s55 = sld [smem:[%s54]]
  %s56 = scalar_lea.smem %s0, 28
  %s57 = sld [smem:[%s56]]
  %s58 = scalar_lea.smem %s0, 29
  %s59 = sld [smem:[%s58]]
  %s60 = scalar_lea.smem %s0, 30
  %s61 = sld [smem:[%s60]]
  %s62 = scalar_lea.smem %s0, 31
  %s63 = sld [smem:[%s62]]
  %s64 = scalar_lea.smem %s0, 32
  %s65 = sld [smem:[%s64]]
  %s66 = scalar_lea.smem %s0, 33
  %s67 = sld [smem:[%s66]]
  %s68 = scalar_lea.smem %s0, 34
  %s69 = sld [smem:[%s68]]
  %s70 = scalar_lea.smem %s0, 35
  %s71 = sld [smem:[%s70]]
  %s72 = scalar_lea.smem %s0, 36
  %s73 = sld [smem:[%s72]]
  %s74 = scalar_lea.smem %s0, 37
  %s75 = sld [smem:[%s74]]
  %s76 = scalar_lea.smem %s0, 38
  %s77 = sld [smem:[%s76]]
  %s78 = scalar_lea.smem %s0, 39
  %s79 = sld [smem:[%s78]]
  %s80 = scalar_lea.smem %s0, 40
  %s81 = sld [smem:[%s80]]
  %s82 = scalar_lea.smem %s0, 41
  %s83 = sld [smem:[%s82]]
  %s84 = scalar_lea.smem %s0, 42
  %s85 = sld [smem:[%s84]]
  %s86 = scalar_lea.smem %s0, 43
  %s87 = sld [smem:[%s86]]
  %s88 = scalar_lea.smem %s0, 44
  %s89 = sld [smem:[%s88]]
  %s90 = scalar_lea.smem %s0, 45
  %s91 = sld [smem:[%s90]]
  %s92 = scalar_lea.smem %s0, 46
  %s93 = sld [smem:[%s92]]
  %s94 = scalar_lea.smem %s0, 47
  %s95 = sld [smem:[%s94]]
  %s96 = scalar_lea.smem %s0, 48
  %s97 = sld [smem:[%s96]]
  %s98 = scalar_lea.smem %s0, 49
  %s99 = sld [smem:[%s98]]
  %s100 = scalar_lea.smem %s0, 50
  %s101 = sld [smem:[%s100]]
  %s102 = scalar_lea.smem %s0, 51
  %s103 = sld [smem:[%s102]]
  %s104 = scalar_lea.smem %s0, 52
  %s105 = sld [smem:[%s104]]
  %106 = xla_tuple %s103, %s105
  %s107 = sld [smem:[#allocation0]]
  $region394: #{single_multi_view_forward.1} parent=0
    _
  %s109 = ssub.s32 1, %s107
  %s110 = scalar_select 0, %s109, %s107
  $region1: #{single_multi_view_forward.1} parent=0
    #allocation2 [shape = 'u8[512]{0}', space=vmem, size = 0x400, scoped, tag = 'input window, operand 4, single buffered']
    #allocation3 [shape = 's32[1]{0}', space=sflag, size = 0x4, scoped, tag = 'scoped memory for single_multi_view_forward.1']
    #allocation4 [shape = 'u8[65536]{0}', space=vmem, size = 0x10000, scoped, tag = 'input window, operand 5, single buffered']
    #allocation5 [shape = 's32[1]{0}', space=sflag, size = 0x4, scoped, tag = 'scoped memory for single_multi_view_forward.1']
    #allocation6 [shape = 'u8[512]{0}', space=vmem, size = 0x400, scoped, tag = 'input window, operand 6, single buffered']
    #allocation7 [shape = 'u8[512]{0}', space=vmem, size = 0x400, scoped, tag = 'input window, operand 7, single buffered']
    #allocation8 [shape = 's32[1]{0}', space=sflag, size = 0x4, scoped, tag = 'scoped memory for single_multi_view_forward.1']
    #allocation9 [shape = 'u8[65536]{0}', space=vmem, size = 0x10000, scoped, tag = 'input window, operand 8, single buffered']
    #allocation10 [shape = 'u8[512]{0}', space=vmem, size = 0x400, scoped, tag = 'input window, operand 9, single buffered']
    #allocation11 [shape = 's32[1]{0}', space=sflag, size = 0x4, scoped, tag = 'scoped memory for single_multi_view_forward.1']
    #allocation12 [shape = 'u8[512]{0}', space=vmem, size = 0x400, scoped, tag = 'input window, operand 10, single buffered']
    #allocation13 [shape = 'u8[512]{0}', space=vmem, size = 0x400, scoped, tag = 'input window, operand 12, single buffered']
    #allocation14 [shape = 's32[1]{0}', space=sflag, size = 0x4, scoped, tag = 'scoped memory for single_multi_view_forward.1']
    #allocation15 [shape = 'u8[512]{0}', space=vmem, size = 0x400, scoped, tag = 'input window, operand 13, single buffered']
    #allocation16 [shape = 'u8[65536]{0}', space=vmem, size = 0x10000, scoped, tag = 'input window, operand 14, single buffered']
    #allocation17 [shape = 's32[1]{0}', space=sflag, size = 0x4, scoped, tag = 'scoped memory for single_multi_view_forward.1']
    #allocation18 [shape = 'u8[512]{0}', space=vmem, size = 0x400, scoped, tag = 'input window, operand 15, single buffered']
    #allocation19 [shape = 'u8[512]{0}', space=vmem, size = 0x400, scoped, tag = 'input window, operand 16, single buffered']
    #allocation20 [shape = 's32[1]{0}', space=sflag, size = 0x4, scoped, tag = 'scoped memory for single_multi_view_forward.1']
    #allocation21 [shape = 'u8[65536]{0}', space=vmem, size = 0x10000, scoped, tag = 'input window, operand 17, single buffered']
    #allocation22 [shape = 'u8[512]{0}', space=vmem, size = 0x400, scoped, tag = 'input window, operand 18, single buffered']
    #allocation23 [shape = 's32[1]{0}', space=sflag, size = 0x4, scoped, tag = 'scoped memory for single_multi_view_forward.1']
    #allocation24 [shape = 'u8[512]{0}', space=vmem, size = 0x400, scoped, tag = 'input window, operand 19, single buffered']
    #allocation25 [shape = 'u8[65536]{0}', space=vmem, size = 0x10000, scoped, tag = 'input window, operand 20, single buffered']
    #allocation26 [shape = 's32[1]{0}', space=sflag, size = 0x4, scoped, tag = 'scoped memory for single_multi_view_forward.1']
    #allocation27 [shape = 'u8[512]{0}', space=vmem, size = 0x400, scoped, tag = 'input window, operand 21, single buffered']
    #allocation28 [shape = 'u8[65536]{0}', space=vmem, size = 0x10000, scoped, tag = 'input window, operand 22, single buffered']
    #allocation29 [shape = 's32[1]{0}', space=sflag, size = 0x4, scoped, tag = 'scoped memory for single_multi_view_forward.1']
    #allocation30 [shape = 'u8[512]{0}', space=vmem, size = 0x400, scoped, tag = 'input window, operand 23, single buffered']
    #allocation31 [shape = 'u8[512]{0}', space=vmem, size = 0x400, scoped, tag = 'input window, operand 24, single buffered']
    #allocation32 [shape = 's32[1]{0}', space=sflag, size = 0x4, scoped, tag = 'scoped memory for single_multi_view_forward.1']
    #allocation33 [shape = 'u8[65536]{0}', space=vmem, size = 0x10000, scoped, tag = 'input window, operand 25, single buffered']
    #allocation34 [shape = 'u8[512]{0}', space=vmem, size = 0x400, scoped, tag = 'input window, operand 26, single buffered']
    #allocation35 [shape = 's32[1]{0}', space=sflag, size = 0x4, scoped, tag = 'scoped memory for single_multi_view_forward.1']
    #allocation36 [shape = 'u8[512]{0}', space=vmem, size = 0x400, scoped, tag = 'input window, operand 27, single buffered']
    #allocation37 [shape = 'u8[65536]{0}', space=vmem, size = 0x10000, scoped, tag = 'input window, operand 28, single buffered']
    #allocation38 [shape = 's32[1]{0}', space=sflag, size = 0x4, scoped, tag = 'scoped memory for single_multi_view_forward.1']
    #allocation39 [shape = 'u8[512]{0}', space=vmem, size = 0x400, scoped, tag = 'input window, operand 29, single buffered']
    #allocation40 [shape = 'u8[512]{0}', space=vmem, size = 0x400, scoped, tag = 'input window, operand 30, single buffered']
    #allocation41 [shape = 's32[1]{0}', space=sflag, size = 0x4, scoped, tag = 'scoped memory for single_multi_view_forward.1']
    #allocation42 [shape = 'u8[65536]{0}', space=vmem, size = 0x10000, scoped, tag = 'input window, operand 31, single buffered']
    #allocation43 [shape = 'u8[512]{0}', space=vmem, size = 0x400, scoped, tag = 'input window, operand 32, single buffered']
    #allocation44 [shape = 's32[1]{0}', space=sflag, size = 0x4, scoped, tag = 'scoped memory for single_multi_view_forward.1']
    #allocation45 [shape = 'u8[65536]{0}', space=vmem, size = 0x10000, scoped, tag = 'input window, operand 33, single buffered']
    #allocation46 [shape = 'u8[65536]{0}', space=vmem, size = 0x10000, scoped, tag = 'input window, operand 34, single buffered']
    #allocation47 [shape = 's32[1]{0}', space=sflag, size = 0x4, scoped, tag = 'scoped memory for single_multi_view_forward.1']
    #allocation48 [shape = 'u8[512]{0}', space=vmem, size = 0x400, scoped, tag = 'input window, operand 35, single buffered']
    #allocation49 [shape = 'u8[512]{0}', space=vmem, size = 0x400, scoped, tag = 'input window, operand 36, single buffered']
    #allocation50 [shape = 's32[1]{0}', space=sflag, size = 0x4, scoped, tag = 'scoped memory for single_multi_view_forward.1']
    #allocation51 [shape = 'u8[65536]{0}', space=vmem, size = 0x10000, scoped, tag = 'input window, operand 37, single buffered']
    #allocation52 [shape = 'u8[512]{0}', space=vmem, size = 0x400, scoped, tag = 'input window, operand 38, single buffered']
    #allocation53 [shape = 's32[1]{0}', space=sflag, size = 0x4, scoped, tag = 'scoped memory for single_multi_view_forward.1']
    #allocation54 [shape = 'u8[512]{0}', space=vmem, size = 0x400, scoped, tag = 'input window, operand 39, single buffered']
    #allocation55 [shape = 'u8[65536]{0}', space=vmem, size = 0x10000, scoped, tag = 'input window, operand 40, single buffered']
    #allocation56 [shape = 's32[1]{0}', space=sflag, size = 0x4, scoped, tag = 'scoped memory for single_multi_view_forward.1']
    #allocation57 [shape = 'u8[512]{0}', space=vmem, size = 0x400, scoped, tag = 'input window, operand 41, single buffered']
    #allocation58 [shape = 'u8[512]{0}', space=vmem, size = 0x400, scoped, tag = 'input window, operand 42, single buffered']
    #allocation59 [shape = 's32[1]{0}', space=sflag, size = 0x4, scoped, tag = 'scoped memory for single_multi_view_forward.1']
    #allocation60 [shape = 'u8[512]{0}', space=vmem, size = 0x400, scoped, tag = 'input window, operand 44, single buffered']
    #allocation61 [shape = 'u8[65536]{0}', space=vmem, size = 0x10000, scoped, tag = 'input window, operand 45, single buffered']
    #allocation62 [shape = 's32[1]{0}', space=sflag, size = 0x4, scoped, tag = 'scoped memory for single_multi_view_forward.1']
    #allocation63 [shape = 'u8[65536]{0}', space=vmem, size = 0x10000, scoped, tag = 'input window, operand 46, single buffered']
    #allocation64 [shape = 'u8[512]{0}', space=vmem, size = 0x400, scoped, tag = 'input window, operand 47, single buffered']
    #allocation65 [shape = 's32[1]{0}', space=sflag, size = 0x4, scoped, tag = 'scoped memory for single_multi_view_forward.1']
    #allocation66 [shape = 'u8[65536]{0}', space=vmem, size = 0x10000, scoped, tag = 'input window, operand 49, single buffered']
    %111 = vsyncpa [#allocation3], 0
    %112 = vsyncpa [#allocation5], 0
    %113 = vsyncpa [#allocation8], 0
    %114 = vsyncpa [#allocation11], 0
    %115 = vsyncpa [#allocation14], 0
    %116 = vsyncpa [#allocation17], 0
    %117 = vsyncpa [#allocation20], 0
    %118 = vsyncpa [#allocation23], 0
    %119 = vsyncpa [#allocation26], 0
    %120 = vsyncpa [#allocation29], 0
    %121 = vsyncpa [#allocation32], 0
    %122 = vsyncpa [#allocation35], 0
    %123 = vsyncpa [#allocation38], 0
    %124 = vsyncpa [#allocation41], 0
    %125 = vsyncpa [#allocation44], 0
    %126 = vsyncpa [#allocation47], 0
    %127 = vsyncpa [#allocation50], 0
    %128 = vsyncpa [#allocation53], 0
    %129 = vsyncpa [#allocation56], 0
    %130 = vsyncpa [#allocation59], 0
    %131 = vsyncpa [#allocation62], 0
    %132 = vsyncpa [#allocation65], 0
    // Predicated region
    $region2: #{single_multi_view_forward.1} parent=1 // pred_check
      _
    $region3: #{single_multi_view_forward.1} parent=1 // pred_check_branch
      %134 = sbr.rel (0) target = $region5
    $region4: #{single_multi_view_forward.1} parent=1 // pred_region
      _
    $region5: #{single_multi_view_forward.1} parent=1 // pred_fallthru
      _
    // Predicated region
    $region6: #{single_multi_view_forward.1} parent=1 // pred_check
      _
    $region7: #{single_multi_view_forward.1} parent=1 // pred_check_branch
      %136 = sbr.rel (0) target = $region9
    $region8: #{single_multi_view_forward.1} parent=1 // pred_region
      _
    $region9: #{single_multi_view_forward.1} parent=1 // pred_fallthru
      _
    // Predicated region
    $region10: #{single_multi_view_forward.1} parent=1 // pred_check
      _
    $region11: #{single_multi_view_forward.1} parent=1 // pred_check_branch
      %138 = sbr.rel (0) target = $region13
    $region12: #{single_multi_view_forward.1} parent=1 // pred_region
      _
    $region13: #{single_multi_view_forward.1} parent=1 // pred_fallthru
      _
    // Predicated region
    $region14: #{single_multi_view_forward.1} parent=1 // pred_check
      _
    $region15: #{single_multi_view_forward.1} parent=1 // pred_check_branch
      %140 = sbr.rel (0) target = $region17
    $region16: #{single_multi_view_forward.1} parent=1 // pred_region
      _
    $region17: #{single_multi_view_forward.1} parent=1 // pred_fallthru
      _
    // Predicated region
    $region18: #{single_multi_view_forward.1} parent=1 // pred_check
      _
    $region19: #{single_multi_view_forward.1} parent=1 // pred_check_branch
      %142 = sbr.rel (0) target = $region21
    $region20: #{single_multi_view_forward.1} parent=1 // pred_region
      %s144 = ssub.s32 16, 16
      %145 = vsyncadd [#allocation3], %s144
      %s147 = sshll.u32 [#allocation2], 4
      %s148 = int_to_ptr.vmem [resolvable:$true] %s147
      %150 = dma.hbm_to_vmem [thread:$0]  %s9, 16, %s148, [#allocation3]
    $region21: #{single_multi_view_forward.1} parent=1 // pred_fallthru
      _
    // Predicated region
    $region22: #{single_multi_view_forward.1} parent=1 // pred_check
      _
    $region23: #{single_multi_view_forward.1} parent=1 // pred_check_branch
      %152 = sbr.rel (0) target = $region25
    $region24: #{single_multi_view_forward.1} parent=1 // pred_region
      %s154 = ssub.s32 2048, 2048
      %155 = vsyncadd [#allocation5], %s154
      %s156 = sshll.u32 [#allocation4], 4
      %s157 = int_to_ptr.vmem [resolvable:$true] %s156
      %162 = dma.hbm_to_vmem [thread:$0]  %s11, 2048, %s157, [#allocation5], 128, 128, 8
    $region25: #{single_multi_view_forward.1} parent=1 // pred_fallthru
      _
    // Predicated region
    $region26: #{single_multi_view_forward.1} parent=1 // pred_check
      _
    $region27: #{single_multi_view_forward.1} parent=1 // pred_check_branch
      %164 = sbr.rel (0) target = $region29
    $region28: #{single_multi_view_forward.1} parent=1 // pred_region
      %s166 = ssub.s32 16, 16
      %167 = vsyncadd [#allocation5], %s166
      %s169 = sshll.u32 [#allocation6], 4
      %s170 = int_to_ptr.vmem [resolvable:$true] %s169
      %172 = dma.hbm_to_vmem [thread:$0]  %s13, 16, %s170, [#allocation5]
    $region29: #{single_multi_view_forward.1} parent=1 // pred_fallthru
      _
    // Predicated region
    $region30: #{single_multi_view_forward.1} parent=1 // pred_check
      _
    $region31: #{single_multi_view_forward.1} parent=1 // pred_check_branch
      %174 = sbr.rel (0) target = $region33
    $region32: #{single_multi_view_forward.1} parent=1 // pred_region
      %s176 = ssub.s32 16, 16
      %177 = vsyncadd [#allocation8], %s176
      %s179 = sshll.u32 [#allocation7], 4
      %s180 = int_to_ptr.vmem [resolvable:$true] %s179
      %182 = dma.hbm_to_vmem [thread:$0]  %s15, 16, %s180, [#allocation8]
    $region33: #{single_multi_view_forward.1} parent=1 // pred_fallthru
      _
    // Predicated region
    $region34: #{single_multi_view_forward.1} parent=1 // pred_check
      _
    $region35: #{single_multi_view_forward.1} parent=1 // pred_check_branch
      %184 = sbr.rel (0) target = $region37
    $region36: #{single_multi_view_forward.1} parent=1 // pred_region
      %s186 = ssub.s32 2048, 2048
      %187 = vsyncadd [#allocation8], %s186
      %s188 = sshll.u32 [#allocation9], 4
      %s189 = int_to_ptr.vmem [resolvable:$true] %s188
      %194 = dma.hbm_to_vmem [thread:$0]  %s17, 2048, %s189, [#allocation8], 128, 128, 8
    $region37: #{single_multi_view_forward.1} parent=1 // pred_fallthru
      _
    // Predicated region
    $region38: #{single_multi_view_forward.1} parent=1 // pred_check
      _
    $region39: #{single_multi_view_forward.1} parent=1 // pred_check_branch
      %196 = sbr.rel (0) target = $region41
    $region40: #{single_multi_view_forward.1} parent=1 // pred_region
      %s198 = ssub.s32 16, 16
      %199 = vsyncadd [#allocation11], %s198
      %s201 = sshll.u32 [#allocation10], 4
      %s202 = int_to_ptr.vmem [resolvable:$true] %s201
      %204 = dma.hbm_to_vmem [thread:$0]  %s19, 16, %s202, [#allocation11]
    $region41: #{single_multi_view_forward.1} parent=1 // pred_fallthru
      _
    // Predicated region
    $region42: #{single_multi_view_forward.1} parent=1 // pred_check
      _
    $region43: #{single_multi_view_forward.1} parent=1 // pred_check_branch
      %206 = sbr.rel (0) target = $region45
    $region44: #{single_multi_view_forward.1} parent=1 // pred_region
      %s208 = ssub.s32 16, 16
      %209 = vsyncadd [#allocation11], %s208
      %s211 = sshll.u32 [#allocation12], 4
      %s212 = int_to_ptr.vmem [resolvable:$true] %s211
      %214 = dma.hbm_to_vmem [thread:$0]  %s21, 16, %s212, [#allocation11]
    $region45: #{single_multi_view_forward.1} parent=1 // pred_fallthru
      _
    // Predicated region
    $region46: #{single_multi_view_forward.1} parent=1 // pred_check
      _
    $region47: #{single_multi_view_forward.1} parent=1 // pred_check_branch
      %216 = sbr.rel (0) target = $region49
    $region48: #{single_multi_view_forward.1} parent=1 // pred_region
      _
    $region49: #{single_multi_view_forward.1} parent=1 // pred_fallthru
      _
    // Predicated region
    $region50: #{single_multi_view_forward.1} parent=1 // pred_check
      _
    $region51: #{single_multi_view_forward.1} parent=1 // pred_check_branch
      %218 = sbr.rel (0) target = $region53
    $region52: #{single_multi_view_forward.1} parent=1 // pred_region
      %s220 = ssub.s32 16, 16
      %221 = vsyncadd [#allocation14], %s220
      %s223 = sshll.u32 [#allocation13], 4
      %s224 = int_to_ptr.vmem [resolvable:$true] %s223
      %226 = dma.hbm_to_vmem [thread:$0]  %s25, 16, %s224, [#allocation14]
    $region53: #{single_multi_view_forward.1} parent=1 // pred_fallthru
      _
    // Predicated region
    $region54: #{single_multi_view_forward.1} parent=1 // pred_check
      _
    $region55: #{single_multi_view_forward.1} parent=1 // pred_check_branch
      %228 = sbr.rel (0) target = $region57
    $region56: #{single_multi_view_forward.1} parent=1 // pred_region
      %s230 = ssub.s32 16, 16
      %231 = vsyncadd [#allocation14], %s230
      %s233 = sshll.u32 [#allocation15], 4
      %s234 = int_to_ptr.vmem [resolvable:$true] %s233
      %236 = dma.hbm_to_vmem [thread:$0]  %s27, 16, %s234, [#allocation14]
    $region57: #{single_multi_view_forward.1} parent=1 // pred_fallthru
      _
    // Predicated region
    $region58: #{single_multi_view_forward.1} parent=1 // pred_check
      _
    $region59: #{single_multi_view_forward.1} parent=1 // pred_check_branch
      %238 = sbr.rel (0) target = $region61
    $region60: #{single_multi_view_forward.1} parent=1 // pred_region
      %s240 = ssub.s32 2048, 2048
      %241 = vsyncadd [#allocation17], %s240
      %s242 = sshll.u32 [#allocation16], 4
      %s243 = int_to_ptr.vmem [resolvable:$true] %s242
      %248 = dma.hbm_to_vmem [thread:$0]  %s29, 2048, %s243, [#allocation17], 128, 128, 8
    $region61: #{single_multi_view_forward.1} parent=1 // pred_fallthru
      _
    // Predicated region
    $region62: #{single_multi_view_forward.1} parent=1 // pred_check
      _
    $region63: #{single_multi_view_forward.1} parent=1 // pred_check_branch
      %250 = sbr.rel (0) target = $region65
    $region64: #{single_multi_view_forward.1} parent=1 // pred_region
      %s252 = ssub.s32 16, 16
      %253 = vsyncadd [#allocation17], %s252
      %s255 = sshll.u32 [#allocation18], 4
      %s256 = int_to_ptr.vmem [resolvable:$true] %s255
      %258 = dma.hbm_to_vmem [thread:$0]  %s31, 16, %s256, [#allocation17]
    $region65: #{single_multi_view_forward.1} parent=1 // pred_fallthru
      _
    // Predicated region
    $region66: #{single_multi_view_forward.1} parent=1 // pred_check
      _
    $region67: #{single_multi_view_forward.1} parent=1 // pred_check_branch
      %260 = sbr.rel (0) target = $region69
    $region68: #{single_multi_view_forward.1} parent=1 // pred_region
      %s262 = ssub.s32 16, 16
      %263 = vsyncadd [#allocation20], %s262
      %s265 = sshll.u32 [#allocation19], 4
      %s266 = int_to_ptr.vmem [resolvable:$true] %s265
      %268 = dma.hbm_to_vmem [thread:$0]  %s33, 16, %s266, [#allocation20]
    $region69: #{single_multi_view_forward.1} parent=1 // pred_fallthru
      _
    // Predicated region
    $region70: #{single_multi_view_forward.1} parent=1 // pred_check
      _
    $region71: #{single_multi_view_forward.1} parent=1 // pred_check_branch
      %270 = sbr.rel (0) target = $region73
    $region72: #{single_multi_view_forward.1} parent=1 // pred_region
      %s272 = ssub.s32 2048, 2048
      %273 = vsyncadd [#allocation20], %s272
      %s274 = sshll.u32 [#allocation21], 4
      %s275 = int_to_ptr.vmem [resolvable:$true] %s274
      %280 = dma.hbm_to_vmem [thread:$0]  %s35, 2048, %s275, [#allocation20], 128, 128, 8
    $region73: #{single_multi_view_forward.1} parent=1 // pred_fallthru
      _
    // Predicated region
    $region74: #{single_multi_view_forward.1} parent=1 // pred_check
      _
    $region75: #{single_multi_view_forward.1} parent=1 // pred_check_branch
      %282 = sbr.rel (0) target = $region77
    $region76: #{single_multi_view_forward.1} parent=1 // pred_region
      %s284 = ssub.s32 16, 16
      %285 = vsyncadd [#allocation23], %s284
      %s287 = sshll.u32 [#allocation22], 4
      %s288 = int_to_ptr.vmem [resolvable:$true] %s287
      %290 = dma.hbm_to_vmem [thread:$0]  %s37, 16, %s288, [#allocation23]
    $region77: #{single_multi_view_forward.1} parent=1 // pred_fallthru
      _
    // Predicated region
    $region78: #{single_multi_view_forward.1} parent=1 // pred_check
      _
    $region79: #{single_multi_view_forward.1} parent=1 // pred_check_branch
      %292 = sbr.rel (0) target = $region81
    $region80: #{single_multi_view_forward.1} parent=1 // pred_region
      %s294 = ssub.s32 16, 16
      %295 = vsyncadd [#allocation23], %s294
      %s297 = sshll.u32 [#allocation24], 4
      %s298 = int_to_ptr.vmem [resolvable:$true] %s297
      %300 = dma.hbm_to_vmem [thread:$0]  %s39, 16, %s298, [#allocation23]
    $region81: #{single_multi_view_forward.1} parent=1 // pred_fallthru
      _
    // Predicated region
    $region82: #{single_multi_view_forward.1} parent=1 // pred_check
      _
    $region83: #{single_multi_view_forward.1} parent=1 // pred_check_branch
      %302 = sbr.rel (0) target = $region85
    $region84: #{single_multi_view_forward.1} parent=1 // pred_region
      %s304 = ssub.s32 2048, 2048
      %305 = vsyncadd [#allocation26], %s304
      %s306 = sshll.u32 [#allocation25], 4
      %s307 = int_to_ptr.vmem [resolvable:$true] %s306
      %312 = dma.hbm_to_vmem [thread:$0]  %s41, 2048, %s307, [#allocation26], 128, 128, 8
    $region85: #{single_multi_view_forward.1} parent=1 // pred_fallthru
      _
    // Predicated region
    $region86: #{single_multi_view_forward.1} parent=1 // pred_check
      _
    $region87: #{single_multi_view_forward.1} parent=1 // pred_check_branch
      %314 = sbr.rel (0) target = $region89
    $region88: #{single_multi_view_forward.1} parent=1 // pred_region
      %s316 = ssub.s32 16, 16
      %317 = vsyncadd [#allocation26], %s316
      %s319 = sshll.u32 [#allocation27], 4
      %s320 = int_to_ptr.vmem [resolvable:$true] %s319
      %322 = dma.hbm_to_vmem [thread:$0]  %s43, 16, %s320, [#allocation26]
    $region89: #{single_multi_view_forward.1} parent=1 // pred_fallthru
      _
    // Predicated region
    $region90: #{single_multi_view_forward.1} parent=1 // pred_check
      _
    $region91: #{single_multi_view_forward.1} parent=1 // pred_check_branch
      %324 = sbr.rel (0) target = $region93
    $region92: #{single_multi_view_forward.1} parent=1 // pred_region
      %s326 = ssub.s32 2048, 2048
      %327 = vsyncadd [#allocation29], %s326
      %s328 = sshll.u32 [#allocation28], 4
      %s329 = int_to_ptr.vmem [resolvable:$true] %s328
      %334 = dma.hbm_to_vmem [thread:$0]  %s45, 2048, %s329, [#allocation29], 128, 128, 8
    $region93: #{single_multi_view_forward.1} parent=1 // pred_fallthru
      _
    // Predicated region
    $region94: #{single_multi_view_forward.1} parent=1 // pred_check
      _
    $region95: #{single_multi_view_forward.1} parent=1 // pred_check_branch
      %336 = sbr.rel (0) target = $region97
    $region96: #{single_multi_view_forward.1} parent=1 // pred_region
      %s338 = ssub.s32 16, 16
      %339 = vsyncadd [#allocation29], %s338
      %s341 = sshll.u32 [#allocation30], 4
      %s342 = int_to_ptr.vmem [resolvable:$true] %s341
      %344 = dma.hbm_to_vmem [thread:$0]  %s47, 16, %s342, [#allocation29]
    $region97: #{single_multi_view_forward.1} parent=1 // pred_fallthru
      _
    // Predicated region
    $region98: #{single_multi_view_forward.1} parent=1 // pred_check
      _
    $region99: #{single_multi_view_forward.1} parent=1 // pred_check_branch
      %346 = sbr.rel (0) target = $region101
    $region100: #{single_multi_view_forward.1} parent=1 // pred_region
      %s348 = ssub.s32 16, 16
      %349 = vsyncadd [#allocation32], %s348
      %s351 = sshll.u32 [#allocation31], 4
      %s352 = int_to_ptr.vmem [resolvable:$true] %s351
      %354 = dma.hbm_to_vmem [thread:$0]  %s49, 16, %s352, [#allocation32]
    $region101: #{single_multi_view_forward.1} parent=1 // pred_fallthru
      _
    // Predicated region
    $region102: #{single_multi_view_forward.1} parent=1 // pred_check
      _
    $region103: #{single_multi_view_forward.1} parent=1 // pred_check_branch
      %356 = sbr.rel (0) target = $region105
    $region104: #{single_multi_view_forward.1} parent=1 // pred_region
      %s358 = ssub.s32 2048, 2048
      %359 = vsyncadd [#allocation32], %s358
      %s360 = sshll.u32 [#allocation33], 4
      %s361 = int_to_ptr.vmem [resolvable:$true] %s360
      %366 = dma.hbm_to_vmem [thread:$0]  %s51, 2048, %s361, [#allocation32], 128, 128, 8
    $region105: #{single_multi_view_forward.1} parent=1 // pred_fallthru
      _
    // Predicated region
    $region106: #{single_multi_view_forward.1} parent=1 // pred_check
      _
    $region107: #{single_multi_view_forward.1} parent=1 // pred_check_branch
      %368 = sbr.rel (0) target = $region109
    $region108: #{single_multi_view_forward.1} parent=1 // pred_region
      %s370 = ssub.s32 16, 16
      %371 = vsyncadd [#allocation35], %s370
      %s373 = sshll.u32 [#allocation34], 4
      %s374 = int_to_ptr.vmem [resolvable:$true] %s373
      %376 = dma.hbm_to_vmem [thread:$0]  %s53, 16, %s374, [#allocation35]
    $region109: #{single_multi_view_forward.1} parent=1 // pred_fallthru
      _
    // Predicated region
    $region110: #{single_multi_view_forward.1} parent=1 // pred_check
      _
    $region111: #{single_multi_view_forward.1} parent=1 // pred_check_branch
      %378 = sbr.rel (0) target = $region113
    $region112: #{single_multi_view_forward.1} parent=1 // pred_region
      %s380 = ssub.s32 16, 16
      %381 = vsyncadd [#allocation35], %s380
      %s383 = sshll.u32 [#allocation36], 4
      %s384 = int_to_ptr.vmem [resolvable:$true] %s383
      %386 = dma.hbm_to_vmem [thread:$0]  %s55, 16, %s384, [#allocation35]
    $region113: #{single_multi_view_forward.1} parent=1 // pred_fallthru
      _
    // Predicated region
    $region114: #{single_multi_view_forward.1} parent=1 // pred_check
      _
    $region115: #{single_multi_view_forward.1} parent=1 // pred_check_branch
      %388 = sbr.rel (0) target = $region117
    $region116: #{single_multi_view_forward.1} parent=1 // pred_region
      %s390 = ssub.s32 2048, 2048
      %391 = vsyncadd [#allocation38], %s390
      %s392 = sshll.u32 [#allocation37], 4
      %s393 = int_to_ptr.vmem [resolvable:$true] %s392
      %398 = dma.hbm_to_vmem [thread:$0]  %s57, 2048, %s393, [#allocation38], 128, 128, 8
    $region117: #{single_multi_view_forward.1} parent=1 // pred_fallthru
      _
    // Predicated region
    $region118: #{single_multi_view_forward.1} parent=1 // pred_check
      _
    $region119: #{single_multi_view_forward.1} parent=1 // pred_check_branch
      %400 = sbr.rel (0) target = $region121
    $region120: #{single_multi_view_forward.1} parent=1 // pred_region
      %s402 = ssub.s32 16, 16
      %403 = vsyncadd [#allocation38], %s402
      %s405 = sshll.u32 [#allocation39], 4
      %s406 = int_to_ptr.vmem [resolvable:$true] %s405
      %408 = dma.hbm_to_vmem [thread:$0]  %s59, 16, %s406, [#allocation38]
    $region121: #{single_multi_view_forward.1} parent=1 // pred_fallthru
      _
    // Predicated region
    $region122: #{single_multi_view_forward.1} parent=1 // pred_check
      _
    $region123: #{single_multi_view_forward.1} parent=1 // pred_check_branch
      %410 = sbr.rel (0) target = $region125
    $region124: #{single_multi_view_forward.1} parent=1 // pred_region
      %s412 = ssub.s32 16, 16
      %413 = vsyncadd [#allocation41], %s412
      %s415 = sshll.u32 [#allocation40], 4
      %s416 = int_to_ptr.vmem [resolvable:$true] %s415
      %418 = dma.hbm_to_vmem [thread:$0]  %s61, 16, %s416, [#allocation41]
    $region125: #{single_multi_view_forward.1} parent=1 // pred_fallthru
      _
    // Predicated region
    $region126: #{single_multi_view_forward.1} parent=1 // pred_check
      _
    $region127: #{single_multi_view_forward.1} parent=1 // pred_check_branch
      %420 = sbr.rel (0) target = $region129
    $region128: #{single_multi_view_forward.1} parent=1 // pred_region
      %s422 = ssub.s32 2048, 2048
      %423 = vsyncadd [#allocation41], %s422
      %s424 = sshll.u32 [#allocation42], 4
      %s425 = int_to_ptr.vmem [resolvable:$true] %s424
      %430 = dma.hbm_to_vmem [thread:$0]  %s63, 2048, %s425, [#allocation41], 128, 128, 8
    $region129: #{single_multi_view_forward.1} parent=1 // pred_fallthru
      _
    // Predicated region
    $region130: #{single_multi_view_forward.1} parent=1 // pred_check
      _
    $region131: #{single_multi_view_forward.1} parent=1 // pred_check_branch
      %432 = sbr.rel (0) target = $region133
    $region132: #{single_multi_view_forward.1} parent=1 // pred_region
      %s434 = ssub.s32 16, 16
      %435 = vsyncadd [#allocation44], %s434
      %s437 = sshll.u32 [#allocation43], 4
      %s438 = int_to_ptr.vmem [resolvable:$true] %s437
      %440 = dma.hbm_to_vmem [thread:$0]  %s65, 16, %s438, [#allocation44]
    $region133: #{single_multi_view_forward.1} parent=1 // pred_fallthru
      _
    // Predicated region
    $region134: #{single_multi_view_forward.1} parent=1 // pred_check
      _
    $region135: #{single_multi_view_forward.1} parent=1 // pred_check_branch
      %442 = sbr.rel (0) target = $region137
    $region136: #{single_multi_view_forward.1} parent=1 // pred_region
      %s444 = ssub.s32 2048, 2048
      %445 = vsyncadd [#allocation44], %s444
      %s446 = sshll.u32 [#allocation45], 4
      %s447 = int_to_ptr.vmem [resolvable:$true] %s446
      %452 = dma.hbm_to_vmem [thread:$0]  %s67, 2048, %s447, [#allocation44], 128, 128, 8
    $region137: #{single_multi_view_forward.1} parent=1 // pred_fallthru
      _
    // Predicated region
    $region138: #{single_multi_view_forward.1} parent=1 // pred_check
      _
    $region139: #{single_multi_view_forward.1} parent=1 // pred_check_branch
      %454 = sbr.rel (0) target = $region141
    $region140: #{single_multi_view_forward.1} parent=1 // pred_region
      %s456 = ssub.s32 2048, 2048
      %457 = vsyncadd [#allocation47], %s456
      %s458 = sshll.u32 [#allocation46], 4
      %s459 = int_to_ptr.vmem [resolvable:$true] %s458
      %464 = dma.hbm_to_vmem [thread:$0]  %s69, 2048, %s459, [#allocation47], 128, 128, 8
    $region141: #{single_multi_view_forward.1} parent=1 // pred_fallthru
      _
    // Predicated region
    $region142: #{single_multi_view_forward.1} parent=1 // pred_check
      _
    $region143: #{single_multi_view_forward.1} parent=1 // pred_check_branch
      %466 = sbr.rel (0) target = $region145
    $region144: #{single_multi_view_forward.1} parent=1 // pred_region
      %s468 = ssub.s32 16, 16
      %469 = vsyncadd [#allocation47], %s468
      %s471 = sshll.u32 [#allocation48], 4
      %s472 = int_to_ptr.vmem [resolvable:$true] %s471
      %474 = dma.hbm_to_vmem [thread:$0]  %s71, 16, %s472, [#allocation47]
    $region145: #{single_multi_view_forward.1} parent=1 // pred_fallthru
      _
    // Predicated region
    $region146: #{single_multi_view_forward.1} parent=1 // pred_check
      _
    $region147: #{single_multi_view_forward.1} parent=1 // pred_check_branch
      %476 = sbr.rel (0) target = $region149
    $region148: #{single_multi_view_forward.1} parent=1 // pred_region
      %s478 = ssub.s32 16, 16
      %479 = vsyncadd [#allocation50], %s478
      %s481 = sshll.u32 [#allocation49], 4
      %s482 = int_to_ptr.vmem [resolvable:$true] %s481
      %484 = dma.hbm_to_vmem [thread:$0]  %s73, 16, %s482, [#allocation50]
    $region149: #{single_multi_view_forward.1} parent=1 // pred_fallthru
      _
    // Predicated region
    $region150: #{single_multi_view_forward.1} parent=1 // pred_check
      _
    $region151: #{single_multi_view_forward.1} parent=1 // pred_check_branch
      %486 = sbr.rel (0) target = $region153
    $region152: #{single_multi_view_forward.1} parent=1 // pred_region
      %s488 = ssub.s32 2048, 2048
      %489 = vsyncadd [#allocation50], %s488
      %s490 = sshll.u32 [#allocation51], 4
      %s491 = int_to_ptr.vmem [resolvable:$true] %s490
      %496 = dma.hbm_to_vmem [thread:$0]  %s75, 2048, %s491, [#allocation50], 128, 128, 8
    $region153: #{single_multi_view_forward.1} parent=1 // pred_fallthru
      _
    // Predicated region
    $region154: #{single_multi_view_forward.1} parent=1 // pred_check
      _
    $region155: #{single_multi_view_forward.1} parent=1 // pred_check_branch
      %498 = sbr.rel (0) target = $region157
    $region156: #{single_multi_view_forward.1} parent=1 // pred_region
      %s500 = ssub.s32 16, 16
      %501 = vsyncadd [#allocation53], %s500
      %s503 = sshll.u32 [#allocation52], 4
      %s504 = int_to_ptr.vmem [resolvable:$true] %s503
      %506 = dma.hbm_to_vmem [thread:$0]  %s77, 16, %s504, [#allocation53]
    $region157: #{single_multi_view_forward.1} parent=1 // pred_fallthru
      _
    // Predicated region
    $region158: #{single_multi_view_forward.1} parent=1 // pred_check
      _
    $region159: #{single_multi_view_forward.1} parent=1 // pred_check_branch
      %508 = sbr.rel (0) target = $region161
    $region160: #{single_multi_view_forward.1} parent=1 // pred_region
      %s510 = ssub.s32 16, 16
      %511 = vsyncadd [#allocation53], %s510
      %s513 = sshll.u32 [#allocation54], 4
      %s514 = int_to_ptr.vmem [resolvable:$true] %s513
      %516 = dma.hbm_to_vmem [thread:$0]  %s79, 16, %s514, [#allocation53]
    $region161: #{single_multi_view_forward.1} parent=1 // pred_fallthru
      _
    // Predicated region
    $region162: #{single_multi_view_forward.1} parent=1 // pred_check
      _
    $region163: #{single_multi_view_forward.1} parent=1 // pred_check_branch
      %518 = sbr.rel (0) target = $region165
    $region164: #{single_multi_view_forward.1} parent=1 // pred_region
      %s520 = ssub.s32 2048, 2048
      %521 = vsyncadd [#allocation56], %s520
      %s522 = sshll.u32 [#allocation55], 4
      %s523 = int_to_ptr.vmem [resolvable:$true] %s522
      %528 = dma.hbm_to_vmem [thread:$0]  %s81, 2048, %s523, [#allocation56], 128, 128, 8
    $region165: #{single_multi_view_forward.1} parent=1 // pred_fallthru
      _
    // Predicated region
    $region166: #{single_multi_view_forward.1} parent=1 // pred_check
      _
    $region167: #{single_multi_view_forward.1} parent=1 // pred_check_branch
      %530 = sbr.rel (0) target = $region169
    $region168: #{single_multi_view_forward.1} parent=1 // pred_region
      %s532 = ssub.s32 16, 16
      %533 = vsyncadd [#allocation56], %s532
      %s535 = sshll.u32 [#allocation57], 4
      %s536 = int_to_ptr.vmem [resolvable:$true] %s535
      %538 = dma.hbm_to_vmem [thread:$0]  %s83, 16, %s536, [#allocation56]
    $region169: #{single_multi_view_forward.1} parent=1 // pred_fallthru
      _
    // Predicated region
    $region170: #{single_multi_view_forward.1} parent=1 // pred_check
      _
    $region171: #{single_multi_view_forward.1} parent=1 // pred_check_branch
      %540 = sbr.rel (0) target = $region173
    $region172: #{single_multi_view_forward.1} parent=1 // pred_region
      %s542 = ssub.s32 16, 16
      %543 = vsyncadd [#allocation59], %s542
      %s545 = sshll.u32 [#allocation58], 4
      %s546 = int_to_ptr.vmem [resolvable:$true] %s545
      %548 = dma.hbm_to_vmem [thread:$0]  %s85, 16, %s546, [#allocation59]
    $region173: #{single_multi_view_forward.1} parent=1 // pred_fallthru
      _
    // Predicated region
    $region174: #{single_multi_view_forward.1} parent=1 // pred_check
      _
    $region175: #{single_multi_view_forward.1} parent=1 // pred_check_branch
      %550 = sbr.rel (0) target = $region177
    $region176: #{single_multi_view_forward.1} parent=1 // pred_region
      _
    $region177: #{single_multi_view_forward.1} parent=1 // pred_fallthru
      _
    // Predicated region
    $region178: #{single_multi_view_forward.1} parent=1 // pred_check
      _
    $region179: #{single_multi_view_forward.1} parent=1 // pred_check_branch
      %552 = sbr.rel (0) target = $region181
    $region180: #{single_multi_view_forward.1} parent=1 // pred_region
      %s554 = ssub.s32 16, 16
      %555 = vsyncadd [#allocation59], %s554
      %s557 = sshll.u32 [#allocation60], 4
      %s558 = int_to_ptr.vmem [resolvable:$true] %s557
      %560 = dma.hbm_to_vmem [thread:$0]  %s89, 16, %s558, [#allocation59]
    $region181: #{single_multi_view_forward.1} parent=1 // pred_fallthru
      _
    // Predicated region
    $region182: #{single_multi_view_forward.1} parent=1 // pred_check
      _
    $region183: #{single_multi_view_forward.1} parent=1 // pred_check_branch
      %562 = sbr.rel (0) target = $region185
    $region184: #{single_multi_view_forward.1} parent=1 // pred_region
      %s564 = ssub.s32 2048, 2048
      %565 = vsyncadd [#allocation62], %s564
      %s566 = sshll.u32 [#allocation61], 4
      %s567 = int_to_ptr.vmem [resolvable:$true] %s566
      %572 = dma.hbm_to_vmem [thread:$0]  %s91, 2048, %s567, [#allocation62], 128, 128, 8
    $region185: #{single_multi_view_forward.1} parent=1 // pred_fallthru
      _
    // Predicated region
    $region186: #{single_multi_view_forward.1} parent=1 // pred_check
      _
    $region187: #{single_multi_view_forward.1} parent=1 // pred_check_branch
      %574 = sbr.rel (0) target = $region189
    $region188: #{single_multi_view_forward.1} parent=1 // pred_region
      %s576 = ssub.s32 2048, 2048
      %577 = vsyncadd [#allocation62], %s576
      %s578 = sshll.u32 [#allocation63], 4
      %s579 = int_to_ptr.vmem [resolvable:$true] %s578
      %584 = dma.hbm_to_vmem [thread:$0]  %s93, 2048, %s579, [#allocation62], 128, 128, 8
    $region189: #{single_multi_view_forward.1} parent=1 // pred_fallthru
      _
    // Predicated region
    $region190: #{single_multi_view_forward.1} parent=1 // pred_check
      _
    $region191: #{single_multi_view_forward.1} parent=1 // pred_check_branch
      %586 = sbr.rel (0) target = $region193
    $region192: #{single_multi_view_forward.1} parent=1 // pred_region
      %s588 = ssub.s32 16, 16
      %589 = vsyncadd [#allocation65], %s588
      %s591 = sshll.u32 [#allocation64], 4
      %s592 = int_to_ptr.vmem [resolvable:$true] %s591
      %594 = dma.hbm_to_vmem [thread:$0]  %s95, 16, %s592, [#allocation65]
    $region193: #{single_multi_view_forward.1} parent=1 // pred_fallthru
      _
    // Predicated region
    $region194: #{single_multi_view_forward.1} parent=1 // pred_check
      _
    $region195: #{single_multi_view_forward.1} parent=1 // pred_check_branch
      %596 = sbr.rel (0) target = $region197
    $region196: #{single_multi_view_forward.1} parent=1 // pred_region
      _
    $region197: #{single_multi_view_forward.1} parent=1 // pred_fallthru
      _
    // Predicated region
    $region198: #{single_multi_view_forward.1} parent=1 // pred_check
      _
    $region199: #{single_multi_view_forward.1} parent=1 // pred_check_branch
      %598 = sbr.rel (0) target = $region201
    $region200: #{single_multi_view_forward.1} parent=1 // pred_region
      %s600 = ssub.s32 2048, 2048
      %601 = vsyncadd [#allocation65], %s600
      %s602 = sshll.u32 [#allocation66], 4
      %s603 = int_to_ptr.vmem [resolvable:$true] %s602
      %608 = dma.hbm_to_vmem [thread:$0]  %s99, 2048, %s603, [#allocation65], 128, 128, 8
    $region201: #{single_multi_view_forward.1} parent=1 // pred_fallthru
      _
    // Predicated region
    $region202: #{single_multi_view_forward.1} parent=1 // pred_check
      _
    $region203: #{single_multi_view_forward.1} parent=1 // pred_check_branch
      %610 = sbr.rel (0) target = $region205
    $region204: #{single_multi_view_forward.1} parent=1 // pred_region
      _
    $region205: #{single_multi_view_forward.1} parent=1 // pred_fallthru
      _
    // Predicated region
    $region206: #{single_multi_view_forward.1} parent=1 // pred_check
      _
    $region207: #{single_multi_view_forward.1} parent=1 // pred_check_branch
      %612 = sbr.rel (0) target = $region209
    $region208: #{single_multi_view_forward.1} parent=1 // pred_region
      %613 = dma.done [#allocation3], 16
    $region209: #{single_multi_view_forward.1} parent=1 // pred_fallthru
      _
    // Predicated region
    $region210: #{single_multi_view_forward.1} parent=1 // pred_check
      _
    $region211: #{single_multi_view_forward.1} parent=1 // pred_check_branch
      %615 = sbr.rel (0) target = $region213
    $region212: #{single_multi_view_forward.1} parent=1 // pred_region
      %616 = dma.done [#allocation5], 2048
    $region213: #{single_multi_view_forward.1} parent=1 // pred_fallthru
      _
    // Predicated region
    $region214: #{single_multi_view_forward.1} parent=1 // pred_check
      _
    $region215: #{single_multi_view_forward.1} parent=1 // pred_check_branch
      %618 = sbr.rel (0) target = $region217
    $region216: #{single_multi_view_forward.1} parent=1 // pred_region
      %619 = dma.done [#allocation5], 16
    $region217: #{single_multi_view_forward.1} parent=1 // pred_fallthru
      _
    // Predicated region
    $region218: #{single_multi_view_forward.1} parent=1 // pred_check
      _
    $region219: #{single_multi_view_forward.1} parent=1 // pred_check_branch
      %621 = sbr.rel (0) target = $region221
    $region220: #{single_multi_view_forward.1} parent=1 // pred_region
      %622 = dma.done [#allocation8], 16
    $region221: #{single_multi_view_forward.1} parent=1 // pred_fallthru
      _
    // Predicated region
    $region222: #{single_multi_view_forward.1} parent=1 // pred_check
      _
    $region223: #{single_multi_view_forward.1} parent=1 // pred_check_branch
      %624 = sbr.rel (0) target = $region225
    $region224: #{single_multi_view_forward.1} parent=1 // pred_region
      %625 = dma.done [#allocation8], 2048
    $region225: #{single_multi_view_forward.1} parent=1 // pred_fallthru
      _
    // Predicated region
    $region226: #{single_multi_view_forward.1} parent=1 // pred_check
      _
    $region227: #{single_multi_view_forward.1} parent=1 // pred_check_branch
      %627 = sbr.rel (0) target = $region229
    $region228: #{single_multi_view_forward.1} parent=1 // pred_region
      %628 = dma.done [#allocation11], 16
    $region229: #{single_multi_view_forward.1} parent=1 // pred_fallthru
      _
    // Predicated region
    $region230: #{single_multi_view_forward.1} parent=1 // pred_check
      _
    $region231: #{single_multi_view_forward.1} parent=1 // pred_check_branch
      %630 = sbr.rel (0) target = $region233
    $region232: #{single_multi_view_forward.1} parent=1 // pred_region
      %631 = dma.done [#allocation11], 16
    $region233: #{single_multi_view_forward.1} parent=1 // pred_fallthru
      _
    // Predicated region
    $region234: #{single_multi_view_forward.1} parent=1 // pred_check
      _
    $region235: #{single_multi_view_forward.1} parent=1 // pred_check_branch
      %633 = sbr.rel (0) target = $region237
    $region236: #{single_multi_view_forward.1} parent=1 // pred_region
      %634 = dma.done [#allocation14], 16
    $region237: #{single_multi_view_forward.1} parent=1 // pred_fallthru
      _
    // Predicated region
    $region238: #{single_multi_view_forward.1} parent=1 // pred_check
      _
    $region239: #{single_multi_view_forward.1} parent=1 // pred_check_branch
      %636 = sbr.rel (0) target = $region241
    $region240: #{single_multi_view_forward.1} parent=1 // pred_region
      %637 = dma.done [#allocation14], 16
    $region241: #{single_multi_view_forward.1} parent=1 // pred_fallthru
      _
    // Predicated region
    $region242: #{single_multi_view_forward.1} parent=1 // pred_check
      _
    $region243: #{single_multi_view_forward.1} parent=1 // pred_check_branch
      %639 = sbr.rel (0) target = $region245
    $region244: #{single_multi_view_forward.1} parent=1 // pred_region
      %640 = dma.done [#allocation17], 2048
    $region245: #{single_multi_view_forward.1} parent=1 // pred_fallthru
      _
    // Predicated region
    $region246: #{single_multi_view_forward.1} parent=1 // pred_check
      _
    $region247: #{single_multi_view_forward.1} parent=1 // pred_check_branch
      %642 = sbr.rel (0) target = $region249
    $region248: #{single_multi_view_forward.1} parent=1 // pred_region
      %643 = dma.done [#allocation17], 16
    $region249: #{single_multi_view_forward.1} parent=1 // pred_fallthru
      _
    // Predicated region
    $region250: #{single_multi_view_forward.1} parent=1 // pred_check
      _
    $region251: #{single_multi_view_forward.1} parent=1 // pred_check_branch
      %645 = sbr.rel (0) target = $region253
    $region252: #{single_multi_view_forward.1} parent=1 // pred_region
      %646 = dma.done [#allocation20], 16
    $region253: #{single_multi_view_forward.1} parent=1 // pred_fallthru
      _
    // Predicated region
    $region254: #{single_multi_view_forward.1} parent=1 // pred_check
      _
    $region255: #{single_multi_view_forward.1} parent=1 // pred_check_branch
      %648 = sbr.rel (0) target = $region257
    $region256: #{single_multi_view_forward.1} parent=1 // pred_region
      %649 = dma.done [#allocation20], 2048
    $region257: #{single_multi_view_forward.1} parent=1 // pred_fallthru
      _
    // Predicated region
    $region258: #{single_multi_view_forward.1} parent=1 // pred_check
      _
    $region259: #{single_multi_view_forward.1} parent=1 // pred_check_branch
      %651 = sbr.rel (0) target = $region261
    $region260: #{single_multi_view_forward.1} parent=1 // pred_region
      %652 = dma.done [#allocation23], 16
    $region261: #{single_multi_view_forward.1} parent=1 // pred_fallthru
      _
    // Predicated region
    $region262: #{single_multi_view_forward.1} parent=1 // pred_check
      _
    $region263: #{single_multi_view_forward.1} parent=1 // pred_check_branch
      %654 = sbr.rel (0) target = $region265
    $region264: #{single_multi_view_forward.1} parent=1 // pred_region
      %655 = dma.done [#allocation23], 16
    $region265: #{single_multi_view_forward.1} parent=1 // pred_fallthru
      _
    // Predicated region
    $region266: #{single_multi_view_forward.1} parent=1 // pred_check
      _
    $region267: #{single_multi_view_forward.1} parent=1 // pred_check_branch
      %657 = sbr.rel (0) target = $region269
    $region268: #{single_multi_view_forward.1} parent=1 // pred_region
      %658 = dma.done [#allocation26], 2048
    $region269: #{single_multi_view_forward.1} parent=1 // pred_fallthru
      _
    // Predicated region
    $region270: #{single_multi_view_forward.1} parent=1 // pred_check
      _
    $region271: #{single_multi_view_forward.1} parent=1 // pred_check_branch
      %660 = sbr.rel (0) target = $region273
    $region272: #{single_multi_view_forward.1} parent=1 // pred_region
      %661 = dma.done [#allocation26], 16
    $region273: #{single_multi_view_forward.1} parent=1 // pred_fallthru
      _
    // Predicated region
    $region274: #{single_multi_view_forward.1} parent=1 // pred_check
      _
    $region275: #{single_multi_view_forward.1} parent=1 // pred_check_branch
      %663 = sbr.rel (0) target = $region277
    $region276: #{single_multi_view_forward.1} parent=1 // pred_region
      %664 = dma.done [#allocation29], 2048
    $region277: #{single_multi_view_forward.1} parent=1 // pred_fallthru
      _
    // Predicated region
    $region278: #{single_multi_view_forward.1} parent=1 // pred_check
      _
    $region279: #{single_multi_view_forward.1} parent=1 // pred_check_branch
      %666 = sbr.rel (0) target = $region281
    $region280: #{single_multi_view_forward.1} parent=1 // pred_region
      %667 = dma.done [#allocation29], 16
    $region281: #{single_multi_view_forward.1} parent=1 // pred_fallthru
      _
    // Predicated region
    $region282: #{single_multi_view_forward.1} parent=1 // pred_check
      _
    $region283: #{single_multi_view_forward.1} parent=1 // pred_check_branch
      %669 = sbr.rel (0) target = $region285
    $region284: #{single_multi_view_forward.1} parent=1 // pred_region
      %670 = dma.done [#allocation32], 16
    $region285: #{single_multi_view_forward.1} parent=1 // pred_fallthru
      _
    // Predicated region
    $region286: #{single_multi_view_forward.1} parent=1 // pred_check
      _
    $region287: #{single_multi_view_forward.1} parent=1 // pred_check_branch
      %672 = sbr.rel (0) target = $region289
    $region288: #{single_multi_view_forward.1} parent=1 // pred_region
      %673 = dma.done [#allocation32], 2048
    $region289: #{single_multi_view_forward.1} parent=1 // pred_fallthru
      _
    // Predicated region
    $region290: #{single_multi_view_forward.1} parent=1 // pred_check
      _
    $region291: #{single_multi_view_forward.1} parent=1 // pred_check_branch
      %675 = sbr.rel (0) target = $region293
    $region292: #{single_multi_view_forward.1} parent=1 // pred_region
      %676 = dma.done [#allocation35], 16
    $region293: #{single_multi_view_forward.1} parent=1 // pred_fallthru
      _
    // Predicated region
    $region294: #{single_multi_view_forward.1} parent=1 // pred_check
      _
    $region295: #{single_multi_view_forward.1} parent=1 // pred_check_branch
      %678 = sbr.rel (0) target = $region297
    $region296: #{single_multi_view_forward.1} parent=1 // pred_region
      %679 = dma.done [#allocation35], 16
    $region297: #{single_multi_view_forward.1} parent=1 // pred_fallthru
      _
    // Predicated region
    $region298: #{single_multi_view_forward.1} parent=1 // pred_check
      _
    $region299: #{single_multi_view_forward.1} parent=1 // pred_check_branch
      %681 = sbr.rel (0) target = $region301
    $region300: #{single_multi_view_forward.1} parent=1 // pred_region
      %682 = dma.done [#allocation38], 2048
    $region301: #{single_multi_view_forward.1} parent=1 // pred_fallthru
      _
    // Predicated region
    $region302: #{single_multi_view_forward.1} parent=1 // pred_check
      _
    $region303: #{single_multi_view_forward.1} parent=1 // pred_check_branch
      %684 = sbr.rel (0) target = $region305
    $region304: #{single_multi_view_forward.1} parent=1 // pred_region
      %685 = dma.done [#allocation38], 16
    $region305: #{single_multi_view_forward.1} parent=1 // pred_fallthru
      _
    // Predicated region
    $region306: #{single_multi_view_forward.1} parent=1 // pred_check
      _
    $region307: #{single_multi_view_forward.1} parent=1 // pred_check_branch
      %687 = sbr.rel (0) target = $region309
    $region308: #{single_multi_view_forward.1} parent=1 // pred_region
      %688 = dma.done [#allocation41], 16
    $region309: #{single_multi_view_forward.1} parent=1 // pred_fallthru
      _
    // Predicated region
    $region310: #{single_multi_view_forward.1} parent=1 // pred_check
      _
    $region311: #{single_multi_view_forward.1} parent=1 // pred_check_branch
      %690 = sbr.rel (0) target = $region313
    $region312: #{single_multi_view_forward.1} parent=1 // pred_region
      %691 = dma.done [#allocation41], 2048
    $region313: #{single_multi_view_forward.1} parent=1 // pred_fallthru
      _
    // Predicated region
    $region314: #{single_multi_view_forward.1} parent=1 // pred_check
      _
    $region315: #{single_multi_view_forward.1} parent=1 // pred_check_branch
      %693 = sbr.rel (0) target = $region317
    $region316: #{single_multi_view_forward.1} parent=1 // pred_region
      %694 = dma.done [#allocation44], 16
    $region317: #{single_multi_view_forward.1} parent=1 // pred_fallthru
      _
    // Predicated region
    $region318: #{single_multi_view_forward.1} parent=1 // pred_check
      _
    $region319: #{single_multi_view_forward.1} parent=1 // pred_check_branch
      %696 = sbr.rel (0) target = $region321
    $region320: #{single_multi_view_forward.1} parent=1 // pred_region
      %697 = dma.done [#allocation44], 2048
    $region321: #{single_multi_view_forward.1} parent=1 // pred_fallthru
      _
    // Predicated region
    $region322: #{single_multi_view_forward.1} parent=1 // pred_check
      _
    $region323: #{single_multi_view_forward.1} parent=1 // pred_check_branch
      %699 = sbr.rel (0) target = $region325
    $region324: #{single_multi_view_forward.1} parent=1 // pred_region
      %700 = dma.done [#allocation47], 2048
    $region325: #{single_multi_view_forward.1} parent=1 // pred_fallthru
      _
    // Predicated region
    $region326: #{single_multi_view_forward.1} parent=1 // pred_check
      _
    $region327: #{single_multi_view_forward.1} parent=1 // pred_check_branch
      %702 = sbr.rel (0) target = $region329
    $region328: #{single_multi_view_forward.1} parent=1 // pred_region
      %703 = dma.done [#allocation47], 16
    $region329: #{single_multi_view_forward.1} parent=1 // pred_fallthru
      _
    // Predicated region
    $region330: #{single_multi_view_forward.1} parent=1 // pred_check
      _
    $region331: #{single_multi_view_forward.1} parent=1 // pred_check_branch
      %705 = sbr.rel (0) target = $region333
    $region332: #{single_multi_view_forward.1} parent=1 // pred_region
      %706 = dma.done [#allocation50], 16
    $region333: #{single_multi_view_forward.1} parent=1 // pred_fallthru
      _
    // Predicated region
    $region334: #{single_multi_view_forward.1} parent=1 // pred_check
      _
    $region335: #{single_multi_view_forward.1} parent=1 // pred_check_branch
      %708 = sbr.rel (0) target = $region337
    $region336: #{single_multi_view_forward.1} parent=1 // pred_region
      %709 = dma.done [#allocation50], 2048
    $region337: #{single_multi_view_forward.1} parent=1 // pred_fallthru
      _
    // Predicated region
    $region338: #{single_multi_view_forward.1} parent=1 // pred_check
      _
    $region339: #{single_multi_view_forward.1} parent=1 // pred_check_branch
      %711 = sbr.rel (0) target = $region341
    $region340: #{single_multi_view_forward.1} parent=1 // pred_region
      %712 = dma.done [#allocation53], 16
    $region341: #{single_multi_view_forward.1} parent=1 // pred_fallthru
      _
    // Predicated region
    $region342: #{single_multi_view_forward.1} parent=1 // pred_check
      _
    $region343: #{single_multi_view_forward.1} parent=1 // pred_check_branch
      %714 = sbr.rel (0) target = $region345
    $region344: #{single_multi_view_forward.1} parent=1 // pred_region
      %715 = dma.done [#allocation53], 16
    $region345: #{single_multi_view_forward.1} parent=1 // pred_fallthru
      _
    // Predicated region
    $region346: #{single_multi_view_forward.1} parent=1 // pred_check
      _
    $region347: #{single_multi_view_forward.1} parent=1 // pred_check_branch
      %717 = sbr.rel (0) target = $region349
    $region348: #{single_multi_view_forward.1} parent=1 // pred_region
      %718 = dma.done [#allocation56], 2048
    $region349: #{single_multi_view_forward.1} parent=1 // pred_fallthru
      _
    // Predicated region
    $region350: #{single_multi_view_forward.1} parent=1 // pred_check
      _
    $region351: #{single_multi_view_forward.1} parent=1 // pred_check_branch
      %720 = sbr.rel (0) target = $region353
    $region352: #{single_multi_view_forward.1} parent=1 // pred_region
      %721 = dma.done [#allocation56], 16
    $region353: #{single_multi_view_forward.1} parent=1 // pred_fallthru
      _
    // Predicated region
    $region354: #{single_multi_view_forward.1} parent=1 // pred_check
      _
    $region355: #{single_multi_view_forward.1} parent=1 // pred_check_branch
      %723 = sbr.rel (0) target = $region357
    $region356: #{single_multi_view_forward.1} parent=1 // pred_region
      %724 = dma.done [#allocation59], 16
    $region357: #{single_multi_view_forward.1} parent=1 // pred_fallthru
      _
    // Predicated region
    $region358: #{single_multi_view_forward.1} parent=1 // pred_check
      _
    $region359: #{single_multi_view_forward.1} parent=1 // pred_check_branch
      %726 = sbr.rel (0) target = $region361
    $region360: #{single_multi_view_forward.1} parent=1 // pred_region
      %727 = dma.done [#allocation59], 16
    $region361: #{single_multi_view_forward.1} parent=1 // pred_fallthru
      _
    // Predicated region
    $region362: #{single_multi_view_forward.1} parent=1 // pred_check
      _
    $region363: #{single_multi_view_forward.1} parent=1 // pred_check_branch
      %729 = sbr.rel (0) target = $region365
    $region364: #{single_multi_view_forward.1} parent=1 // pred_region
      %730 = dma.done [#allocation62], 2048
    $region365: #{single_multi_view_forward.1} parent=1 // pred_fallthru
      _
    // Predicated region
    $region366: #{single_multi_view_forward.1} parent=1 // pred_check
      _
    $region367: #{single_multi_view_forward.1} parent=1 // pred_check_branch
      %732 = sbr.rel (0) target = $region369
    $region368: #{single_multi_view_forward.1} parent=1 // pred_region
      %733 = dma.done [#allocation62], 2048
    $region369: #{single_multi_view_forward.1} parent=1 // pred_fallthru
      _
    // Predicated region
    $region370: #{single_multi_view_forward.1} parent=1 // pred_check
      _
    $region371: #{single_multi_view_forward.1} parent=1 // pred_check_branch
      %735 = sbr.rel (0) target = $region373
    $region372: #{single_multi_view_forward.1} parent=1 // pred_region
      %736 = dma.done [#allocation65], 16
    $region373: #{single_multi_view_forward.1} parent=1 // pred_fallthru
      _
    // Predicated region
    $region374: #{single_multi_view_forward.1} parent=1 // pred_check
      _
    $region375: #{single_multi_view_forward.1} parent=1 // pred_check_branch
      %738 = sbr.rel (0) target = $region377
    $region376: #{single_multi_view_forward.1} parent=1 // pred_region
      %739 = dma.done [#allocation65], 2048
    $region377: #{single_multi_view_forward.1} parent=1 // pred_fallthru
      _
    %v740 = vld [vmem:[%s5] sm:$0xff]
    %v741 = vld [vmem:[%s5 + $0x8] sm:$0xff]
    %v742 = vld [vmem:[%s5 + $0x10] sm:$0xff]
    %v743 = vld [vmem:[%s5 + $0x18] sm:$0xff]
    %v744 = vld [vmem:[%s5 + $0x20] sm:$0xff]
    %v745 = vld [vmem:[%s5 + $0x28] sm:$0xff]
    %v746 = vld [vmem:[%s5 + $0x30] sm:$0xff]
    %v747 = vld [vmem:[%s5 + $0x38] sm:$0xff]
    %v748 = vld [vmem:[%s5 + $0x40] sm:$0xff]
    %v749 = vld [vmem:[%s5 + $0x48] sm:$0xff]
    %v750 = vld [vmem:[%s5 + $0x50] sm:$0xff]
    %v751 = vld [vmem:[%s5 + $0x58] sm:$0xff]
    %v752 = vld [vmem:[%s5 + $0x60] sm:$0xff]
    %v753 = vld [vmem:[%s5 + $0x68] sm:$0xff]
    %v754 = vld [vmem:[%s5 + $0x70] sm:$0xff]
    %v755 = vld [vmem:[%s5 + $0x78] sm:$0xff]
    %v756 = vld [vmem:[%s7] sm:$0x1]
    %v757 = vld [vmem:[#allocation2] sm:$0x1]
    %v758 = vld [vmem:[#allocation4] sm:$0xff]
    %v759 = vld [vmem:[#allocation4 + $0x8] sm:$0xff]
    %v760 = vld [vmem:[#allocation4 + $0x10] sm:$0xff]
    %v761 = vld [vmem:[#allocation4 + $0x18] sm:$0xff]
    %v762 = vld [vmem:[#allocation4 + $0x20] sm:$0xff]
    %v763 = vld [vmem:[#allocation4 + $0x28] sm:$0xff]
    %v764 = vld [vmem:[#allocation4 + $0x30] sm:$0xff]
    %v765 = vld [vmem:[#allocation4 + $0x38] sm:$0xff]
    %v766 = vld [vmem:[#allocation4 + $0x40] sm:$0xff]
    %v767 = vld [vmem:[#allocation4 + $0x48] sm:$0xff]
    %v768 = vld [vmem:[#allocation4 + $0x50] sm:$0xff]
    %v769 = vld [vmem:[#allocation4 + $0x58] sm:$0xff]
    %v770 = vld [vmem:[#allocation4 + $0x60] sm:$0xff]
    %v771 = vld [vmem:[#allocation4 + $0x68] sm:$0xff]
    %v772 = vld [vmem:[#allocation4 + $0x70] sm:$0xff]
    %v773 = vld [vmem:[#allocation4 + $0x78] sm:$0xff]
    %v774 = vld [vmem:[#allocation6] sm:$0x1]
    %v775 = vld [vmem:[#allocation7] sm:$0x1]
    %v776 = vld [vmem:[#allocation9] sm:$0xff]
    %v777 = vld [vmem:[#allocation9 + $0x8] sm:$0xff]
    %v778 = vld [vmem:[#allocation9 + $0x10] sm:$0xff]
    %v779 = vld [vmem:[#allocation9 + $0x18] sm:$0xff]
    %v780 = vld [vmem:[#allocation9 + $0x20] sm:$0xff]
    %v781 = vld [vmem:[#allocation9 + $0x28] sm:$0xff]
    %v782 = vld [vmem:[#allocation9 + $0x30] sm:$0xff]
    %v783 = vld [vmem:[#allocation9 + $0x38] sm:$0xff]
    %v784 = vld [vmem:[#allocation9 + $0x40] sm:$0xff]
    %v785 = vld [vmem:[#allocation9 + $0x48] sm:$0xff]
    %v786 = vld [vmem:[#allocation9 + $0x50] sm:$0xff]
    %v787 = vld [vmem:[#allocation9 + $0x58] sm:$0xff]
    %v788 = vld [vmem:[#allocation9 + $0x60] sm:$0xff]
    %v789 = vld [vmem:[#allocation9 + $0x68] sm:$0xff]
    %v790 = vld [vmem:[#allocation9 + $0x70] sm:$0xff]
    %v791 = vld [vmem:[#allocation9 + $0x78] sm:$0xff]
    %v792 = vld [vmem:[#allocation10] sm:$0x1]
    %v793 = vld [vmem:[#allocation12] sm:$0x1]
    %v794 = vld [vmem:[%s1] sm:$0x3]
    %795 = vmatprep.subr.mxu0 0.0
    %796 = vmatpush1.msra.mxu0 %v740
    %797 = vmatprep.subr.mxu0 0.0
    %798 = vmatpush1.msra.mxu0 %v741
    %799 = vmatprep.subr.mxu0 0.0
    %800 = vmatpush1.msra.mxu0 %v742
    %801 = vmatprep.subr.mxu0 0.0
    %802 = vmatpush1.msra.mxu0 %v743
    %803 = vmatprep.subr.mxu0 0.0
    %804 = vmatpush1.msra.mxu0 %v744
    %805 = vmatprep.subr.mxu0 0.0
    %806 = vmatpush1.msra.mxu0 %v745
    %807 = vmatprep.subr.mxu0 0.0
    %808 = vmatpush1.msra.mxu0 %v746
    %809 = vmatprep.subr.mxu0 0.0
    %810 = vmatpush1.msra.mxu0 %v747
    %811 = vmatprep.subr.mxu0 0.0
    %812 = vmatpush1.msra.mxu0 %v748
    %813 = vmatprep.subr.mxu0 0.0
    %814 = vmatpush1.msra.mxu0 %v749
    %815 = vmatprep.subr.mxu0 0.0
    %816 = vmatpush1.msra.mxu0 %v750
    %817 = vmatprep.subr.mxu0 0.0
    %818 = vmatpush1.msra.mxu0 %v751
    %819 = vmatprep.subr.mxu0 0.0
    %820 = vmatpush1.msra.mxu0 %v752
    %821 = vmatprep.subr.mxu0 0.0
    %822 = vmatpush1.msra.mxu0 %v753
    %823 = vmatprep.subr.mxu0 0.0
    %824 = vmatpush1.msra.mxu0 %v754
    %825 = vmatprep.subr.mxu0 0.0
    %826 = vmatpush1.msra.mxu0 %v755
    %827 = vmatprep.subr.mxu0 0.0
    %828 = vmatpush1.msra.mxu0 0.0
    %829 = vmatprep.subr.mxu0 0.0
    %830 = vmatpush1.msra.mxu0 0.0
    %831 = vmatprep.subr.mxu0 0.0
    %832 = vmatpush1.msra.mxu0 0.0
    %833 = vmatprep.subr.mxu0 0.0
    %834 = vmatpush1.msra.mxu0 0.0
    %835 = vmatprep.subr.mxu0 0.0
    %836 = vmatpush1.msra.mxu0 0.0
    %837 = vmatprep.subr.mxu0 0.0
    %838 = vmatpush1.msra.mxu0 0.0
    %839 = vmatprep.subr.mxu0 0.0
    %840 = vmatpush1.msra.mxu0 0.0
    %841 = vmatprep.subr.mxu0 0.0
    %842 = vmatpush1.msra.mxu0 0.0
    %843 = vmatprep.subr.mxu0 0.0
    %844 = vmatpush1.msra.mxu0 0.0
    %845 = vmatprep.subr.mxu0 0.0
    %846 = vmatpush1.msra.mxu0 0.0
    %847 = vmatprep.subr.mxu0 0.0
    %848 = vmatpush1.msra.mxu0 0.0
    %849 = vmatprep.subr.mxu0 0.0
    %850 = vmatpush1.msra.mxu0 0.0
    %851 = vmatprep.subr.mxu0 0.0
    %852 = vmatpush1.msra.mxu0 0.0
    %853 = vmatprep.subr.mxu0 0.0
    %854 = vmatpush1.msra.mxu0 0.0
    %855 = vmatprep.subr.mxu0 0.0
    %856 = vmatpush1.msra.mxu0 0.0
    %857 = vmatprep.subr.mxu0 0.0
    %858 = vmatpush1.msra.mxu0 0.0
    %859 = vmatprep.mubr.f32.mxu0 0.0
    %860 = vmatmul.mubr.f32.gmra.mrb[0].mxu0 %v794
    %v861 = vpop.f32.mrb[0].mxu0
    %v862 = vadd.f32 0.0, %v861
    %v863 = vpop.f32.mrb[0].mxu0
    %864 = vdwg.mxu0
    %v866 = vlaneseq
    %v867 = vshrl.u32 %v866, 7
    %v868 = vsub.s32 0, %v867
    %v869 = vrot.slane %v756, %v868
    %v871 = vmul.f32 %v862, %v869
    %v873 = vlaneseq
    %v874 = vshrl.u32 %v873, 7
    %v875 = vsub.s32 0, %v874
    %v876 = vrot.slane %v757, %v875
    %v878 = vadd.f32 %v871, %v876
    %v879 = vmax.f32 %v878, 0.0
    %880 = vmatprep.subr.mxu0 0.0
    %881 = vmatpush1.msra.mxu0 %v758
    %882 = vmatprep.subr.mxu0 0.0
    %883 = vmatpush1.msra.mxu0 %v759
    %884 = vmatprep.subr.mxu0 0.0
    %885 = vmatpush1.msra.mxu0 %v760
    %886 = vmatprep.subr.mxu0 0.0
    %887 = vmatpush1.msra.mxu0 %v761
    %888 = vmatprep.subr.mxu0 0.0
    %889 = vmatpush1.msra.mxu0 %v762
    %890 = vmatprep.subr.mxu0 0.0
    %891 = vmatpush1.msra.mxu0 %v763
    %892 = vmatprep.subr.mxu0 0.0
    %893 = vmatpush1.msra.mxu0 %v764
    %894 = vmatprep.subr.mxu0 0.0
    %895 = vmatpush1.msra.mxu0 %v765
    %896 = vmatprep.subr.mxu0 0.0
    %897 = vmatpush1.msra.mxu0 %v766
    %898 = vmatprep.subr.mxu0 0.0
    %899 = vmatpush1.msra.mxu0 %v767
    %900 = vmatprep.subr.mxu0 0.0
    %901 = vmatpush1.msra.mxu0 %v768
    %902 = vmatprep.subr.mxu0 0.0
    %903 = vmatpush1.msra.mxu0 %v769
    %904 = vmatprep.subr.mxu0 0.0
    %905 = vmatpush1.msra.mxu0 %v770
    %906 = vmatprep.subr.mxu0 0.0
    %907 = vmatpush1.msra.mxu0 %v771
    %908 = vmatprep.subr.mxu0 0.0
    %909 = vmatpush1.msra.mxu0 %v772
    %910 = vmatprep.subr.mxu0 0.0
    %911 = vmatpush1.msra.mxu0 %v773
    %912 = vmatprep.subr.mxu0 0.0
    %913 = vmatpush1.msra.mxu0 0.0
    %914 = vmatprep.subr.mxu0 0.0
    %915 = vmatpush1.msra.mxu0 0.0
    %916 = vmatprep.subr.mxu0 0.0
    %917 = vmatpush1.msra.mxu0 0.0
    %918 = vmatprep.subr.mxu0 0.0
    %919 = vmatpush1.msra.mxu0 0.0
    %920 = vmatprep.subr.mxu0 0.0
    %921 = vmatpush1.msra.mxu0 0.0
    %922 = vmatprep.subr.mxu0 0.0
    %923 = vmatpush1.msra.mxu0 0.0
    %924 = vmatprep.subr.mxu0 0.0
    %925 = vmatpush1.msra.mxu0 0.0
    %926 = vmatprep.subr.mxu0 0.0
    %927 = vmatpush1.msra.mxu0 0.0
    %928 = vmatprep.subr.mxu0 0.0
    %929 = vmatpush1.msra.mxu0 0.0
    %930 = vmatprep.subr.mxu0 0.0
    %931 = vmatpush1.msra.mxu0 0.0
    %932 = vmatprep.subr.mxu0 0.0
    %933 = vmatpush1.msra.mxu0 0.0
    %934 = vmatprep.subr.mxu0 0.0
    %935 = vmatpush1.msra.mxu0 0.0
    %936 = vmatprep.subr.mxu0 0.0
    %937 = vmatpush1.msra.mxu0 0.0
    %938 = vmatprep.subr.mxu0 0.0
    %939 = vmatpush1.msra.mxu0 0.0
    %940 = vmatprep.subr.mxu0 0.0
    %941 = vmatpush1.msra.mxu0 0.0
    %942 = vmatprep.subr.mxu0 0.0
    %943 = vmatpush1.msra.mxu0 0.0
    %944 = vmatprep.mubr.f32.mxu0 0.0
    %945 = vmatmul.mubr.f32.gmra.mrb[0].mxu0 %v879
    %v946 = vpop.f32.mrb[0].mxu0
    %v947 = vadd.f32 0.0, %v946
    %v948 = vpop.f32.mrb[0].mxu0
    %949 = vdwg.mxu0
    %v951 = vlaneseq
    %v952 = vshrl.u32 %v951, 7
    %v953 = vsub.s32 0, %v952
    %v954 = vrot.slane %v774, %v953
    %v956 = vmul.f32 %v947, %v954
    %v958 = vlaneseq
    %v959 = vshrl.u32 %v958, 7
    %v960 = vsub.s32 0, %v959
    %v961 = vrot.slane %v775, %v960
    %v963 = vadd.f32 %v956, %v961
    %v964 = vmax.f32 %v963, 0.0
    %965 = vmatprep.subr.mxu0 0.0
    %966 = vmatpush1.msra.mxu0 %v776
    %967 = vmatprep.subr.mxu0 0.0
    %968 = vmatpush1.msra.mxu0 %v777
    %969 = vmatprep.subr.mxu0 0.0
    %970 = vmatpush1.msra.mxu0 %v778
    %971 = vmatprep.subr.mxu0 0.0
    %972 = vmatpush1.msra.mxu0 %v779
    %973 = vmatprep.subr.mxu0 0.0
    %974 = vmatpush1.msra.mxu0 %v780
    %975 = vmatprep.subr.mxu0 0.0
    %976 = vmatpush1.msra.mxu0 %v781
    %977 = vmatprep.subr.mxu0 0.0
    %978 = vmatpush1.msra.mxu0 %v782
    %979 = vmatprep.subr.mxu0 0.0
    %980 = vmatpush1.msra.mxu0 %v783
    %981 = vmatprep.subr.mxu0 0.0
    %982 = vmatpush1.msra.mxu0 %v784
    %983 = vmatprep.subr.mxu0 0.0
    %984 = vmatpush1.msra.mxu0 %v785
    %985 = vmatprep.subr.mxu0 0.0
    %986 = vmatpush1.msra.mxu0 %v786
    %987 = vmatprep.subr.mxu0 0.0
    %988 = vmatpush1.msra.mxu0 %v787
    %989 = vmatprep.subr.mxu0 0.0
    %990 = vmatpush1.msra.mxu0 %v788
    %991 = vmatprep.subr.mxu0 0.0
    %992 = vmatpush1.msra.mxu0 %v789
    %993 = vmatprep.subr.mxu0 0.0
    %994 = vmatpush1.msra.mxu0 %v790
    %995 = vmatprep.subr.mxu0 0.0
    %996 = vmatpush1.msra.mxu0 %v791
    %997 = vmatprep.subr.mxu0 0.0
    %998 = vmatpush1.msra.mxu0 0.0
    %999 = vmatprep.subr.mxu0 0.0
    %1000 = vmatpush1.msra.mxu0 0.0
    %1001 = vmatprep.subr.mxu0 0.0
    %1002 = vmatpush1.msra.mxu0 0.0
    %1003 = vmatprep.subr.mxu0 0.0
    %1004 = vmatpush1.msra.mxu0 0.0
    %1005 = vmatprep.subr.mxu0 0.0
    %1006 = vmatpush1.msra.mxu0 0.0
    %1007 = vmatprep.subr.mxu0 0.0
    %1008 = vmatpush1.msra.mxu0 0.0
    %1009 = vmatprep.subr.mxu0 0.0
    %1010 = vmatpush1.msra.mxu0 0.0
    %1011 = vmatprep.subr.mxu0 0.0
    %1012 = vmatpush1.msra.mxu0 0.0
    %1013 = vmatprep.subr.mxu0 0.0
    %1014 = vmatpush1.msra.mxu0 0.0
    %1015 = vmatprep.subr.mxu0 0.0
    %1016 = vmatpush1.msra.mxu0 0.0
    %1017 = vmatprep.subr.mxu0 0.0
    %1018 = vmatpush1.msra.mxu0 0.0
    %1019 = vmatprep.subr.mxu0 0.0
    %1020 = vmatpush1.msra.mxu0 0.0
    %1021 = vmatprep.subr.mxu0 0.0
    %1022 = vmatpush1.msra.mxu0 0.0
    %1023 = vmatprep.subr.mxu0 0.0
    %1024 = vmatpush1.msra.mxu0 0.0
    %1025 = vmatprep.subr.mxu0 0.0
    %1026 = vmatpush1.msra.mxu0 0.0
    %1027 = vmatprep.subr.mxu0 0.0
    %1028 = vmatpush1.msra.mxu0 0.0
    %1029 = vmatprep.mubr.f32.mxu0 0.0
    %1030 = vmatmul.mubr.f32.gmra.mrb[0].mxu0 %v964
    %v1031 = vpop.f32.mrb[0].mxu0
    %v1032 = vadd.f32 0.0, %v1031
    %v1033 = vpop.f32.mrb[0].mxu0
    %1034 = vdwg.mxu0
    %v1036 = vlaneseq
    %v1037 = vshrl.u32 %v1036, 7
    %v1038 = vsub.s32 0, %v1037
    %v1039 = vrot.slane %v792, %v1038
    %v1041 = vmul.f32 %v1032, %v1039
    %v1043 = vlaneseq
    %v1044 = vshrl.u32 %v1043, 7
    %v1045 = vsub.s32 0, %v1044
    %v1046 = vrot.slane %v793, %v1045
    %v1048 = vadd.f32 %v1041, %v1046
    %v1049 = vmax.f32 %v1048, 0.0
    %v1050 = vadd.f32 %v879, %v1049
    %v1051 = vld [vmem:[%s3] sm:$0x3]
    %1052 = vmatprep.subr.mxu0 0.0
    %1053 = vmatpush1.msra.mxu0 %v740
    %1054 = vmatprep.subr.mxu0 0.0
    %1055 = vmatpush1.msra.mxu0 %v741
    %1056 = vmatprep.subr.mxu0 0.0
    %1057 = vmatpush1.msra.mxu0 %v742
    %1058 = vmatprep.subr.mxu0 0.0
    %1059 = vmatpush1.msra.mxu0 %v743
    %1060 = vmatprep.subr.mxu0 0.0
    %1061 = vmatpush1.msra.mxu0 %v744
    %1062 = vmatprep.subr.mxu0 0.0
    %1063 = vmatpush1.msra.mxu0 %v745
    %1064 = vmatprep.subr.mxu0 0.0
    %1065 = vmatpush1.msra.mxu0 %v746
    %1066 = vmatprep.subr.mxu0 0.0
    %1067 = vmatpush1.msra.mxu0 %v747
    %1068 = vmatprep.subr.mxu0 0.0
    %1069 = vmatpush1.msra.mxu0 %v748
    %1070 = vmatprep.subr.mxu0 0.0
    %1071 = vmatpush1.msra.mxu0 %v749
    %1072 = vmatprep.subr.mxu0 0.0
    %1073 = vmatpush1.msra.mxu0 %v750
    %1074 = vmatprep.subr.mxu0 0.0
    %1075 = vmatpush1.msra.mxu0 %v751
    %1076 = vmatprep.subr.mxu0 0.0
    %1077 = vmatpush1.msra.mxu0 %v752
    %1078 = vmatprep.subr.mxu0 0.0
    %1079 = vmatpush1.msra.mxu0 %v753
    %1080 = vmatprep.subr.mxu0 0.0
    %1081 = vmatpush1.msra.mxu0 %v754
    %1082 = vmatprep.subr.mxu0 0.0
    %1083 = vmatpush1.msra.mxu0 %v755
    %1084 = vmatprep.subr.mxu0 0.0
    %1085 = vmatpush1.msra.mxu0 0.0
    %1086 = vmatprep.subr.mxu0 0.0
    %1087 = vmatpush1.msra.mxu0 0.0
    %1088 = vmatprep.subr.mxu0 0.0
    %1089 = vmatpush1.msra.mxu0 0.0
    %1090 = vmatprep.subr.mxu0 0.0
    %1091 = vmatpush1.msra.mxu0 0.0
    %1092 = vmatprep.subr.mxu0 0.0
    %1093 = vmatpush1.msra.mxu0 0.0
    %1094 = vmatprep.subr.mxu0 0.0
    %1095 = vmatpush1.msra.mxu0 0.0
    %1096 = vmatprep.subr.mxu0 0.0
    %1097 = vmatpush1.msra.mxu0 0.0
    %1098 = vmatprep.subr.mxu0 0.0
    %1099 = vmatpush1.msra.mxu0 0.0
    %1100 = vmatprep.subr.mxu0 0.0
    %1101 = vmatpush1.msra.mxu0 0.0
    %1102 = vmatprep.subr.mxu0 0.0
    %1103 = vmatpush1.msra.mxu0 0.0
    %1104 = vmatprep.subr.mxu0 0.0
    %1105 = vmatpush1.msra.mxu0 0.0
    %1106 = vmatprep.subr.mxu0 0.0
    %1107 = vmatpush1.msra.mxu0 0.0
    %1108 = vmatprep.subr.mxu0 0.0
    %1109 = vmatpush1.msra.mxu0 0.0
    %1110 = vmatprep.subr.mxu0 0.0
    %1111 = vmatpush1.msra.mxu0 0.0
    %1112 = vmatprep.subr.mxu0 0.0
    %1113 = vmatpush1.msra.mxu0 0.0
    %1114 = vmatprep.subr.mxu0 0.0
    %1115 = vmatpush1.msra.mxu0 0.0
    %1116 = vmatprep.mubr.f32.mxu0 0.0
    %1117 = vmatmul.mubr.f32.gmra.mrb[0].mxu0 %v1051
    %v1118 = vpop.f32.mrb[0].mxu0
    %v1119 = vadd.f32 0.0, %v1118
    %v1120 = vpop.f32.mrb[0].mxu0
    %1121 = vdwg.mxu0
    %v1122 = vmul.f32 %v1119, %v869
    %v1123 = vadd.f32 %v1122, %v876
    %v1124 = vmax.f32 %v1123, 0.0
    %1125 = vmatprep.subr.mxu0 0.0
    %1126 = vmatpush1.msra.mxu0 %v758
    %1127 = vmatprep.subr.mxu0 0.0
    %1128 = vmatpush1.msra.mxu0 %v759
    %1129 = vmatprep.subr.mxu0 0.0
    %1130 = vmatpush1.msra.mxu0 %v760
    %1131 = vmatprep.subr.mxu0 0.0
    %1132 = vmatpush1.msra.mxu0 %v761
    %1133 = vmatprep.subr.mxu0 0.0
    %1134 = vmatpush1.msra.mxu0 %v762
    %1135 = vmatprep.subr.mxu0 0.0
    %1136 = vmatpush1.msra.mxu0 %v763
    %1137 = vmatprep.subr.mxu0 0.0
    %1138 = vmatpush1.msra.mxu0 %v764
    %1139 = vmatprep.subr.mxu0 0.0
    %1140 = vmatpush1.msra.mxu0 %v765
    %1141 = vmatprep.subr.mxu0 0.0
    %1142 = vmatpush1.msra.mxu0 %v766
    %1143 = vmatprep.subr.mxu0 0.0
    %1144 = vmatpush1.msra.mxu0 %v767
    %1145 = vmatprep.subr.mxu0 0.0
    %1146 = vmatpush1.msra.mxu0 %v768
    %1147 = vmatprep.subr.mxu0 0.0
    %1148 = vmatpush1.msra.mxu0 %v769
    %1149 = vmatprep.subr.mxu0 0.0
    %1150 = vmatpush1.msra.mxu0 %v770
    %1151 = vmatprep.subr.mxu0 0.0
    %1152 = vmatpush1.msra.mxu0 %v771
    %1153 = vmatprep.subr.mxu0 0.0
    %1154 = vmatpush1.msra.mxu0 %v772
    %1155 = vmatprep.subr.mxu0 0.0
    %1156 = vmatpush1.msra.mxu0 %v773
    %1157 = vmatprep.subr.mxu0 0.0
    %1158 = vmatpush1.msra.mxu0 0.0
    %1159 = vmatprep.subr.mxu0 0.0
    %1160 = vmatpush1.msra.mxu0 0.0
    %1161 = vmatprep.subr.mxu0 0.0
    %1162 = vmatpush1.msra.mxu0 0.0
    %1163 = vmatprep.subr.mxu0 0.0
    %1164 = vmatpush1.msra.mxu0 0.0
    %1165 = vmatprep.subr.mxu0 0.0
    %1166 = vmatpush1.msra.mxu0 0.0
    %1167 = vmatprep.subr.mxu0 0.0
    %1168 = vmatpush1.msra.mxu0 0.0
    %1169 = vmatprep.subr.mxu0 0.0
    %1170 = vmatpush1.msra.mxu0 0.0
    %1171 = vmatprep.subr.mxu0 0.0
    %1172 = vmatpush1.msra.mxu0 0.0
    %1173 = vmatprep.subr.mxu0 0.0
    %1174 = vmatpush1.msra.mxu0 0.0
    %1175 = vmatprep.subr.mxu0 0.0
    %1176 = vmatpush1.msra.mxu0 0.0
    %1177 = vmatprep.subr.mxu0 0.0
    %1178 = vmatpush1.msra.mxu0 0.0
    %1179 = vmatprep.subr.mxu0 0.0
    %1180 = vmatpush1.msra.mxu0 0.0
    %1181 = vmatprep.subr.mxu0 0.0
    %1182 = vmatpush1.msra.mxu0 0.0
    %1183 = vmatprep.subr.mxu0 0.0
    %1184 = vmatpush1.msra.mxu0 0.0
    %1185 = vmatprep.subr.mxu0 0.0
    %1186 = vmatpush1.msra.mxu0 0.0
    %1187 = vmatprep.subr.mxu0 0.0
    %1188 = vmatpush1.msra.mxu0 0.0
    %1189 = vmatprep.mubr.f32.mxu0 0.0
    %1190 = vmatmul.mubr.f32.gmra.mrb[0].mxu0 %v1124
    %v1191 = vpop.f32.mrb[0].mxu0
    %v1192 = vadd.f32 0.0, %v1191
    %v1193 = vpop.f32.mrb[0].mxu0
    %1194 = vdwg.mxu0
    %v1195 = vmul.f32 %v1192, %v954
    %v1196 = vadd.f32 %v1195, %v961
    %v1197 = vmax.f32 %v1196, 0.0
    %1198 = vmatprep.subr.mxu0 0.0
    %1199 = vmatpush1.msra.mxu0 %v776
    %1200 = vmatprep.subr.mxu0 0.0
    %1201 = vmatpush1.msra.mxu0 %v777
    %1202 = vmatprep.subr.mxu0 0.0
    %1203 = vmatpush1.msra.mxu0 %v778
    %1204 = vmatprep.subr.mxu0 0.0
    %1205 = vmatpush1.msra.mxu0 %v779
    %1206 = vmatprep.subr.mxu0 0.0
    %1207 = vmatpush1.msra.mxu0 %v780
    %1208 = vmatprep.subr.mxu0 0.0
    %1209 = vmatpush1.msra.mxu0 %v781
    %1210 = vmatprep.subr.mxu0 0.0
    %1211 = vmatpush1.msra.mxu0 %v782
    %1212 = vmatprep.subr.mxu0 0.0
    %1213 = vmatpush1.msra.mxu0 %v783
    %1214 = vmatprep.subr.mxu0 0.0
    %1215 = vmatpush1.msra.mxu0 %v784
    %1216 = vmatprep.subr.mxu0 0.0
    %1217 = vmatpush1.msra.mxu0 %v785
    %1218 = vmatprep.subr.mxu0 0.0
    %1219 = vmatpush1.msra.mxu0 %v786
    %1220 = vmatprep.subr.mxu0 0.0
    %1221 = vmatpush1.msra.mxu0 %v787
    %1222 = vmatprep.subr.mxu0 0.0
    %1223 = vmatpush1.msra.mxu0 %v788
    %1224 = vmatprep.subr.mxu0 0.0
    %1225 = vmatpush1.msra.mxu0 %v789
    %1226 = vmatprep.subr.mxu0 0.0
    %1227 = vmatpush1.msra.mxu0 %v790
    %1228 = vmatprep.subr.mxu0 0.0
    %1229 = vmatpush1.msra.mxu0 %v791
    %1230 = vmatprep.subr.mxu0 0.0
    %1231 = vmatpush1.msra.mxu0 0.0
    %1232 = vmatprep.subr.mxu0 0.0
    %1233 = vmatpush1.msra.mxu0 0.0
    %1234 = vmatprep.subr.mxu0 0.0
    %1235 = vmatpush1.msra.mxu0 0.0
    %1236 = vmatprep.subr.mxu0 0.0
    %1237 = vmatpush1.msra.mxu0 0.0
    %1238 = vmatprep.subr.mxu0 0.0
    %1239 = vmatpush1.msra.mxu0 0.0
    %1240 = vmatprep.subr.mxu0 0.0
    %1241 = vmatpush1.msra.mxu0 0.0
    %1242 = vmatprep.subr.mxu0 0.0
    %1243 = vmatpush1.msra.mxu0 0.0
    %1244 = vmatprep.subr.mxu0 0.0
    %1245 = vmatpush1.msra.mxu0 0.0
    %1246 = vmatprep.subr.mxu0 0.0
    %1247 = vmatpush1.msra.mxu0 0.0
    %1248 = vmatprep.subr.mxu0 0.0
    %1249 = vmatpush1.msra.mxu0 0.0
    %1250 = vmatprep.subr.mxu0 0.0
    %1251 = vmatpush1.msra.mxu0 0.0
    %1252 = vmatprep.subr.mxu0 0.0
    %1253 = vmatpush1.msra.mxu0 0.0
    %1254 = vmatprep.subr.mxu0 0.0
    %1255 = vmatpush1.msra.mxu0 0.0
    %1256 = vmatprep.subr.mxu0 0.0
    %1257 = vmatpush1.msra.mxu0 0.0
    %1258 = vmatprep.subr.mxu0 0.0
    %1259 = vmatpush1.msra.mxu0 0.0
    %1260 = vmatprep.subr.mxu0 0.0
    %1261 = vmatpush1.msra.mxu0 0.0
    %1262 = vmatprep.mubr.f32.mxu0 0.0
    %1263 = vmatmul.mubr.f32.gmra.mrb[0].mxu0 %v1197
    %v1264 = vpop.f32.mrb[0].mxu0
    %v1265 = vadd.f32 0.0, %v1264
    %v1266 = vpop.f32.mrb[0].mxu0
    %1267 = vdwg.mxu0
    %v1268 = vmul.f32 %v1265, %v1039
    %v1269 = vadd.f32 %v1268, %v1046
    %v1270 = vmax.f32 %v1269, 0.0
    %v1271 = vadd.f32 %v1124, %v1270
    %v1272 = vld [vmem:[%s23] sm:$0xff]
    %v1273 = vld [vmem:[%s23 + $0x8] sm:$0xff]
    %v1274 = vld [vmem:[%s23 + $0x10] sm:$0xff]
    %v1275 = vld [vmem:[%s23 + $0x18] sm:$0xff]
    %v1276 = vld [vmem:[%s23 + $0x20] sm:$0xff]
    %v1277 = vld [vmem:[%s23 + $0x28] sm:$0xff]
    %v1278 = vld [vmem:[%s23 + $0x30] sm:$0xff]
    %v1279 = vld [vmem:[%s23 + $0x38] sm:$0xff]
    %v1280 = vld [vmem:[%s23 + $0x40] sm:$0xff]
    %v1281 = vld [vmem:[%s23 + $0x48] sm:$0xff]
    %v1282 = vld [vmem:[%s23 + $0x50] sm:$0xff]
    %v1283 = vld [vmem:[%s23 + $0x58] sm:$0xff]
    %v1284 = vld [vmem:[%s23 + $0x60] sm:$0xff]
    %v1285 = vld [vmem:[%s23 + $0x68] sm:$0xff]
    %v1286 = vld [vmem:[%s23 + $0x70] sm:$0xff]
    %v1287 = vld [vmem:[%s23 + $0x78] sm:$0xff]
    %v1288 = vld [vmem:[#allocation13] sm:$0x1]
    %v1289 = vld [vmem:[#allocation15] sm:$0x1]
    %v1290 = vld [vmem:[#allocation16] sm:$0xff]
    %v1291 = vld [vmem:[#allocation16 + $0x8] sm:$0xff]
    %v1292 = vld [vmem:[#allocation16 + $0x10] sm:$0xff]
    %v1293 = vld [vmem:[#allocation16 + $0x18] sm:$0xff]
    %v1294 = vld [vmem:[#allocation16 + $0x20] sm:$0xff]
    %v1295 = vld [vmem:[#allocation16 + $0x28] sm:$0xff]
    %v1296 = vld [vmem:[#allocation16 + $0x30] sm:$0xff]
    %v1297 = vld [vmem:[#allocation16 + $0x38] sm:$0xff]
    %v1298 = vld [vmem:[#allocation16 + $0x40] sm:$0xff]
    %v1299 = vld [vmem:[#allocation16 + $0x48] sm:$0xff]
    %v1300 = vld [vmem:[#allocation16 + $0x50] sm:$0xff]
    %v1301 = vld [vmem:[#allocation16 + $0x58] sm:$0xff]
    %v1302 = vld [vmem:[#allocation16 + $0x60] sm:$0xff]
    %v1303 = vld [vmem:[#allocation16 + $0x68] sm:$0xff]
    %v1304 = vld [vmem:[#allocation16 + $0x70] sm:$0xff]
    %v1305 = vld [vmem:[#allocation16 + $0x78] sm:$0xff]
    %v1306 = vld [vmem:[#allocation18] sm:$0x1]
    %v1307 = vld [vmem:[#allocation19] sm:$0x1]
    %v1308 = vld [vmem:[#allocation21] sm:$0xff]
    %v1309 = vld [vmem:[#allocation21 + $0x8] sm:$0xff]
    %v1310 = vld [vmem:[#allocation21 + $0x10] sm:$0xff]
    %v1311 = vld [vmem:[#allocation21 + $0x18] sm:$0xff]
    %v1312 = vld [vmem:[#allocation21 + $0x20] sm:$0xff]
    %v1313 = vld [vmem:[#allocation21 + $0x28] sm:$0xff]
    %v1314 = vld [vmem:[#allocation21 + $0x30] sm:$0xff]
    %v1315 = vld [vmem:[#allocation21 + $0x38] sm:$0xff]
    %v1316 = vld [vmem:[#allocation21 + $0x40] sm:$0xff]
    %v1317 = vld [vmem:[#allocation21 + $0x48] sm:$0xff]
    %v1318 = vld [vmem:[#allocation21 + $0x50] sm:$0xff]
    %v1319 = vld [vmem:[#allocation21 + $0x58] sm:$0xff]
    %v1320 = vld [vmem:[#allocation21 + $0x60] sm:$0xff]
    %v1321 = vld [vmem:[#allocation21 + $0x68] sm:$0xff]
    %v1322 = vld [vmem:[#allocation21 + $0x70] sm:$0xff]
    %v1323 = vld [vmem:[#allocation21 + $0x78] sm:$0xff]
    %v1324 = vld [vmem:[#allocation22] sm:$0x1]
    %v1325 = vld [vmem:[#allocation24] sm:$0x1]
    %v1326 = vld [vmem:[#allocation25] sm:$0xff]
    %v1327 = vld [vmem:[#allocation25 + $0x8] sm:$0xff]
    %v1328 = vld [vmem:[#allocation25 + $0x10] sm:$0xff]
    %v1329 = vld [vmem:[#allocation25 + $0x18] sm:$0xff]
    %v1330 = vld [vmem:[#allocation25 + $0x20] sm:$0xff]
    %v1331 = vld [vmem:[#allocation25 + $0x28] sm:$0xff]
    %v1332 = vld [vmem:[#allocation25 + $0x30] sm:$0xff]
    %v1333 = vld [vmem:[#allocation25 + $0x38] sm:$0xff]
    %v1334 = vld [vmem:[#allocation25 + $0x40] sm:$0xff]
    %v1335 = vld [vmem:[#allocation25 + $0x48] sm:$0xff]
    %v1336 = vld [vmem:[#allocation25 + $0x50] sm:$0xff]
    %v1337 = vld [vmem:[#allocation25 + $0x58] sm:$0xff]
    %v1338 = vld [vmem:[#allocation25 + $0x60] sm:$0xff]
    %v1339 = vld [vmem:[#allocation25 + $0x68] sm:$0xff]
    %v1340 = vld [vmem:[#allocation25 + $0x70] sm:$0xff]
    %v1341 = vld [vmem:[#allocation25 + $0x78] sm:$0xff]
    %v1342 = vld [vmem:[#allocation27] sm:$0x1]
    %1343 = vmatprep.subr.mxu0 0.0
    %1344 = vmatpush1.msra.mxu0 %v1272
    %1345 = vmatprep.subr.mxu0 0.0
    %1346 = vmatpush1.msra.mxu0 %v1273
    %1347 = vmatprep.subr.mxu0 0.0
    %1348 = vmatpush1.msra.mxu0 %v1274
    %1349 = vmatprep.subr.mxu0 0.0
    %1350 = vmatpush1.msra.mxu0 %v1275
    %1351 = vmatprep.subr.mxu0 0.0
    %1352 = vmatpush1.msra.mxu0 %v1276
    %1353 = vmatprep.subr.mxu0 0.0
    %1354 = vmatpush1.msra.mxu0 %v1277
    %1355 = vmatprep.subr.mxu0 0.0
    %1356 = vmatpush1.msra.mxu0 %v1278
    %1357 = vmatprep.subr.mxu0 0.0
    %1358 = vmatpush1.msra.mxu0 %v1279
    %1359 = vmatprep.subr.mxu0 0.0
    %1360 = vmatpush1.msra.mxu0 %v1280
    %1361 = vmatprep.subr.mxu0 0.0
    %1362 = vmatpush1.msra.mxu0 %v1281
    %1363 = vmatprep.subr.mxu0 0.0
    %1364 = vmatpush1.msra.mxu0 %v1282
    %1365 = vmatprep.subr.mxu0 0.0
    %1366 = vmatpush1.msra.mxu0 %v1283
    %1367 = vmatprep.subr.mxu0 0.0
    %1368 = vmatpush1.msra.mxu0 %v1284
    %1369 = vmatprep.subr.mxu0 0.0
    %1370 = vmatpush1.msra.mxu0 %v1285
    %1371 = vmatprep.subr.mxu0 0.0
    %1372 = vmatpush1.msra.mxu0 %v1286
    %1373 = vmatprep.subr.mxu0 0.0
    %1374 = vmatpush1.msra.mxu0 %v1287
    %1375 = vmatprep.subr.mxu0 0.0
    %1376 = vmatpush1.msra.mxu0 0.0
    %1377 = vmatprep.subr.mxu0 0.0
    %1378 = vmatpush1.msra.mxu0 0.0
    %1379 = vmatprep.subr.mxu0 0.0
    %1380 = vmatpush1.msra.mxu0 0.0
    %1381 = vmatprep.subr.mxu0 0.0
    %1382 = vmatpush1.msra.mxu0 0.0
    %1383 = vmatprep.subr.mxu0 0.0
    %1384 = vmatpush1.msra.mxu0 0.0
    %1385 = vmatprep.subr.mxu0 0.0
    %1386 = vmatpush1.msra.mxu0 0.0
    %1387 = vmatprep.subr.mxu0 0.0
    %1388 = vmatpush1.msra.mxu0 0.0
    %1389 = vmatprep.subr.mxu0 0.0
    %1390 = vmatpush1.msra.mxu0 0.0
    %1391 = vmatprep.subr.mxu0 0.0
    %1392 = vmatpush1.msra.mxu0 0.0
    %1393 = vmatprep.subr.mxu0 0.0
    %1394 = vmatpush1.msra.mxu0 0.0
    %1395 = vmatprep.subr.mxu0 0.0
    %1396 = vmatpush1.msra.mxu0 0.0
    %1397 = vmatprep.subr.mxu0 0.0
    %1398 = vmatpush1.msra.mxu0 0.0
    %1399 = vmatprep.subr.mxu0 0.0
    %1400 = vmatpush1.msra.mxu0 0.0
    %1401 = vmatprep.subr.mxu0 0.0
    %1402 = vmatpush1.msra.mxu0 0.0
    %1403 = vmatprep.subr.mxu0 0.0
    %1404 = vmatpush1.msra.mxu0 0.0
    %1405 = vmatprep.subr.mxu0 0.0
    %1406 = vmatpush1.msra.mxu0 0.0
    %1407 = vmatprep.mubr.f32.mxu0 0.0
    %1408 = vmatmul.mubr.f32.gmra.mrb[0].mxu0 %v1050
    %v1409 = vpop.f32.mrb[0].mxu0
    %v1410 = vadd.f32 0.0, %v1409
    %v1411 = vpop.f32.mrb[0].mxu0
    %1412 = vdwg.mxu0
    %v1414 = vlaneseq
    %v1415 = vshrl.u32 %v1414, 7
    %v1416 = vsub.s32 0, %v1415
    %v1417 = vrot.slane %v1288, %v1416
    %v1419 = vmul.f32 %v1410, %v1417
    %v1421 = vlaneseq
    %v1422 = vshrl.u32 %v1421, 7
    %v1423 = vsub.s32 0, %v1422
    %v1424 = vrot.slane %v1289, %v1423
    %v1426 = vadd.f32 %v1419, %v1424
    %v1427 = vmax.f32 %v1426, 0.0
    %1428 = vmatprep.subr.mxu0 0.0
    %1429 = vmatpush1.msra.mxu0 %v1290
    %1430 = vmatprep.subr.mxu0 0.0
    %1431 = vmatpush1.msra.mxu0 %v1291
    %1432 = vmatprep.subr.mxu0 0.0
    %1433 = vmatpush1.msra.mxu0 %v1292
    %1434 = vmatprep.subr.mxu0 0.0
    %1435 = vmatpush1.msra.mxu0 %v1293
    %1436 = vmatprep.subr.mxu0 0.0
    %1437 = vmatpush1.msra.mxu0 %v1294
    %1438 = vmatprep.subr.mxu0 0.0
    %1439 = vmatpush1.msra.mxu0 %v1295
    %1440 = vmatprep.subr.mxu0 0.0
    %1441 = vmatpush1.msra.mxu0 %v1296
    %1442 = vmatprep.subr.mxu0 0.0
    %1443 = vmatpush1.msra.mxu0 %v1297
    %1444 = vmatprep.subr.mxu0 0.0
    %1445 = vmatpush1.msra.mxu0 %v1298
    %1446 = vmatprep.subr.mxu0 0.0
    %1447 = vmatpush1.msra.mxu0 %v1299
    %1448 = vmatprep.subr.mxu0 0.0
    %1449 = vmatpush1.msra.mxu0 %v1300
    %1450 = vmatprep.subr.mxu0 0.0
    %1451 = vmatpush1.msra.mxu0 %v1301
    %1452 = vmatprep.subr.mxu0 0.0
    %1453 = vmatpush1.msra.mxu0 %v1302
    %1454 = vmatprep.subr.mxu0 0.0
    %1455 = vmatpush1.msra.mxu0 %v1303
    %1456 = vmatprep.subr.mxu0 0.0
    %1457 = vmatpush1.msra.mxu0 %v1304
    %1458 = vmatprep.subr.mxu0 0.0
    %1459 = vmatpush1.msra.mxu0 %v1305
    %1460 = vmatprep.subr.mxu0 0.0
    %1461 = vmatpush1.msra.mxu0 0.0
    %1462 = vmatprep.subr.mxu0 0.0
    %1463 = vmatpush1.msra.mxu0 0.0
    %1464 = vmatprep.subr.mxu0 0.0
    %1465 = vmatpush1.msra.mxu0 0.0
    %1466 = vmatprep.subr.mxu0 0.0
    %1467 = vmatpush1.msra.mxu0 0.0
    %1468 = vmatprep.subr.mxu0 0.0
    %1469 = vmatpush1.msra.mxu0 0.0
    %1470 = vmatprep.subr.mxu0 0.0
    %1471 = vmatpush1.msra.mxu0 0.0
    %1472 = vmatprep.subr.mxu0 0.0
    %1473 = vmatpush1.msra.mxu0 0.0
    %1474 = vmatprep.subr.mxu0 0.0
    %1475 = vmatpush1.msra.mxu0 0.0
    %1476 = vmatprep.subr.mxu0 0.0
    %1477 = vmatpush1.msra.mxu0 0.0
    %1478 = vmatprep.subr.mxu0 0.0
    %1479 = vmatpush1.msra.mxu0 0.0
    %1480 = vmatprep.subr.mxu0 0.0
    %1481 = vmatpush1.msra.mxu0 0.0
    %1482 = vmatprep.subr.mxu0 0.0
    %1483 = vmatpush1.msra.mxu0 0.0
    %1484 = vmatprep.subr.mxu0 0.0
    %1485 = vmatpush1.msra.mxu0 0.0
    %1486 = vmatprep.subr.mxu0 0.0
    %1487 = vmatpush1.msra.mxu0 0.0
    %1488 = vmatprep.subr.mxu0 0.0
    %1489 = vmatpush1.msra.mxu0 0.0
    %1490 = vmatprep.subr.mxu0 0.0
    %1491 = vmatpush1.msra.mxu0 0.0
    %1492 = vmatprep.mubr.f32.mxu0 0.0
    %1493 = vmatmul.mubr.f32.gmra.mrb[0].mxu0 %v1427
    %v1494 = vpop.f32.mrb[0].mxu0
    %v1495 = vadd.f32 0.0, %v1494
    %v1496 = vpop.f32.mrb[0].mxu0
    %1497 = vdwg.mxu0
    %v1499 = vlaneseq
    %v1500 = vshrl.u32 %v1499, 7
    %v1501 = vsub.s32 0, %v1500
    %v1502 = vrot.slane %v1306, %v1501
    %v1504 = vmul.f32 %v1495, %v1502
    %v1506 = vlaneseq
    %v1507 = vshrl.u32 %v1506, 7
    %v1508 = vsub.s32 0, %v1507
    %v1509 = vrot.slane %v1307, %v1508
    %v1511 = vadd.f32 %v1504, %v1509
    %v1512 = vmax.f32 %v1511, 0.0
    %1513 = vmatprep.subr.mxu0 0.0
    %1514 = vmatpush1.msra.mxu0 %v1308
    %1515 = vmatprep.subr.mxu0 0.0
    %1516 = vmatpush1.msra.mxu0 %v1309
    %1517 = vmatprep.subr.mxu0 0.0
    %1518 = vmatpush1.msra.mxu0 %v1310
    %1519 = vmatprep.subr.mxu0 0.0
    %1520 = vmatpush1.msra.mxu0 %v1311
    %1521 = vmatprep.subr.mxu0 0.0
    %1522 = vmatpush1.msra.mxu0 %v1312
    %1523 = vmatprep.subr.mxu0 0.0
    %1524 = vmatpush1.msra.mxu0 %v1313
    %1525 = vmatprep.subr.mxu0 0.0
    %1526 = vmatpush1.msra.mxu0 %v1314
    %1527 = vmatprep.subr.mxu0 0.0
    %1528 = vmatpush1.msra.mxu0 %v1315
    %1529 = vmatprep.subr.mxu0 0.0
    %1530 = vmatpush1.msra.mxu0 %v1316
    %1531 = vmatprep.subr.mxu0 0.0
    %1532 = vmatpush1.msra.mxu0 %v1317
    %1533 = vmatprep.subr.mxu0 0.0
    %1534 = vmatpush1.msra.mxu0 %v1318
    %1535 = vmatprep.subr.mxu0 0.0
    %1536 = vmatpush1.msra.mxu0 %v1319
    %1537 = vmatprep.subr.mxu0 0.0
    %1538 = vmatpush1.msra.mxu0 %v1320
    %1539 = vmatprep.subr.mxu0 0.0
    %1540 = vmatpush1.msra.mxu0 %v1321
    %1541 = vmatprep.subr.mxu0 0.0
    %1542 = vmatpush1.msra.mxu0 %v1322
    %1543 = vmatprep.subr.mxu0 0.0
    %1544 = vmatpush1.msra.mxu0 %v1323
    %1545 = vmatprep.subr.mxu0 0.0
    %1546 = vmatpush1.msra.mxu0 0.0
    %1547 = vmatprep.subr.mxu0 0.0
    %1548 = vmatpush1.msra.mxu0 0.0
    %1549 = vmatprep.subr.mxu0 0.0
    %1550 = vmatpush1.msra.mxu0 0.0
    %1551 = vmatprep.subr.mxu0 0.0
    %1552 = vmatpush1.msra.mxu0 0.0
    %1553 = vmatprep.subr.mxu0 0.0
    %1554 = vmatpush1.msra.mxu0 0.0
    %1555 = vmatprep.subr.mxu0 0.0
    %1556 = vmatpush1.msra.mxu0 0.0
    %1557 = vmatprep.subr.mxu0 0.0
    %1558 = vmatpush1.msra.mxu0 0.0
    %1559 = vmatprep.subr.mxu0 0.0
    %1560 = vmatpush1.msra.mxu0 0.0
    %1561 = vmatprep.subr.mxu0 0.0
    %1562 = vmatpush1.msra.mxu0 0.0
    %1563 = vmatprep.subr.mxu0 0.0
    %1564 = vmatpush1.msra.mxu0 0.0
    %1565 = vmatprep.subr.mxu0 0.0
    %1566 = vmatpush1.msra.mxu0 0.0
    %1567 = vmatprep.subr.mxu0 0.0
    %1568 = vmatpush1.msra.mxu0 0.0
    %1569 = vmatprep.subr.mxu0 0.0
    %1570 = vmatpush1.msra.mxu0 0.0
    %1571 = vmatprep.subr.mxu0 0.0
    %1572 = vmatpush1.msra.mxu0 0.0
    %1573 = vmatprep.subr.mxu0 0.0
    %1574 = vmatpush1.msra.mxu0 0.0
    %1575 = vmatprep.subr.mxu0 0.0
    %1576 = vmatpush1.msra.mxu0 0.0
    %1577 = vmatprep.mubr.f32.mxu0 0.0
    %1578 = vmatmul.mubr.f32.gmra.mrb[0].mxu0 %v1512
    %v1579 = vpop.f32.mrb[0].mxu0
    %v1580 = vadd.f32 0.0, %v1579
    %v1581 = vpop.f32.mrb[0].mxu0
    %1582 = vdwg.mxu0
    %v1584 = vlaneseq
    %v1585 = vshrl.u32 %v1584, 7
    %v1586 = vsub.s32 0, %v1585
    %v1587 = vrot.slane %v1324, %v1586
    %v1589 = vmul.f32 %v1580, %v1587
    %v1591 = vlaneseq
    %v1592 = vshrl.u32 %v1591, 7
    %v1593 = vsub.s32 0, %v1592
    %v1594 = vrot.slane %v1325, %v1593
    %v1596 = vadd.f32 %v1589, %v1594
    %v1597 = vmax.f32 %v1596, 0.0
    %v1598 = vadd.f32 %v1427, %v1597
    %v1600 = vlaneseq
    %v1601 = vshrl.u32 %v1600, 7
    %v1602 = vsub.s32 0, %v1601
    %v1603 = vrot.slane %v1342, %v1602
    %1605 = vmatprep.subr.mxu0 0.0
    %1606 = vmatpush1.msra.mxu0 %v1326
    %1607 = vmatprep.subr.mxu0 0.0
    %1608 = vmatpush1.msra.mxu0 %v1327
    %1609 = vmatprep.subr.mxu0 0.0
    %1610 = vmatpush1.msra.mxu0 %v1328
    %1611 = vmatprep.subr.mxu0 0.0
    %1612 = vmatpush1.msra.mxu0 %v1329
    %1613 = vmatprep.subr.mxu0 0.0
    %1614 = vmatpush1.msra.mxu0 %v1330
    %1615 = vmatprep.subr.mxu0 0.0
    %1616 = vmatpush1.msra.mxu0 %v1331
    %1617 = vmatprep.subr.mxu0 0.0
    %1618 = vmatpush1.msra.mxu0 %v1332
    %1619 = vmatprep.subr.mxu0 0.0
    %1620 = vmatpush1.msra.mxu0 %v1333
    %1621 = vmatprep.subr.mxu0 0.0
    %1622 = vmatpush1.msra.mxu0 %v1334
    %1623 = vmatprep.subr.mxu0 0.0
    %1624 = vmatpush1.msra.mxu0 %v1335
    %1625 = vmatprep.subr.mxu0 0.0
    %1626 = vmatpush1.msra.mxu0 %v1336
    %1627 = vmatprep.subr.mxu0 0.0
    %1628 = vmatpush1.msra.mxu0 %v1337
    %1629 = vmatprep.subr.mxu0 0.0
    %1630 = vmatpush1.msra.mxu0 %v1338
    %1631 = vmatprep.subr.mxu0 0.0
    %1632 = vmatpush1.msra.mxu0 %v1339
    %1633 = vmatprep.subr.mxu0 0.0
    %1634 = vmatpush1.msra.mxu0 %v1340
    %1635 = vmatprep.subr.mxu0 0.0
    %1636 = vmatpush1.msra.mxu0 %v1341
    %1637 = vmatprep.subr.mxu0 0.0
    %1638 = vmatpush1.msra.mxu0 0.0
    %1639 = vmatprep.subr.mxu0 0.0
    %1640 = vmatpush1.msra.mxu0 0.0
    %1641 = vmatprep.subr.mxu0 0.0
    %1642 = vmatpush1.msra.mxu0 0.0
    %1643 = vmatprep.subr.mxu0 0.0
    %1644 = vmatpush1.msra.mxu0 0.0
    %1645 = vmatprep.subr.mxu0 0.0
    %1646 = vmatpush1.msra.mxu0 0.0
    %1647 = vmatprep.subr.mxu0 0.0
    %1648 = vmatpush1.msra.mxu0 0.0
    %1649 = vmatprep.subr.mxu0 0.0
    %1650 = vmatpush1.msra.mxu0 0.0
    %1651 = vmatprep.subr.mxu0 0.0
    %1652 = vmatpush1.msra.mxu0 0.0
    %1653 = vmatprep.subr.mxu0 0.0
    %1654 = vmatpush1.msra.mxu0 0.0
    %1655 = vmatprep.subr.mxu0 0.0
    %1656 = vmatpush1.msra.mxu0 0.0
    %1657 = vmatprep.subr.mxu0 0.0
    %1658 = vmatpush1.msra.mxu0 0.0
    %1659 = vmatprep.subr.mxu0 0.0
    %1660 = vmatpush1.msra.mxu0 0.0
    %1661 = vmatprep.subr.mxu0 0.0
    %1662 = vmatpush1.msra.mxu0 0.0
    %1663 = vmatprep.subr.mxu0 0.0
    %1664 = vmatpush1.msra.mxu0 0.0
    %1665 = vmatprep.subr.mxu0 0.0
    %1666 = vmatpush1.msra.mxu0 0.0
    %1667 = vmatprep.subr.mxu0 0.0
    %1668 = vmatpush1.msra.mxu0 0.0
    %1669 = vmatprep.mubr.f32.mxu0 0.0
    %1670 = vmatmul.mubr.f32.gmra.mrb[0].mxu0 %v1598
    %v1671 = vpop.f32.mrb[0].mxu0
    %v1672 = vadd.f32 %v1603, %v1671
    %v1673 = vpop.f32.mrb[0].mxu0
    %1674 = vdwg.mxu0
    %1675 = vmatprep.subr.mxu0 0.0
    %1676 = vmatpush1.msra.mxu0 %v1272
    %1677 = vmatprep.subr.mxu0 0.0
    %1678 = vmatpush1.msra.mxu0 %v1273
    %1679 = vmatprep.subr.mxu0 0.0
    %1680 = vmatpush1.msra.mxu0 %v1274
    %1681 = vmatprep.subr.mxu0 0.0
    %1682 = vmatpush1.msra.mxu0 %v1275
    %1683 = vmatprep.subr.mxu0 0.0
    %1684 = vmatpush1.msra.mxu0 %v1276
    %1685 = vmatprep.subr.mxu0 0.0
    %1686 = vmatpush1.msra.mxu0 %v1277
    %1687 = vmatprep.subr.mxu0 0.0
    %1688 = vmatpush1.msra.mxu0 %v1278
    %1689 = vmatprep.subr.mxu0 0.0
    %1690 = vmatpush1.msra.mxu0 %v1279
    %1691 = vmatprep.subr.mxu0 0.0
    %1692 = vmatpush1.msra.mxu0 %v1280
    %1693 = vmatprep.subr.mxu0 0.0
    %1694 = vmatpush1.msra.mxu0 %v1281
    %1695 = vmatprep.subr.mxu0 0.0
    %1696 = vmatpush1.msra.mxu0 %v1282
    %1697 = vmatprep.subr.mxu0 0.0
    %1698 = vmatpush1.msra.mxu0 %v1283
    %1699 = vmatprep.subr.mxu0 0.0
    %1700 = vmatpush1.msra.mxu0 %v1284
    %1701 = vmatprep.subr.mxu0 0.0
    %1702 = vmatpush1.msra.mxu0 %v1285
    %1703 = vmatprep.subr.mxu0 0.0
    %1704 = vmatpush1.msra.mxu0 %v1286
    %1705 = vmatprep.subr.mxu0 0.0
    %1706 = vmatpush1.msra.mxu0 %v1287
    %1707 = vmatprep.subr.mxu0 0.0
    %1708 = vmatpush1.msra.mxu0 0.0
    %1709 = vmatprep.subr.mxu0 0.0
    %1710 = vmatpush1.msra.mxu0 0.0
    %1711 = vmatprep.subr.mxu0 0.0
    %1712 = vmatpush1.msra.mxu0 0.0
    %1713 = vmatprep.subr.mxu0 0.0
    %1714 = vmatpush1.msra.mxu0 0.0
    %1715 = vmatprep.subr.mxu0 0.0
    %1716 = vmatpush1.msra.mxu0 0.0
    %1717 = vmatprep.subr.mxu0 0.0
    %1718 = vmatpush1.msra.mxu0 0.0
    %1719 = vmatprep.subr.mxu0 0.0
    %1720 = vmatpush1.msra.mxu0 0.0
    %1721 = vmatprep.subr.mxu0 0.0
    %1722 = vmatpush1.msra.mxu0 0.0
    %1723 = vmatprep.subr.mxu0 0.0
    %1724 = vmatpush1.msra.mxu0 0.0
    %1725 = vmatprep.subr.mxu0 0.0
    %1726 = vmatpush1.msra.mxu0 0.0
    %1727 = vmatprep.subr.mxu0 0.0
    %1728 = vmatpush1.msra.mxu0 0.0
    %1729 = vmatprep.subr.mxu0 0.0
    %1730 = vmatpush1.msra.mxu0 0.0
    %1731 = vmatprep.subr.mxu0 0.0
    %1732 = vmatpush1.msra.mxu0 0.0
    %1733 = vmatprep.subr.mxu0 0.0
    %1734 = vmatpush1.msra.mxu0 0.0
    %1735 = vmatprep.subr.mxu0 0.0
    %1736 = vmatpush1.msra.mxu0 0.0
    %1737 = vmatprep.subr.mxu0 0.0
    %1738 = vmatpush1.msra.mxu0 0.0
    %1739 = vmatprep.mubr.f32.mxu0 0.0
    %1740 = vmatmul.mubr.f32.gmra.mrb[0].mxu0 %v1271
    %v1741 = vpop.f32.mrb[0].mxu0
    %v1742 = vadd.f32 0.0, %v1741
    %v1743 = vpop.f32.mrb[0].mxu0
    %1744 = vdwg.mxu0
    %v1745 = vmul.f32 %v1742, %v1417
    %v1746 = vadd.f32 %v1745, %v1424
    %v1747 = vmax.f32 %v1746, 0.0
    %1748 = vmatprep.subr.mxu0 0.0
    %1749 = vmatpush1.msra.mxu0 %v1290
    %1750 = vmatprep.subr.mxu0 0.0
    %1751 = vmatpush1.msra.mxu0 %v1291
    %1752 = vmatprep.subr.mxu0 0.0
    %1753 = vmatpush1.msra.mxu0 %v1292
    %1754 = vmatprep.subr.mxu0 0.0
    %1755 = vmatpush1.msra.mxu0 %v1293
    %1756 = vmatprep.subr.mxu0 0.0
    %1757 = vmatpush1.msra.mxu0 %v1294
    %1758 = vmatprep.subr.mxu0 0.0
    %1759 = vmatpush1.msra.mxu0 %v1295
    %1760 = vmatprep.subr.mxu0 0.0
    %1761 = vmatpush1.msra.mxu0 %v1296
    %1762 = vmatprep.subr.mxu0 0.0
    %1763 = vmatpush1.msra.mxu0 %v1297
    %1764 = vmatprep.subr.mxu0 0.0
    %1765 = vmatpush1.msra.mxu0 %v1298
    %1766 = vmatprep.subr.mxu0 0.0
    %1767 = vmatpush1.msra.mxu0 %v1299
    %1768 = vmatprep.subr.mxu0 0.0
    %1769 = vmatpush1.msra.mxu0 %v1300
    %1770 = vmatprep.subr.mxu0 0.0
    %1771 = vmatpush1.msra.mxu0 %v1301
    %1772 = vmatprep.subr.mxu0 0.0
    %1773 = vmatpush1.msra.mxu0 %v1302
    %1774 = vmatprep.subr.mxu0 0.0
    %1775 = vmatpush1.msra.mxu0 %v1303
    %1776 = vmatprep.subr.mxu0 0.0
    %1777 = vmatpush1.msra.mxu0 %v1304
    %1778 = vmatprep.subr.mxu0 0.0
    %1779 = vmatpush1.msra.mxu0 %v1305
    %1780 = vmatprep.subr.mxu0 0.0
    %1781 = vmatpush1.msra.mxu0 0.0
    %1782 = vmatprep.subr.mxu0 0.0
    %1783 = vmatpush1.msra.mxu0 0.0
    %1784 = vmatprep.subr.mxu0 0.0
    %1785 = vmatpush1.msra.mxu0 0.0
    %1786 = vmatprep.subr.mxu0 0.0
    %1787 = vmatpush1.msra.mxu0 0.0
    %1788 = vmatprep.subr.mxu0 0.0
    %1789 = vmatpush1.msra.mxu0 0.0
    %1790 = vmatprep.subr.mxu0 0.0
    %1791 = vmatpush1.msra.mxu0 0.0
    %1792 = vmatprep.subr.mxu0 0.0
    %1793 = vmatpush1.msra.mxu0 0.0
    %1794 = vmatprep.subr.mxu0 0.0
    %1795 = vmatpush1.msra.mxu0 0.0
    %1796 = vmatprep.subr.mxu0 0.0
    %1797 = vmatpush1.msra.mxu0 0.0
    %1798 = vmatprep.subr.mxu0 0.0
    %1799 = vmatpush1.msra.mxu0 0.0
    %1800 = vmatprep.subr.mxu0 0.0
    %1801 = vmatpush1.msra.mxu0 0.0
    %1802 = vmatprep.subr.mxu0 0.0
    %1803 = vmatpush1.msra.mxu0 0.0
    %1804 = vmatprep.subr.mxu0 0.0
    %1805 = vmatpush1.msra.mxu0 0.0
    %1806 = vmatprep.subr.mxu0 0.0
    %1807 = vmatpush1.msra.mxu0 0.0
    %1808 = vmatprep.subr.mxu0 0.0
    %1809 = vmatpush1.msra.mxu0 0.0
    %1810 = vmatprep.subr.mxu0 0.0
    %1811 = vmatpush1.msra.mxu0 0.0
    %1812 = vmatprep.mubr.f32.mxu0 0.0
    %1813 = vmatmul.mubr.f32.gmra.mrb[0].mxu0 %v1747
    %v1814 = vpop.f32.mrb[0].mxu0
    %v1815 = vadd.f32 0.0, %v1814
    %v1816 = vpop.f32.mrb[0].mxu0
    %1817 = vdwg.mxu0
    %v1818 = vmul.f32 %v1815, %v1502
    %v1819 = vadd.f32 %v1818, %v1509
    %v1820 = vmax.f32 %v1819, 0.0
    %1821 = vmatprep.subr.mxu0 0.0
    %1822 = vmatpush1.msra.mxu0 %v1308
    %1823 = vmatprep.subr.mxu0 0.0
    %1824 = vmatpush1.msra.mxu0 %v1309
    %1825 = vmatprep.subr.mxu0 0.0
    %1826 = vmatpush1.msra.mxu0 %v1310
    %1827 = vmatprep.subr.mxu0 0.0
    %1828 = vmatpush1.msra.mxu0 %v1311
    %1829 = vmatprep.subr.mxu0 0.0
    %1830 = vmatpush1.msra.mxu0 %v1312
    %1831 = vmatprep.subr.mxu0 0.0
    %1832 = vmatpush1.msra.mxu0 %v1313
    %1833 = vmatprep.subr.mxu0 0.0
    %1834 = vmatpush1.msra.mxu0 %v1314
    %1835 = vmatprep.subr.mxu0 0.0
    %1836 = vmatpush1.msra.mxu0 %v1315
    %1837 = vmatprep.subr.mxu0 0.0
    %1838 = vmatpush1.msra.mxu0 %v1316
    %1839 = vmatprep.subr.mxu0 0.0
    %1840 = vmatpush1.msra.mxu0 %v1317
    %1841 = vmatprep.subr.mxu0 0.0
    %1842 = vmatpush1.msra.mxu0 %v1318
    %1843 = vmatprep.subr.mxu0 0.0
    %1844 = vmatpush1.msra.mxu0 %v1319
    %1845 = vmatprep.subr.mxu0 0.0
    %1846 = vmatpush1.msra.mxu0 %v1320
    %1847 = vmatprep.subr.mxu0 0.0
    %1848 = vmatpush1.msra.mxu0 %v1321
    %1849 = vmatprep.subr.mxu0 0.0
    %1850 = vmatpush1.msra.mxu0 %v1322
    %1851 = vmatprep.subr.mxu0 0.0
    %1852 = vmatpush1.msra.mxu0 %v1323
    %1853 = vmatprep.subr.mxu0 0.0
    %1854 = vmatpush1.msra.mxu0 0.0
    %1855 = vmatprep.subr.mxu0 0.0
    %1856 = vmatpush1.msra.mxu0 0.0
    %1857 = vmatprep.subr.mxu0 0.0
    %1858 = vmatpush1.msra.mxu0 0.0
    %1859 = vmatprep.subr.mxu0 0.0
    %1860 = vmatpush1.msra.mxu0 0.0
    %1861 = vmatprep.subr.mxu0 0.0
    %1862 = vmatpush1.msra.mxu0 0.0
    %1863 = vmatprep.subr.mxu0 0.0
    %1864 = vmatpush1.msra.mxu0 0.0
    %1865 = vmatprep.subr.mxu0 0.0
    %1866 = vmatpush1.msra.mxu0 0.0
    %1867 = vmatprep.subr.mxu0 0.0
    %1868 = vmatpush1.msra.mxu0 0.0
    %1869 = vmatprep.subr.mxu0 0.0
    %1870 = vmatpush1.msra.mxu0 0.0
    %1871 = vmatprep.subr.mxu0 0.0
    %1872 = vmatpush1.msra.mxu0 0.0
    %1873 = vmatprep.subr.mxu0 0.0
    %1874 = vmatpush1.msra.mxu0 0.0
    %1875 = vmatprep.subr.mxu0 0.0
    %1876 = vmatpush1.msra.mxu0 0.0
    %1877 = vmatprep.subr.mxu0 0.0
    %1878 = vmatpush1.msra.mxu0 0.0
    %1879 = vmatprep.subr.mxu0 0.0
    %1880 = vmatpush1.msra.mxu0 0.0
    %1881 = vmatprep.subr.mxu0 0.0
    %1882 = vmatpush1.msra.mxu0 0.0
    %1883 = vmatprep.subr.mxu0 0.0
    %1884 = vmatpush1.msra.mxu0 0.0
    %1885 = vmatprep.mubr.f32.mxu0 0.0
    %1886 = vmatmul.mubr.f32.gmra.mrb[0].mxu0 %v1820
    %v1887 = vpop.f32.mrb[0].mxu0
    %v1888 = vadd.f32 0.0, %v1887
    %v1889 = vpop.f32.mrb[0].mxu0
    %1890 = vdwg.mxu0
    %v1891 = vmul.f32 %v1888, %v1587
    %v1892 = vadd.f32 %v1891, %v1594
    %v1893 = vmax.f32 %v1892, 0.0
    %v1894 = vadd.f32 %v1747, %v1893
    %1895 = vmatprep.subr.mxu0 0.0
    %1896 = vmatpush1.msra.mxu0 %v1326
    %1897 = vmatprep.subr.mxu0 0.0
    %1898 = vmatpush1.msra.mxu0 %v1327
    %1899 = vmatprep.subr.mxu0 0.0
    %1900 = vmatpush1.msra.mxu0 %v1328
    %1901 = vmatprep.subr.mxu0 0.0
    %1902 = vmatpush1.msra.mxu0 %v1329
    %1903 = vmatprep.subr.mxu0 0.0
    %1904 = vmatpush1.msra.mxu0 %v1330
    %1905 = vmatprep.subr.mxu0 0.0
    %1906 = vmatpush1.msra.mxu0 %v1331
    %1907 = vmatprep.subr.mxu0 0.0
    %1908 = vmatpush1.msra.mxu0 %v1332
    %1909 = vmatprep.subr.mxu0 0.0
    %1910 = vmatpush1.msra.mxu0 %v1333
    %1911 = vmatprep.subr.mxu0 0.0
    %1912 = vmatpush1.msra.mxu0 %v1334
    %1913 = vmatprep.subr.mxu0 0.0
    %1914 = vmatpush1.msra.mxu0 %v1335
    %1915 = vmatprep.subr.mxu0 0.0
    %1916 = vmatpush1.msra.mxu0 %v1336
    %1917 = vmatprep.subr.mxu0 0.0
    %1918 = vmatpush1.msra.mxu0 %v1337
    %1919 = vmatprep.subr.mxu0 0.0
    %1920 = vmatpush1.msra.mxu0 %v1338
    %1921 = vmatprep.subr.mxu0 0.0
    %1922 = vmatpush1.msra.mxu0 %v1339
    %1923 = vmatprep.subr.mxu0 0.0
    %1924 = vmatpush1.msra.mxu0 %v1340
    %1925 = vmatprep.subr.mxu0 0.0
    %1926 = vmatpush1.msra.mxu0 %v1341
    %1927 = vmatprep.subr.mxu0 0.0
    %1928 = vmatpush1.msra.mxu0 0.0
    %1929 = vmatprep.subr.mxu0 0.0
    %1930 = vmatpush1.msra.mxu0 0.0
    %1931 = vmatprep.subr.mxu0 0.0
    %1932 = vmatpush1.msra.mxu0 0.0
    %1933 = vmatprep.subr.mxu0 0.0
    %1934 = vmatpush1.msra.mxu0 0.0
    %1935 = vmatprep.subr.mxu0 0.0
    %1936 = vmatpush1.msra.mxu0 0.0
    %1937 = vmatprep.subr.mxu0 0.0
    %1938 = vmatpush1.msra.mxu0 0.0
    %1939 = vmatprep.subr.mxu0 0.0
    %1940 = vmatpush1.msra.mxu0 0.0
    %1941 = vmatprep.subr.mxu0 0.0
    %1942 = vmatpush1.msra.mxu0 0.0
    %1943 = vmatprep.subr.mxu0 0.0
    %1944 = vmatpush1.msra.mxu0 0.0
    %1945 = vmatprep.subr.mxu0 0.0
    %1946 = vmatpush1.msra.mxu0 0.0
    %1947 = vmatprep.subr.mxu0 0.0
    %1948 = vmatpush1.msra.mxu0 0.0
    %1949 = vmatprep.subr.mxu0 0.0
    %1950 = vmatpush1.msra.mxu0 0.0
    %1951 = vmatprep.subr.mxu0 0.0
    %1952 = vmatpush1.msra.mxu0 0.0
    %1953 = vmatprep.subr.mxu0 0.0
    %1954 = vmatpush1.msra.mxu0 0.0
    %1955 = vmatprep.subr.mxu0 0.0
    %1956 = vmatpush1.msra.mxu0 0.0
    %1957 = vmatprep.subr.mxu0 0.0
    %1958 = vmatpush1.msra.mxu0 0.0
    %1959 = vmatprep.mubr.f32.mxu0 0.0
    %1960 = vmatmul.mubr.f32.gmra.mrb[0].mxu0 %v1894
    %v1961 = vpop.f32.mrb[0].mxu0
    %v1962 = vadd.f32 %v1603, %v1961
    %v1963 = vpop.f32.mrb[0].mxu0
    %1964 = vdwg.mxu0
    %v1965 = vld [vmem:[#allocation28] sm:$0xff]
    %v1966 = vld [vmem:[#allocation28 + $0x8] sm:$0xff]
    %v1967 = vld [vmem:[#allocation28 + $0x10] sm:$0xff]
    %v1968 = vld [vmem:[#allocation28 + $0x18] sm:$0xff]
    %v1969 = vld [vmem:[#allocation28 + $0x20] sm:$0xff]
    %v1970 = vld [vmem:[#allocation28 + $0x28] sm:$0xff]
    %v1971 = vld [vmem:[#allocation28 + $0x30] sm:$0xff]
    %v1972 = vld [vmem:[#allocation28 + $0x38] sm:$0xff]
    %v1973 = vld [vmem:[#allocation28 + $0x40] sm:$0xff]
    %v1974 = vld [vmem:[#allocation28 + $0x48] sm:$0xff]
    %v1975 = vld [vmem:[#allocation28 + $0x50] sm:$0xff]
    %v1976 = vld [vmem:[#allocation28 + $0x58] sm:$0xff]
    %v1977 = vld [vmem:[#allocation28 + $0x60] sm:$0xff]
    %v1978 = vld [vmem:[#allocation28 + $0x68] sm:$0xff]
    %v1979 = vld [vmem:[#allocation28 + $0x70] sm:$0xff]
    %v1980 = vld [vmem:[#allocation28 + $0x78] sm:$0xff]
    %v1981 = vld [vmem:[#allocation30] sm:$0x1]
    %v1982 = vld [vmem:[#allocation31] sm:$0x1]
    %v1983 = vld [vmem:[#allocation33] sm:$0xff]
    %v1984 = vld [vmem:[#allocation33 + $0x8] sm:$0xff]
    %v1985 = vld [vmem:[#allocation33 + $0x10] sm:$0xff]
    %v1986 = vld [vmem:[#allocation33 + $0x18] sm:$0xff]
    %v1987 = vld [vmem:[#allocation33 + $0x20] sm:$0xff]
    %v1988 = vld [vmem:[#allocation33 + $0x28] sm:$0xff]
    %v1989 = vld [vmem:[#allocation33 + $0x30] sm:$0xff]
    %v1990 = vld [vmem:[#allocation33 + $0x38] sm:$0xff]
    %v1991 = vld [vmem:[#allocation33 + $0x40] sm:$0xff]
    %v1992 = vld [vmem:[#allocation33 + $0x48] sm:$0xff]
    %v1993 = vld [vmem:[#allocation33 + $0x50] sm:$0xff]
    %v1994 = vld [vmem:[#allocation33 + $0x58] sm:$0xff]
    %v1995 = vld [vmem:[#allocation33 + $0x60] sm:$0xff]
    %v1996 = vld [vmem:[#allocation33 + $0x68] sm:$0xff]
    %v1997 = vld [vmem:[#allocation33 + $0x70] sm:$0xff]
    %v1998 = vld [vmem:[#allocation33 + $0x78] sm:$0xff]
    %v1999 = vld [vmem:[#allocation34] sm:$0x1]
    %v2000 = vld [vmem:[#allocation36] sm:$0x1]
    %v2001 = vld [vmem:[#allocation37] sm:$0xff]
    %v2002 = vld [vmem:[#allocation37 + $0x8] sm:$0xff]
    %v2003 = vld [vmem:[#allocation37 + $0x10] sm:$0xff]
    %v2004 = vld [vmem:[#allocation37 + $0x18] sm:$0xff]
    %v2005 = vld [vmem:[#allocation37 + $0x20] sm:$0xff]
    %v2006 = vld [vmem:[#allocation37 + $0x28] sm:$0xff]
    %v2007 = vld [vmem:[#allocation37 + $0x30] sm:$0xff]
    %v2008 = vld [vmem:[#allocation37 + $0x38] sm:$0xff]
    %v2009 = vld [vmem:[#allocation37 + $0x40] sm:$0xff]
    %v2010 = vld [vmem:[#allocation37 + $0x48] sm:$0xff]
    %v2011 = vld [vmem:[#allocation37 + $0x50] sm:$0xff]
    %v2012 = vld [vmem:[#allocation37 + $0x58] sm:$0xff]
    %v2013 = vld [vmem:[#allocation37 + $0x60] sm:$0xff]
    %v2014 = vld [vmem:[#allocation37 + $0x68] sm:$0xff]
    %v2015 = vld [vmem:[#allocation37 + $0x70] sm:$0xff]
    %v2016 = vld [vmem:[#allocation37 + $0x78] sm:$0xff]
    %v2017 = vld [vmem:[#allocation39] sm:$0x1]
    %v2018 = vld [vmem:[#allocation40] sm:$0x1]
    %v2019 = vld [vmem:[#allocation42] sm:$0xff]
    %v2020 = vld [vmem:[#allocation42 + $0x8] sm:$0xff]
    %v2021 = vld [vmem:[#allocation42 + $0x10] sm:$0xff]
    %v2022 = vld [vmem:[#allocation42 + $0x18] sm:$0xff]
    %v2023 = vld [vmem:[#allocation42 + $0x20] sm:$0xff]
    %v2024 = vld [vmem:[#allocation42 + $0x28] sm:$0xff]
    %v2025 = vld [vmem:[#allocation42 + $0x30] sm:$0xff]
    %v2026 = vld [vmem:[#allocation42 + $0x38] sm:$0xff]
    %v2027 = vld [vmem:[#allocation42 + $0x40] sm:$0xff]
    %v2028 = vld [vmem:[#allocation42 + $0x48] sm:$0xff]
    %v2029 = vld [vmem:[#allocation42 + $0x50] sm:$0xff]
    %v2030 = vld [vmem:[#allocation42 + $0x58] sm:$0xff]
    %v2031 = vld [vmem:[#allocation42 + $0x60] sm:$0xff]
    %v2032 = vld [vmem:[#allocation42 + $0x68] sm:$0xff]
    %v2033 = vld [vmem:[#allocation42 + $0x70] sm:$0xff]
    %v2034 = vld [vmem:[#allocation42 + $0x78] sm:$0xff]
    %v2035 = vld [vmem:[#allocation43] sm:$0x1]
    %2036 = vmatprep.subr.mxu0 0.0
    %2037 = vmatpush1.msra.mxu0 %v1965
    %2038 = vmatprep.subr.mxu0 0.0
    %2039 = vmatpush1.msra.mxu0 %v1966
    %2040 = vmatprep.subr.mxu0 0.0
    %2041 = vmatpush1.msra.mxu0 %v1967
    %2042 = vmatprep.subr.mxu0 0.0
    %2043 = vmatpush1.msra.mxu0 %v1968
    %2044 = vmatprep.subr.mxu0 0.0
    %2045 = vmatpush1.msra.mxu0 %v1969
    %2046 = vmatprep.subr.mxu0 0.0
    %2047 = vmatpush1.msra.mxu0 %v1970
    %2048 = vmatprep.subr.mxu0 0.0
    %2049 = vmatpush1.msra.mxu0 %v1971
    %2050 = vmatprep.subr.mxu0 0.0
    %2051 = vmatpush1.msra.mxu0 %v1972
    %2052 = vmatprep.subr.mxu0 0.0
    %2053 = vmatpush1.msra.mxu0 %v1973
    %2054 = vmatprep.subr.mxu0 0.0
    %2055 = vmatpush1.msra.mxu0 %v1974
    %2056 = vmatprep.subr.mxu0 0.0
    %2057 = vmatpush1.msra.mxu0 %v1975
    %2058 = vmatprep.subr.mxu0 0.0
    %2059 = vmatpush1.msra.mxu0 %v1976
    %2060 = vmatprep.subr.mxu0 0.0
    %2061 = vmatpush1.msra.mxu0 %v1977
    %2062 = vmatprep.subr.mxu0 0.0
    %2063 = vmatpush1.msra.mxu0 %v1978
    %2064 = vmatprep.subr.mxu0 0.0
    %2065 = vmatpush1.msra.mxu0 %v1979
    %2066 = vmatprep.subr.mxu0 0.0
    %2067 = vmatpush1.msra.mxu0 %v1980
    %2068 = vmatprep.subr.mxu0 0.0
    %2069 = vmatpush1.msra.mxu0 0.0
    %2070 = vmatprep.subr.mxu0 0.0
    %2071 = vmatpush1.msra.mxu0 0.0
    %2072 = vmatprep.subr.mxu0 0.0
    %2073 = vmatpush1.msra.mxu0 0.0
    %2074 = vmatprep.subr.mxu0 0.0
    %2075 = vmatpush1.msra.mxu0 0.0
    %2076 = vmatprep.subr.mxu0 0.0
    %2077 = vmatpush1.msra.mxu0 0.0
    %2078 = vmatprep.subr.mxu0 0.0
    %2079 = vmatpush1.msra.mxu0 0.0
    %2080 = vmatprep.subr.mxu0 0.0
    %2081 = vmatpush1.msra.mxu0 0.0
    %2082 = vmatprep.subr.mxu0 0.0
    %2083 = vmatpush1.msra.mxu0 0.0
    %2084 = vmatprep.subr.mxu0 0.0
    %2085 = vmatpush1.msra.mxu0 0.0
    %2086 = vmatprep.subr.mxu0 0.0
    %2087 = vmatpush1.msra.mxu0 0.0
    %2088 = vmatprep.subr.mxu0 0.0
    %2089 = vmatpush1.msra.mxu0 0.0
    %2090 = vmatprep.subr.mxu0 0.0
    %2091 = vmatpush1.msra.mxu0 0.0
    %2092 = vmatprep.subr.mxu0 0.0
    %2093 = vmatpush1.msra.mxu0 0.0
    %2094 = vmatprep.subr.mxu0 0.0
    %2095 = vmatpush1.msra.mxu0 0.0
    %2096 = vmatprep.subr.mxu0 0.0
    %2097 = vmatpush1.msra.mxu0 0.0
    %2098 = vmatprep.subr.mxu0 0.0
    %2099 = vmatpush1.msra.mxu0 0.0
    %2100 = vmatprep.mubr.f32.mxu0 0.0
    %2101 = vmatmul.mubr.f32.gmra.mrb[0].mxu0 %v1050
    %v2102 = vpop.f32.mrb[0].mxu0
    %v2103 = vadd.f32 0.0, %v2102
    %v2104 = vpop.f32.mrb[0].mxu0
    %2105 = vdwg.mxu0
    %v2107 = vlaneseq
    %v2108 = vshrl.u32 %v2107, 7
    %v2109 = vsub.s32 0, %v2108
    %v2110 = vrot.slane %v1981, %v2109
    %v2112 = vmul.f32 %v2103, %v2110
    %v2114 = vlaneseq
    %v2115 = vshrl.u32 %v2114, 7
    %v2116 = vsub.s32 0, %v2115
    %v2117 = vrot.slane %v1982, %v2116
    %v2119 = vadd.f32 %v2112, %v2117
    %v2120 = vmax.f32 %v2119, 0.0
    %2121 = vmatprep.subr.mxu0 0.0
    %2122 = vmatpush1.msra.mxu0 %v1983
    %2123 = vmatprep.subr.mxu0 0.0
    %2124 = vmatpush1.msra.mxu0 %v1984
    %2125 = vmatprep.subr.mxu0 0.0
    %2126 = vmatpush1.msra.mxu0 %v1985
    %2127 = vmatprep.subr.mxu0 0.0
    %2128 = vmatpush1.msra.mxu0 %v1986
    %2129 = vmatprep.subr.mxu0 0.0
    %2130 = vmatpush1.msra.mxu0 %v1987
    %2131 = vmatprep.subr.mxu0 0.0
    %2132 = vmatpush1.msra.mxu0 %v1988
    %2133 = vmatprep.subr.mxu0 0.0
    %2134 = vmatpush1.msra.mxu0 %v1989
    %2135 = vmatprep.subr.mxu0 0.0
    %2136 = vmatpush1.msra.mxu0 %v1990
    %2137 = vmatprep.subr.mxu0 0.0
    %2138 = vmatpush1.msra.mxu0 %v1991
    %2139 = vmatprep.subr.mxu0 0.0
    %2140 = vmatpush1.msra.mxu0 %v1992
    %2141 = vmatprep.subr.mxu0 0.0
    %2142 = vmatpush1.msra.mxu0 %v1993
    %2143 = vmatprep.subr.mxu0 0.0
    %2144 = vmatpush1.msra.mxu0 %v1994
    %2145 = vmatprep.subr.mxu0 0.0
    %2146 = vmatpush1.msra.mxu0 %v1995
    %2147 = vmatprep.subr.mxu0 0.0
    %2148 = vmatpush1.msra.mxu0 %v1996
    %2149 = vmatprep.subr.mxu0 0.0
    %2150 = vmatpush1.msra.mxu0 %v1997
    %2151 = vmatprep.subr.mxu0 0.0
    %2152 = vmatpush1.msra.mxu0 %v1998
    %2153 = vmatprep.subr.mxu0 0.0
    %2154 = vmatpush1.msra.mxu0 0.0
    %2155 = vmatprep.subr.mxu0 0.0
    %2156 = vmatpush1.msra.mxu0 0.0
    %2157 = vmatprep.subr.mxu0 0.0
    %2158 = vmatpush1.msra.mxu0 0.0
    %2159 = vmatprep.subr.mxu0 0.0
    %2160 = vmatpush1.msra.mxu0 0.0
    %2161 = vmatprep.subr.mxu0 0.0
    %2162 = vmatpush1.msra.mxu0 0.0
    %2163 = vmatprep.subr.mxu0 0.0
    %2164 = vmatpush1.msra.mxu0 0.0
    %2165 = vmatprep.subr.mxu0 0.0
    %2166 = vmatpush1.msra.mxu0 0.0
    %2167 = vmatprep.subr.mxu0 0.0
    %2168 = vmatpush1.msra.mxu0 0.0
    %2169 = vmatprep.subr.mxu0 0.0
    %2170 = vmatpush1.msra.mxu0 0.0
    %2171 = vmatprep.subr.mxu0 0.0
    %2172 = vmatpush1.msra.mxu0 0.0
    %2173 = vmatprep.subr.mxu0 0.0
    %2174 = vmatpush1.msra.mxu0 0.0
    %2175 = vmatprep.subr.mxu0 0.0
    %2176 = vmatpush1.msra.mxu0 0.0
    %2177 = vmatprep.subr.mxu0 0.0
    %2178 = vmatpush1.msra.mxu0 0.0
    %2179 = vmatprep.subr.mxu0 0.0
    %2180 = vmatpush1.msra.mxu0 0.0
    %2181 = vmatprep.subr.mxu0 0.0
    %2182 = vmatpush1.msra.mxu0 0.0
    %2183 = vmatprep.subr.mxu0 0.0
    %2184 = vmatpush1.msra.mxu0 0.0
    %2185 = vmatprep.mubr.f32.mxu0 0.0
    %2186 = vmatmul.mubr.f32.gmra.mrb[0].mxu0 %v2120
    %v2187 = vpop.f32.mrb[0].mxu0
    %v2188 = vadd.f32 0.0, %v2187
    %v2189 = vpop.f32.mrb[0].mxu0
    %2190 = vdwg.mxu0
    %v2192 = vlaneseq
    %v2193 = vshrl.u32 %v2192, 7
    %v2194 = vsub.s32 0, %v2193
    %v2195 = vrot.slane %v1999, %v2194
    %v2197 = vmul.f32 %v2188, %v2195
    %v2199 = vlaneseq
    %v2200 = vshrl.u32 %v2199, 7
    %v2201 = vsub.s32 0, %v2200
    %v2202 = vrot.slane %v2000, %v2201
    %v2204 = vadd.f32 %v2197, %v2202
    %v2205 = vmax.f32 %v2204, 0.0
    %2206 = vmatprep.subr.mxu0 0.0
    %2207 = vmatpush1.msra.mxu0 %v2001
    %2208 = vmatprep.subr.mxu0 0.0
    %2209 = vmatpush1.msra.mxu0 %v2002
    %2210 = vmatprep.subr.mxu0 0.0
    %2211 = vmatpush1.msra.mxu0 %v2003
    %2212 = vmatprep.subr.mxu0 0.0
    %2213 = vmatpush1.msra.mxu0 %v2004
    %2214 = vmatprep.subr.mxu0 0.0
    %2215 = vmatpush1.msra.mxu0 %v2005
    %2216 = vmatprep.subr.mxu0 0.0
    %2217 = vmatpush1.msra.mxu0 %v2006
    %2218 = vmatprep.subr.mxu0 0.0
    %2219 = vmatpush1.msra.mxu0 %v2007
    %2220 = vmatprep.subr.mxu0 0.0
    %2221 = vmatpush1.msra.mxu0 %v2008
    %2222 = vmatprep.subr.mxu0 0.0
    %2223 = vmatpush1.msra.mxu0 %v2009
    %2224 = vmatprep.subr.mxu0 0.0
    %2225 = vmatpush1.msra.mxu0 %v2010
    %2226 = vmatprep.subr.mxu0 0.0
    %2227 = vmatpush1.msra.mxu0 %v2011
    %2228 = vmatprep.subr.mxu0 0.0
    %2229 = vmatpush1.msra.mxu0 %v2012
    %2230 = vmatprep.subr.mxu0 0.0
    %2231 = vmatpush1.msra.mxu0 %v2013
    %2232 = vmatprep.subr.mxu0 0.0
    %2233 = vmatpush1.msra.mxu0 %v2014
    %2234 = vmatprep.subr.mxu0 0.0
    %2235 = vmatpush1.msra.mxu0 %v2015
    %2236 = vmatprep.subr.mxu0 0.0
    %2237 = vmatpush1.msra.mxu0 %v2016
    %2238 = vmatprep.subr.mxu0 0.0
    %2239 = vmatpush1.msra.mxu0 0.0
    %2240 = vmatprep.subr.mxu0 0.0
    %2241 = vmatpush1.msra.mxu0 0.0
    %2242 = vmatprep.subr.mxu0 0.0
    %2243 = vmatpush1.msra.mxu0 0.0
    %2244 = vmatprep.subr.mxu0 0.0
    %2245 = vmatpush1.msra.mxu0 0.0
    %2246 = vmatprep.subr.mxu0 0.0
    %2247 = vmatpush1.msra.mxu0 0.0
    %2248 = vmatprep.subr.mxu0 0.0
    %2249 = vmatpush1.msra.mxu0 0.0
    %2250 = vmatprep.subr.mxu0 0.0
    %2251 = vmatpush1.msra.mxu0 0.0
    %2252 = vmatprep.subr.mxu0 0.0
    %2253 = vmatpush1.msra.mxu0 0.0
    %2254 = vmatprep.subr.mxu0 0.0
    %2255 = vmatpush1.msra.mxu0 0.0
    %2256 = vmatprep.subr.mxu0 0.0
    %2257 = vmatpush1.msra.mxu0 0.0
    %2258 = vmatprep.subr.mxu0 0.0
    %2259 = vmatpush1.msra.mxu0 0.0
    %2260 = vmatprep.subr.mxu0 0.0
    %2261 = vmatpush1.msra.mxu0 0.0
    %2262 = vmatprep.subr.mxu0 0.0
    %2263 = vmatpush1.msra.mxu0 0.0
    %2264 = vmatprep.subr.mxu0 0.0
    %2265 = vmatpush1.msra.mxu0 0.0
    %2266 = vmatprep.subr.mxu0 0.0
    %2267 = vmatpush1.msra.mxu0 0.0
    %2268 = vmatprep.subr.mxu0 0.0
    %2269 = vmatpush1.msra.mxu0 0.0
    %2270 = vmatprep.mubr.f32.mxu0 0.0
    %2271 = vmatmul.mubr.f32.gmra.mrb[0].mxu0 %v2205
    %v2272 = vpop.f32.mrb[0].mxu0
    %v2273 = vadd.f32 0.0, %v2272
    %v2274 = vpop.f32.mrb[0].mxu0
    %2275 = vdwg.mxu0
    %v2277 = vlaneseq
    %v2278 = vshrl.u32 %v2277, 7
    %v2279 = vsub.s32 0, %v2278
    %v2280 = vrot.slane %v2017, %v2279
    %v2282 = vmul.f32 %v2273, %v2280
    %v2284 = vlaneseq
    %v2285 = vshrl.u32 %v2284, 7
    %v2286 = vsub.s32 0, %v2285
    %v2287 = vrot.slane %v2018, %v2286
    %v2289 = vadd.f32 %v2282, %v2287
    %v2290 = vmax.f32 %v2289, 0.0
    %v2291 = vadd.f32 %v2120, %v2290
    %v2293 = vlaneseq
    %v2294 = vshrl.u32 %v2293, 7
    %v2295 = vsub.s32 0, %v2294
    %v2296 = vrot.slane %v2035, %v2295
    %2298 = vmatprep.subr.mxu0 0.0
    %2299 = vmatpush1.msra.mxu0 %v2019
    %2300 = vmatprep.subr.mxu0 0.0
    %2301 = vmatpush1.msra.mxu0 %v2020
    %2302 = vmatprep.subr.mxu0 0.0
    %2303 = vmatpush1.msra.mxu0 %v2021
    %2304 = vmatprep.subr.mxu0 0.0
    %2305 = vmatpush1.msra.mxu0 %v2022
    %2306 = vmatprep.subr.mxu0 0.0
    %2307 = vmatpush1.msra.mxu0 %v2023
    %2308 = vmatprep.subr.mxu0 0.0
    %2309 = vmatpush1.msra.mxu0 %v2024
    %2310 = vmatprep.subr.mxu0 0.0
    %2311 = vmatpush1.msra.mxu0 %v2025
    %2312 = vmatprep.subr.mxu0 0.0
    %2313 = vmatpush1.msra.mxu0 %v2026
    %2314 = vmatprep.subr.mxu0 0.0
    %2315 = vmatpush1.msra.mxu0 %v2027
    %2316 = vmatprep.subr.mxu0 0.0
    %2317 = vmatpush1.msra.mxu0 %v2028
    %2318 = vmatprep.subr.mxu0 0.0
    %2319 = vmatpush1.msra.mxu0 %v2029
    %2320 = vmatprep.subr.mxu0 0.0
    %2321 = vmatpush1.msra.mxu0 %v2030
    %2322 = vmatprep.subr.mxu0 0.0
    %2323 = vmatpush1.msra.mxu0 %v2031
    %2324 = vmatprep.subr.mxu0 0.0
    %2325 = vmatpush1.msra.mxu0 %v2032
    %2326 = vmatprep.subr.mxu0 0.0
    %2327 = vmatpush1.msra.mxu0 %v2033
    %2328 = vmatprep.subr.mxu0 0.0
    %2329 = vmatpush1.msra.mxu0 %v2034
    %2330 = vmatprep.subr.mxu0 0.0
    %2331 = vmatpush1.msra.mxu0 0.0
    %2332 = vmatprep.subr.mxu0 0.0
    %2333 = vmatpush1.msra.mxu0 0.0
    %2334 = vmatprep.subr.mxu0 0.0
    %2335 = vmatpush1.msra.mxu0 0.0
    %2336 = vmatprep.subr.mxu0 0.0
    %2337 = vmatpush1.msra.mxu0 0.0
    %2338 = vmatprep.subr.mxu0 0.0
    %2339 = vmatpush1.msra.mxu0 0.0
    %2340 = vmatprep.subr.mxu0 0.0
    %2341 = vmatpush1.msra.mxu0 0.0
    %2342 = vmatprep.subr.mxu0 0.0
    %2343 = vmatpush1.msra.mxu0 0.0
    %2344 = vmatprep.subr.mxu0 0.0
    %2345 = vmatpush1.msra.mxu0 0.0
    %2346 = vmatprep.subr.mxu0 0.0
    %2347 = vmatpush1.msra.mxu0 0.0
    %2348 = vmatprep.subr.mxu0 0.0
    %2349 = vmatpush1.msra.mxu0 0.0
    %2350 = vmatprep.subr.mxu0 0.0
    %2351 = vmatpush1.msra.mxu0 0.0
    %2352 = vmatprep.subr.mxu0 0.0
    %2353 = vmatpush1.msra.mxu0 0.0
    %2354 = vmatprep.subr.mxu0 0.0
    %2355 = vmatpush1.msra.mxu0 0.0
    %2356 = vmatprep.subr.mxu0 0.0
    %2357 = vmatpush1.msra.mxu0 0.0
    %2358 = vmatprep.subr.mxu0 0.0
    %2359 = vmatpush1.msra.mxu0 0.0
    %2360 = vmatprep.subr.mxu0 0.0
    %2361 = vmatpush1.msra.mxu0 0.0
    %2362 = vmatprep.mubr.f32.mxu0 0.0
    %2363 = vmatmul.mubr.f32.gmra.mrb[0].mxu0 %v2291
    %v2364 = vpop.f32.mrb[0].mxu0
    %v2365 = vadd.f32 %v2296, %v2364
    %v2366 = vpop.f32.mrb[0].mxu0
    %2367 = vdwg.mxu0
    %2368 = vmatprep.subr.mxu0 0.0
    %2369 = vmatpush1.msra.mxu0 %v1965
    %2370 = vmatprep.subr.mxu0 0.0
    %2371 = vmatpush1.msra.mxu0 %v1966
    %2372 = vmatprep.subr.mxu0 0.0
    %2373 = vmatpush1.msra.mxu0 %v1967
    %2374 = vmatprep.subr.mxu0 0.0
    %2375 = vmatpush1.msra.mxu0 %v1968
    %2376 = vmatprep.subr.mxu0 0.0
    %2377 = vmatpush1.msra.mxu0 %v1969
    %2378 = vmatprep.subr.mxu0 0.0
    %2379 = vmatpush1.msra.mxu0 %v1970
    %2380 = vmatprep.subr.mxu0 0.0
    %2381 = vmatpush1.msra.mxu0 %v1971
    %2382 = vmatprep.subr.mxu0 0.0
    %2383 = vmatpush1.msra.mxu0 %v1972
    %2384 = vmatprep.subr.mxu0 0.0
    %2385 = vmatpush1.msra.mxu0 %v1973
    %2386 = vmatprep.subr.mxu0 0.0
    %2387 = vmatpush1.msra.mxu0 %v1974
    %2388 = vmatprep.subr.mxu0 0.0
    %2389 = vmatpush1.msra.mxu0 %v1975
    %2390 = vmatprep.subr.mxu0 0.0
    %2391 = vmatpush1.msra.mxu0 %v1976
    %2392 = vmatprep.subr.mxu0 0.0
    %2393 = vmatpush1.msra.mxu0 %v1977
    %2394 = vmatprep.subr.mxu0 0.0
    %2395 = vmatpush1.msra.mxu0 %v1978
    %2396 = vmatprep.subr.mxu0 0.0
    %2397 = vmatpush1.msra.mxu0 %v1979
    %2398 = vmatprep.subr.mxu0 0.0
    %2399 = vmatpush1.msra.mxu0 %v1980
    %2400 = vmatprep.subr.mxu0 0.0
    %2401 = vmatpush1.msra.mxu0 0.0
    %2402 = vmatprep.subr.mxu0 0.0
    %2403 = vmatpush1.msra.mxu0 0.0
    %2404 = vmatprep.subr.mxu0 0.0
    %2405 = vmatpush1.msra.mxu0 0.0
    %2406 = vmatprep.subr.mxu0 0.0
    %2407 = vmatpush1.msra.mxu0 0.0
    %2408 = vmatprep.subr.mxu0 0.0
    %2409 = vmatpush1.msra.mxu0 0.0
    %2410 = vmatprep.subr.mxu0 0.0
    %2411 = vmatpush1.msra.mxu0 0.0
    %2412 = vmatprep.subr.mxu0 0.0
    %2413 = vmatpush1.msra.mxu0 0.0
    %2414 = vmatprep.subr.mxu0 0.0
    %2415 = vmatpush1.msra.mxu0 0.0
    %2416 = vmatprep.subr.mxu0 0.0
    %2417 = vmatpush1.msra.mxu0 0.0
    %2418 = vmatprep.subr.mxu0 0.0
    %2419 = vmatpush1.msra.mxu0 0.0
    %2420 = vmatprep.subr.mxu0 0.0
    %2421 = vmatpush1.msra.mxu0 0.0
    %2422 = vmatprep.subr.mxu0 0.0
    %2423 = vmatpush1.msra.mxu0 0.0
    %2424 = vmatprep.subr.mxu0 0.0
    %2425 = vmatpush1.msra.mxu0 0.0
    %2426 = vmatprep.subr.mxu0 0.0
    %2427 = vmatpush1.msra.mxu0 0.0
    %2428 = vmatprep.subr.mxu0 0.0
    %2429 = vmatpush1.msra.mxu0 0.0
    %2430 = vmatprep.subr.mxu0 0.0
    %2431 = vmatpush1.msra.mxu0 0.0
    %2432 = vmatprep.mubr.f32.mxu0 0.0
    %2433 = vmatmul.mubr.f32.gmra.mrb[0].mxu0 %v1271
    %v2434 = vpop.f32.mrb[0].mxu0
    %v2435 = vadd.f32 0.0, %v2434
    %v2436 = vpop.f32.mrb[0].mxu0
    %2437 = vdwg.mxu0
    %v2438 = vmul.f32 %v2435, %v2110
    %v2439 = vadd.f32 %v2438, %v2117
    %v2440 = vmax.f32 %v2439, 0.0
    %2441 = vmatprep.subr.mxu0 0.0
    %2442 = vmatpush1.msra.mxu0 %v1983
    %2443 = vmatprep.subr.mxu0 0.0
    %2444 = vmatpush1.msra.mxu0 %v1984
    %2445 = vmatprep.subr.mxu0 0.0
    %2446 = vmatpush1.msra.mxu0 %v1985
    %2447 = vmatprep.subr.mxu0 0.0
    %2448 = vmatpush1.msra.mxu0 %v1986
    %2449 = vmatprep.subr.mxu0 0.0
    %2450 = vmatpush1.msra.mxu0 %v1987
    %2451 = vmatprep.subr.mxu0 0.0
    %2452 = vmatpush1.msra.mxu0 %v1988
    %2453 = vmatprep.subr.mxu0 0.0
    %2454 = vmatpush1.msra.mxu0 %v1989
    %2455 = vmatprep.subr.mxu0 0.0
    %2456 = vmatpush1.msra.mxu0 %v1990
    %2457 = vmatprep.subr.mxu0 0.0
    %2458 = vmatpush1.msra.mxu0 %v1991
    %2459 = vmatprep.subr.mxu0 0.0
    %2460 = vmatpush1.msra.mxu0 %v1992
    %2461 = vmatprep.subr.mxu0 0.0
    %2462 = vmatpush1.msra.mxu0 %v1993
    %2463 = vmatprep.subr.mxu0 0.0
    %2464 = vmatpush1.msra.mxu0 %v1994
    %2465 = vmatprep.subr.mxu0 0.0
    %2466 = vmatpush1.msra.mxu0 %v1995
    %2467 = vmatprep.subr.mxu0 0.0
    %2468 = vmatpush1.msra.mxu0 %v1996
    %2469 = vmatprep.subr.mxu0 0.0
    %2470 = vmatpush1.msra.mxu0 %v1997
    %2471 = vmatprep.subr.mxu0 0.0
    %2472 = vmatpush1.msra.mxu0 %v1998
    %2473 = vmatprep.subr.mxu0 0.0
    %2474 = vmatpush1.msra.mxu0 0.0
    %2475 = vmatprep.subr.mxu0 0.0
    %2476 = vmatpush1.msra.mxu0 0.0
    %2477 = vmatprep.subr.mxu0 0.0
    %2478 = vmatpush1.msra.mxu0 0.0
    %2479 = vmatprep.subr.mxu0 0.0
    %2480 = vmatpush1.msra.mxu0 0.0
    %2481 = vmatprep.subr.mxu0 0.0
    %2482 = vmatpush1.msra.mxu0 0.0
    %2483 = vmatprep.subr.mxu0 0.0
    %2484 = vmatpush1.msra.mxu0 0.0
    %2485 = vmatprep.subr.mxu0 0.0
    %2486 = vmatpush1.msra.mxu0 0.0
    %2487 = vmatprep.subr.mxu0 0.0
    %2488 = vmatpush1.msra.mxu0 0.0
    %2489 = vmatprep.subr.mxu0 0.0
    %2490 = vmatpush1.msra.mxu0 0.0
    %2491 = vmatprep.subr.mxu0 0.0
    %2492 = vmatpush1.msra.mxu0 0.0
    %2493 = vmatprep.subr.mxu0 0.0
    %2494 = vmatpush1.msra.mxu0 0.0
    %2495 = vmatprep.subr.mxu0 0.0
    %2496 = vmatpush1.msra.mxu0 0.0
    %2497 = vmatprep.subr.mxu0 0.0
    %2498 = vmatpush1.msra.mxu0 0.0
    %2499 = vmatprep.subr.mxu0 0.0
    %2500 = vmatpush1.msra.mxu0 0.0
    %2501 = vmatprep.subr.mxu0 0.0
    %2502 = vmatpush1.msra.mxu0 0.0
    %2503 = vmatprep.subr.mxu0 0.0
    %2504 = vmatpush1.msra.mxu0 0.0
    %2505 = vmatprep.mubr.f32.mxu0 0.0
    %2506 = vmatmul.mubr.f32.gmra.mrb[0].mxu0 %v2440
    %v2507 = vpop.f32.mrb[0].mxu0
    %v2508 = vadd.f32 0.0, %v2507
    %v2509 = vpop.f32.mrb[0].mxu0
    %2510 = vdwg.mxu0
    %v2511 = vmul.f32 %v2508, %v2195
    %v2512 = vadd.f32 %v2511, %v2202
    %v2513 = vmax.f32 %v2512, 0.0
    %2514 = vmatprep.subr.mxu0 0.0
    %2515 = vmatpush1.msra.mxu0 %v2001
    %2516 = vmatprep.subr.mxu0 0.0
    %2517 = vmatpush1.msra.mxu0 %v2002
    %2518 = vmatprep.subr.mxu0 0.0
    %2519 = vmatpush1.msra.mxu0 %v2003
    %2520 = vmatprep.subr.mxu0 0.0
    %2521 = vmatpush1.msra.mxu0 %v2004
    %2522 = vmatprep.subr.mxu0 0.0
    %2523 = vmatpush1.msra.mxu0 %v2005
    %2524 = vmatprep.subr.mxu0 0.0
    %2525 = vmatpush1.msra.mxu0 %v2006
    %2526 = vmatprep.subr.mxu0 0.0
    %2527 = vmatpush1.msra.mxu0 %v2007
    %2528 = vmatprep.subr.mxu0 0.0
    %2529 = vmatpush1.msra.mxu0 %v2008
    %2530 = vmatprep.subr.mxu0 0.0
    %2531 = vmatpush1.msra.mxu0 %v2009
    %2532 = vmatprep.subr.mxu0 0.0
    %2533 = vmatpush1.msra.mxu0 %v2010
    %2534 = vmatprep.subr.mxu0 0.0
    %2535 = vmatpush1.msra.mxu0 %v2011
    %2536 = vmatprep.subr.mxu0 0.0
    %2537 = vmatpush1.msra.mxu0 %v2012
    %2538 = vmatprep.subr.mxu0 0.0
    %2539 = vmatpush1.msra.mxu0 %v2013
    %2540 = vmatprep.subr.mxu0 0.0
    %2541 = vmatpush1.msra.mxu0 %v2014
    %2542 = vmatprep.subr.mxu0 0.0
    %2543 = vmatpush1.msra.mxu0 %v2015
    %2544 = vmatprep.subr.mxu0 0.0
    %2545 = vmatpush1.msra.mxu0 %v2016
    %2546 = vmatprep.subr.mxu0 0.0
    %2547 = vmatpush1.msra.mxu0 0.0
    %2548 = vmatprep.subr.mxu0 0.0
    %2549 = vmatpush1.msra.mxu0 0.0
    %2550 = vmatprep.subr.mxu0 0.0
    %2551 = vmatpush1.msra.mxu0 0.0
    %2552 = vmatprep.subr.mxu0 0.0
    %2553 = vmatpush1.msra.mxu0 0.0
    %2554 = vmatprep.subr.mxu0 0.0
    %2555 = vmatpush1.msra.mxu0 0.0
    %2556 = vmatprep.subr.mxu0 0.0
    %2557 = vmatpush1.msra.mxu0 0.0
    %2558 = vmatprep.subr.mxu0 0.0
    %2559 = vmatpush1.msra.mxu0 0.0
    %2560 = vmatprep.subr.mxu0 0.0
    %2561 = vmatpush1.msra.mxu0 0.0
    %2562 = vmatprep.subr.mxu0 0.0
    %2563 = vmatpush1.msra.mxu0 0.0
    %2564 = vmatprep.subr.mxu0 0.0
    %2565 = vmatpush1.msra.mxu0 0.0
    %2566 = vmatprep.subr.mxu0 0.0
    %2567 = vmatpush1.msra.mxu0 0.0
    %2568 = vmatprep.subr.mxu0 0.0
    %2569 = vmatpush1.msra.mxu0 0.0
    %2570 = vmatprep.subr.mxu0 0.0
    %2571 = vmatpush1.msra.mxu0 0.0
    %2572 = vmatprep.subr.mxu0 0.0
    %2573 = vmatpush1.msra.mxu0 0.0
    %2574 = vmatprep.subr.mxu0 0.0
    %2575 = vmatpush1.msra.mxu0 0.0
    %2576 = vmatprep.subr.mxu0 0.0
    %2577 = vmatpush1.msra.mxu0 0.0
    %2578 = vmatprep.mubr.f32.mxu0 0.0
    %2579 = vmatmul.mubr.f32.gmra.mrb[0].mxu0 %v2513
    %v2580 = vpop.f32.mrb[0].mxu0
    %v2581 = vadd.f32 0.0, %v2580
    %v2582 = vpop.f32.mrb[0].mxu0
    %2583 = vdwg.mxu0
    %v2584 = vmul.f32 %v2581, %v2280
    %v2585 = vadd.f32 %v2584, %v2287
    %v2586 = vmax.f32 %v2585, 0.0
    %v2587 = vadd.f32 %v2440, %v2586
    %2588 = vmatprep.subr.mxu0 0.0
    %2589 = vmatpush1.msra.mxu0 %v2019
    %2590 = vmatprep.subr.mxu0 0.0
    %2591 = vmatpush1.msra.mxu0 %v2020
    %2592 = vmatprep.subr.mxu0 0.0
    %2593 = vmatpush1.msra.mxu0 %v2021
    %2594 = vmatprep.subr.mxu0 0.0
    %2595 = vmatpush1.msra.mxu0 %v2022
    %2596 = vmatprep.subr.mxu0 0.0
    %2597 = vmatpush1.msra.mxu0 %v2023
    %2598 = vmatprep.subr.mxu0 0.0
    %2599 = vmatpush1.msra.mxu0 %v2024
    %2600 = vmatprep.subr.mxu0 0.0
    %2601 = vmatpush1.msra.mxu0 %v2025
    %2602 = vmatprep.subr.mxu0 0.0
    %2603 = vmatpush1.msra.mxu0 %v2026
    %2604 = vmatprep.subr.mxu0 0.0
    %2605 = vmatpush1.msra.mxu0 %v2027
    %2606 = vmatprep.subr.mxu0 0.0
    %2607 = vmatpush1.msra.mxu0 %v2028
    %2608 = vmatprep.subr.mxu0 0.0
    %2609 = vmatpush1.msra.mxu0 %v2029
    %2610 = vmatprep.subr.mxu0 0.0
    %2611 = vmatpush1.msra.mxu0 %v2030
    %2612 = vmatprep.subr.mxu0 0.0
    %2613 = vmatpush1.msra.mxu0 %v2031
    %2614 = vmatprep.subr.mxu0 0.0
    %2615 = vmatpush1.msra.mxu0 %v2032
    %2616 = vmatprep.subr.mxu0 0.0
    %2617 = vmatpush1.msra.mxu0 %v2033
    %2618 = vmatprep.subr.mxu0 0.0
    %2619 = vmatpush1.msra.mxu0 %v2034
    %2620 = vmatprep.subr.mxu0 0.0
    %2621 = vmatpush1.msra.mxu0 0.0
    %2622 = vmatprep.subr.mxu0 0.0
    %2623 = vmatpush1.msra.mxu0 0.0
    %2624 = vmatprep.subr.mxu0 0.0
    %2625 = vmatpush1.msra.mxu0 0.0
    %2626 = vmatprep.subr.mxu0 0.0
    %2627 = vmatpush1.msra.mxu0 0.0
    %2628 = vmatprep.subr.mxu0 0.0
    %2629 = vmatpush1.msra.mxu0 0.0
    %2630 = vmatprep.subr.mxu0 0.0
    %2631 = vmatpush1.msra.mxu0 0.0
    %2632 = vmatprep.subr.mxu0 0.0
    %2633 = vmatpush1.msra.mxu0 0.0
    %2634 = vmatprep.subr.mxu0 0.0
    %2635 = vmatpush1.msra.mxu0 0.0
    %2636 = vmatprep.subr.mxu0 0.0
    %2637 = vmatpush1.msra.mxu0 0.0
    %2638 = vmatprep.subr.mxu0 0.0
    %2639 = vmatpush1.msra.mxu0 0.0
    %2640 = vmatprep.subr.mxu0 0.0
    %2641 = vmatpush1.msra.mxu0 0.0
    %2642 = vmatprep.subr.mxu0 0.0
    %2643 = vmatpush1.msra.mxu0 0.0
    %2644 = vmatprep.subr.mxu0 0.0
    %2645 = vmatpush1.msra.mxu0 0.0
    %2646 = vmatprep.subr.mxu0 0.0
    %2647 = vmatpush1.msra.mxu0 0.0
    %2648 = vmatprep.subr.mxu0 0.0
    %2649 = vmatpush1.msra.mxu0 0.0
    %2650 = vmatprep.subr.mxu0 0.0
    %2651 = vmatpush1.msra.mxu0 0.0
    %2652 = vmatprep.mubr.f32.mxu0 0.0
    %2653 = vmatmul.mubr.f32.gmra.mrb[0].mxu0 %v2587
    %v2654 = vpop.f32.mrb[0].mxu0
    %v2655 = vadd.f32 %v2296, %v2654
    %v2656 = vpop.f32.mrb[0].mxu0
    %2657 = vdwg.mxu0
    %v2658 = vld [vmem:[#allocation45] sm:$0xff]
    %v2659 = vld [vmem:[#allocation45 + $0x8] sm:$0xff]
    %v2660 = vld [vmem:[#allocation45 + $0x10] sm:$0xff]
    %v2661 = vld [vmem:[#allocation45 + $0x18] sm:$0xff]
    %v2662 = vld [vmem:[#allocation45 + $0x20] sm:$0xff]
    %v2663 = vld [vmem:[#allocation45 + $0x28] sm:$0xff]
    %v2664 = vld [vmem:[#allocation45 + $0x30] sm:$0xff]
    %v2665 = vld [vmem:[#allocation45 + $0x38] sm:$0xff]
    %v2666 = vld [vmem:[#allocation45 + $0x40] sm:$0xff]
    %v2667 = vld [vmem:[#allocation45 + $0x48] sm:$0xff]
    %v2668 = vld [vmem:[#allocation45 + $0x50] sm:$0xff]
    %v2669 = vld [vmem:[#allocation45 + $0x58] sm:$0xff]
    %v2670 = vld [vmem:[#allocation45 + $0x60] sm:$0xff]
    %v2671 = vld [vmem:[#allocation45 + $0x68] sm:$0xff]
    %v2672 = vld [vmem:[#allocation45 + $0x70] sm:$0xff]
    %v2673 = vld [vmem:[#allocation45 + $0x78] sm:$0xff]
    %v2674 = vld [vmem:[#allocation46] sm:$0xff]
    %v2675 = vld [vmem:[#allocation46 + $0x8] sm:$0xff]
    %v2676 = vld [vmem:[#allocation46 + $0x10] sm:$0xff]
    %v2677 = vld [vmem:[#allocation46 + $0x18] sm:$0xff]
    %v2678 = vld [vmem:[#allocation46 + $0x20] sm:$0xff]
    %v2679 = vld [vmem:[#allocation46 + $0x28] sm:$0xff]
    %v2680 = vld [vmem:[#allocation46 + $0x30] sm:$0xff]
    %v2681 = vld [vmem:[#allocation46 + $0x38] sm:$0xff]
    %v2682 = vld [vmem:[#allocation46 + $0x40] sm:$0xff]
    %v2683 = vld [vmem:[#allocation46 + $0x48] sm:$0xff]
    %v2684 = vld [vmem:[#allocation46 + $0x50] sm:$0xff]
    %v2685 = vld [vmem:[#allocation46 + $0x58] sm:$0xff]
    %v2686 = vld [vmem:[#allocation46 + $0x60] sm:$0xff]
    %v2687 = vld [vmem:[#allocation46 + $0x68] sm:$0xff]
    %v2688 = vld [vmem:[#allocation46 + $0x70] sm:$0xff]
    %v2689 = vld [vmem:[#allocation46 + $0x78] sm:$0xff]
    %v2690 = vld [vmem:[#allocation48] sm:$0x1]
    %v2691 = vld [vmem:[#allocation49] sm:$0x1]
    %v2692 = vld [vmem:[#allocation51] sm:$0xff]
    %v2693 = vld [vmem:[#allocation51 + $0x8] sm:$0xff]
    %v2694 = vld [vmem:[#allocation51 + $0x10] sm:$0xff]
    %v2695 = vld [vmem:[#allocation51 + $0x18] sm:$0xff]
    %v2696 = vld [vmem:[#allocation51 + $0x20] sm:$0xff]
    %v2697 = vld [vmem:[#allocation51 + $0x28] sm:$0xff]
    %v2698 = vld [vmem:[#allocation51 + $0x30] sm:$0xff]
    %v2699 = vld [vmem:[#allocation51 + $0x38] sm:$0xff]
    %v2700 = vld [vmem:[#allocation51 + $0x40] sm:$0xff]
    %v2701 = vld [vmem:[#allocation51 + $0x48] sm:$0xff]
    %v2702 = vld [vmem:[#allocation51 + $0x50] sm:$0xff]
    %v2703 = vld [vmem:[#allocation51 + $0x58] sm:$0xff]
    %v2704 = vld [vmem:[#allocation51 + $0x60] sm:$0xff]
    %v2705 = vld [vmem:[#allocation51 + $0x68] sm:$0xff]
    %v2706 = vld [vmem:[#allocation51 + $0x70] sm:$0xff]
    %v2707 = vld [vmem:[#allocation51 + $0x78] sm:$0xff]
    %v2708 = vld [vmem:[#allocation52] sm:$0x1]
    %v2709 = vld [vmem:[#allocation54] sm:$0x1]
    %v2710 = vld [vmem:[#allocation55] sm:$0xff]
    %v2711 = vld [vmem:[#allocation55 + $0x8] sm:$0xff]
    %v2712 = vld [vmem:[#allocation55 + $0x10] sm:$0xff]
    %v2713 = vld [vmem:[#allocation55 + $0x18] sm:$0xff]
    %v2714 = vld [vmem:[#allocation55 + $0x20] sm:$0xff]
    %v2715 = vld [vmem:[#allocation55 + $0x28] sm:$0xff]
    %v2716 = vld [vmem:[#allocation55 + $0x30] sm:$0xff]
    %v2717 = vld [vmem:[#allocation55 + $0x38] sm:$0xff]
    %v2718 = vld [vmem:[#allocation55 + $0x40] sm:$0xff]
    %v2719 = vld [vmem:[#allocation55 + $0x48] sm:$0xff]
    %v2720 = vld [vmem:[#allocation55 + $0x50] sm:$0xff]
    %v2721 = vld [vmem:[#allocation55 + $0x58] sm:$0xff]
    %v2722 = vld [vmem:[#allocation55 + $0x60] sm:$0xff]
    %v2723 = vld [vmem:[#allocation55 + $0x68] sm:$0xff]
    %v2724 = vld [vmem:[#allocation55 + $0x70] sm:$0xff]
    %v2725 = vld [vmem:[#allocation55 + $0x78] sm:$0xff]
    %v2726 = vld [vmem:[#allocation57] sm:$0x1]
    %v2727 = vld [vmem:[#allocation58] sm:$0x1]
    %v2728 = vld [vmem:[%s87] sm:$0xff]
    %v2729 = vld [vmem:[%s87 + $0x8] sm:$0xff]
    %v2730 = vld [vmem:[%s87 + $0x10] sm:$0xff]
    %v2731 = vld [vmem:[%s87 + $0x18] sm:$0xff]
    %v2732 = vld [vmem:[%s87 + $0x20] sm:$0xff]
    %v2733 = vld [vmem:[%s87 + $0x28] sm:$0xff]
    %v2734 = vld [vmem:[%s87 + $0x30] sm:$0xff]
    %v2735 = vld [vmem:[%s87 + $0x38] sm:$0xff]
    %v2736 = vld [vmem:[%s87 + $0x40] sm:$0xff]
    %v2737 = vld [vmem:[%s87 + $0x48] sm:$0xff]
    %v2738 = vld [vmem:[%s87 + $0x50] sm:$0xff]
    %v2739 = vld [vmem:[%s87 + $0x58] sm:$0xff]
    %v2740 = vld [vmem:[%s87 + $0x60] sm:$0xff]
    %v2741 = vld [vmem:[%s87 + $0x68] sm:$0xff]
    %v2742 = vld [vmem:[%s87 + $0x70] sm:$0xff]
    %v2743 = vld [vmem:[%s87 + $0x78] sm:$0xff]
    %v2744 = vld [vmem:[#allocation60] sm:$0x1]
    %2745 = vmatprep.subr.mxu0 0.0
    %2746 = vmatpush1.msra.mxu0 %v2674
    %2747 = vmatprep.subr.mxu0 0.0
    %2748 = vmatpush1.msra.mxu0 %v2675
    %2749 = vmatprep.subr.mxu0 0.0
    %2750 = vmatpush1.msra.mxu0 %v2676
    %2751 = vmatprep.subr.mxu0 0.0
    %2752 = vmatpush1.msra.mxu0 %v2677
    %2753 = vmatprep.subr.mxu0 0.0
    %2754 = vmatpush1.msra.mxu0 %v2678
    %2755 = vmatprep.subr.mxu0 0.0
    %2756 = vmatpush1.msra.mxu0 %v2679
    %2757 = vmatprep.subr.mxu0 0.0
    %2758 = vmatpush1.msra.mxu0 %v2680
    %2759 = vmatprep.subr.mxu0 0.0
    %2760 = vmatpush1.msra.mxu0 %v2681
    %2761 = vmatprep.subr.mxu0 0.0
    %2762 = vmatpush1.msra.mxu0 %v2682
    %2763 = vmatprep.subr.mxu0 0.0
    %2764 = vmatpush1.msra.mxu0 %v2683
    %2765 = vmatprep.subr.mxu0 0.0
    %2766 = vmatpush1.msra.mxu0 %v2684
    %2767 = vmatprep.subr.mxu0 0.0
    %2768 = vmatpush1.msra.mxu0 %v2685
    %2769 = vmatprep.subr.mxu0 0.0
    %2770 = vmatpush1.msra.mxu0 %v2686
    %2771 = vmatprep.subr.mxu0 0.0
    %2772 = vmatpush1.msra.mxu0 %v2687
    %2773 = vmatprep.subr.mxu0 0.0
    %2774 = vmatpush1.msra.mxu0 %v2688
    %2775 = vmatprep.subr.mxu0 0.0
    %2776 = vmatpush1.msra.mxu0 %v2689
    %2777 = vmatprep.subr.mxu0 0.0
    %2778 = vmatpush1.msra.mxu0 0.0
    %2779 = vmatprep.subr.mxu0 0.0
    %2780 = vmatpush1.msra.mxu0 0.0
    %2781 = vmatprep.subr.mxu0 0.0
    %2782 = vmatpush1.msra.mxu0 0.0
    %2783 = vmatprep.subr.mxu0 0.0
    %2784 = vmatpush1.msra.mxu0 0.0
    %2785 = vmatprep.subr.mxu0 0.0
    %2786 = vmatpush1.msra.mxu0 0.0
    %2787 = vmatprep.subr.mxu0 0.0
    %2788 = vmatpush1.msra.mxu0 0.0
    %2789 = vmatprep.subr.mxu0 0.0
    %2790 = vmatpush1.msra.mxu0 0.0
    %2791 = vmatprep.subr.mxu0 0.0
    %2792 = vmatpush1.msra.mxu0 0.0
    %2793 = vmatprep.subr.mxu0 0.0
    %2794 = vmatpush1.msra.mxu0 0.0
    %2795 = vmatprep.subr.mxu0 0.0
    %2796 = vmatpush1.msra.mxu0 0.0
    %2797 = vmatprep.subr.mxu0 0.0
    %2798 = vmatpush1.msra.mxu0 0.0
    %2799 = vmatprep.subr.mxu0 0.0
    %2800 = vmatpush1.msra.mxu0 0.0
    %2801 = vmatprep.subr.mxu0 0.0
    %2802 = vmatpush1.msra.mxu0 0.0
    %2803 = vmatprep.subr.mxu0 0.0
    %2804 = vmatpush1.msra.mxu0 0.0
    %2805 = vmatprep.subr.mxu0 0.0
    %2806 = vmatpush1.msra.mxu0 0.0
    %2807 = vmatprep.subr.mxu0 0.0
    %2808 = vmatpush1.msra.mxu0 0.0
    %2809 = vmatprep.mubr.f32.mxu0 0.0
    %2810 = vmatmul.mubr.f32.gmra.mrb[0].mxu0 %v1962
    %v2811 = vpop.f32.mrb[0].mxu0
    %v2812 = vadd.f32 0.0, %v2811
    %v2813 = vpop.f32.mrb[0].mxu0
    %2814 = vdwg.mxu0
    %2815 = vmatprep.subr.mxu0 0.0
    %2816 = vmatpush1.msra.mxu0 %v2658
    %2817 = vmatprep.subr.mxu0 0.0
    %2818 = vmatpush1.msra.mxu0 %v2659
    %2819 = vmatprep.subr.mxu0 0.0
    %2820 = vmatpush1.msra.mxu0 %v2660
    %2821 = vmatprep.subr.mxu0 0.0
    %2822 = vmatpush1.msra.mxu0 %v2661
    %2823 = vmatprep.subr.mxu0 0.0
    %2824 = vmatpush1.msra.mxu0 %v2662
    %2825 = vmatprep.subr.mxu0 0.0
    %2826 = vmatpush1.msra.mxu0 %v2663
    %2827 = vmatprep.subr.mxu0 0.0
    %2828 = vmatpush1.msra.mxu0 %v2664
    %2829 = vmatprep.subr.mxu0 0.0
    %2830 = vmatpush1.msra.mxu0 %v2665
    %2831 = vmatprep.subr.mxu0 0.0
    %2832 = vmatpush1.msra.mxu0 %v2666
    %2833 = vmatprep.subr.mxu0 0.0
    %2834 = vmatpush1.msra.mxu0 %v2667
    %2835 = vmatprep.subr.mxu0 0.0
    %2836 = vmatpush1.msra.mxu0 %v2668
    %2837 = vmatprep.subr.mxu0 0.0
    %2838 = vmatpush1.msra.mxu0 %v2669
    %2839 = vmatprep.subr.mxu0 0.0
    %2840 = vmatpush1.msra.mxu0 %v2670
    %2841 = vmatprep.subr.mxu0 0.0
    %2842 = vmatpush1.msra.mxu0 %v2671
    %2843 = vmatprep.subr.mxu0 0.0
    %2844 = vmatpush1.msra.mxu0 %v2672
    %2845 = vmatprep.subr.mxu0 0.0
    %2846 = vmatpush1.msra.mxu0 %v2673
    %2847 = vmatprep.subr.mxu0 0.0
    %2848 = vmatpush1.msra.mxu0 0.0
    %2849 = vmatprep.subr.mxu0 0.0
    %2850 = vmatpush1.msra.mxu0 0.0
    %2851 = vmatprep.subr.mxu0 0.0
    %2852 = vmatpush1.msra.mxu0 0.0
    %2853 = vmatprep.subr.mxu0 0.0
    %2854 = vmatpush1.msra.mxu0 0.0
    %2855 = vmatprep.subr.mxu0 0.0
    %2856 = vmatpush1.msra.mxu0 0.0
    %2857 = vmatprep.subr.mxu0 0.0
    %2858 = vmatpush1.msra.mxu0 0.0
    %2859 = vmatprep.subr.mxu0 0.0
    %2860 = vmatpush1.msra.mxu0 0.0
    %2861 = vmatprep.subr.mxu0 0.0
    %2862 = vmatpush1.msra.mxu0 0.0
    %2863 = vmatprep.subr.mxu0 0.0
    %2864 = vmatpush1.msra.mxu0 0.0
    %2865 = vmatprep.subr.mxu0 0.0
    %2866 = vmatpush1.msra.mxu0 0.0
    %2867 = vmatprep.subr.mxu0 0.0
    %2868 = vmatpush1.msra.mxu0 0.0
    %2869 = vmatprep.subr.mxu0 0.0
    %2870 = vmatpush1.msra.mxu0 0.0
    %2871 = vmatprep.subr.mxu0 0.0
    %2872 = vmatpush1.msra.mxu0 0.0
    %2873 = vmatprep.subr.mxu0 0.0
    %2874 = vmatpush1.msra.mxu0 0.0
    %2875 = vmatprep.subr.mxu0 0.0
    %2876 = vmatpush1.msra.mxu0 0.0
    %2877 = vmatprep.subr.mxu0 0.0
    %2878 = vmatpush1.msra.mxu0 0.0
    %2879 = vmatprep.mubr.f32.mxu0 0.0
    %2880 = vmatmul.mubr.f32.gmra.mrb[0].mxu0 %v1672
    %v2881 = vpop.f32.mrb[0].mxu0
    %v2882 = vadd.f32 %v2812, %v2881
    %v2883 = vpop.f32.mrb[0].mxu0
    %2884 = vdwg.mxu0
    %v2886 = vlaneseq
    %v2887 = vshrl.u32 %v2886, 7
    %v2888 = vsub.s32 0, %v2887
    %v2889 = vrot.slane %v2690, %v2888
    %v2891 = vmul.f32 %v2882, %v2889
    %v2893 = vlaneseq
    %v2894 = vshrl.u32 %v2893, 7
    %v2895 = vsub.s32 0, %v2894
    %v2896 = vrot.slane %v2691, %v2895
    %v2898 = vadd.f32 %v2891, %v2896
    %v2899 = vmax.f32 %v2898, 0.0
    %2900 = vmatprep.subr.mxu0 0.0
    %2901 = vmatpush1.msra.mxu0 %v2692
    %2902 = vmatprep.subr.mxu0 0.0
    %2903 = vmatpush1.msra.mxu0 %v2693
    %2904 = vmatprep.subr.mxu0 0.0
    %2905 = vmatpush1.msra.mxu0 %v2694
    %2906 = vmatprep.subr.mxu0 0.0
    %2907 = vmatpush1.msra.mxu0 %v2695
    %2908 = vmatprep.subr.mxu0 0.0
    %2909 = vmatpush1.msra.mxu0 %v2696
    %2910 = vmatprep.subr.mxu0 0.0
    %2911 = vmatpush1.msra.mxu0 %v2697
    %2912 = vmatprep.subr.mxu0 0.0
    %2913 = vmatpush1.msra.mxu0 %v2698
    %2914 = vmatprep.subr.mxu0 0.0
    %2915 = vmatpush1.msra.mxu0 %v2699
    %2916 = vmatprep.subr.mxu0 0.0
    %2917 = vmatpush1.msra.mxu0 %v2700
    %2918 = vmatprep.subr.mxu0 0.0
    %2919 = vmatpush1.msra.mxu0 %v2701
    %2920 = vmatprep.subr.mxu0 0.0
    %2921 = vmatpush1.msra.mxu0 %v2702
    %2922 = vmatprep.subr.mxu0 0.0
    %2923 = vmatpush1.msra.mxu0 %v2703
    %2924 = vmatprep.subr.mxu0 0.0
    %2925 = vmatpush1.msra.mxu0 %v2704
    %2926 = vmatprep.subr.mxu0 0.0
    %2927 = vmatpush1.msra.mxu0 %v2705
    %2928 = vmatprep.subr.mxu0 0.0
    %2929 = vmatpush1.msra.mxu0 %v2706
    %2930 = vmatprep.subr.mxu0 0.0
    %2931 = vmatpush1.msra.mxu0 %v2707
    %2932 = vmatprep.subr.mxu0 0.0
    %2933 = vmatpush1.msra.mxu0 0.0
    %2934 = vmatprep.subr.mxu0 0.0
    %2935 = vmatpush1.msra.mxu0 0.0
    %2936 = vmatprep.subr.mxu0 0.0
    %2937 = vmatpush1.msra.mxu0 0.0
    %2938 = vmatprep.subr.mxu0 0.0
    %2939 = vmatpush1.msra.mxu0 0.0
    %2940 = vmatprep.subr.mxu0 0.0
    %2941 = vmatpush1.msra.mxu0 0.0
    %2942 = vmatprep.subr.mxu0 0.0
    %2943 = vmatpush1.msra.mxu0 0.0
    %2944 = vmatprep.subr.mxu0 0.0
    %2945 = vmatpush1.msra.mxu0 0.0
    %2946 = vmatprep.subr.mxu0 0.0
    %2947 = vmatpush1.msra.mxu0 0.0
    %2948 = vmatprep.subr.mxu0 0.0
    %2949 = vmatpush1.msra.mxu0 0.0
    %2950 = vmatprep.subr.mxu0 0.0
    %2951 = vmatpush1.msra.mxu0 0.0
    %2952 = vmatprep.subr.mxu0 0.0
    %2953 = vmatpush1.msra.mxu0 0.0
    %2954 = vmatprep.subr.mxu0 0.0
    %2955 = vmatpush1.msra.mxu0 0.0
    %2956 = vmatprep.subr.mxu0 0.0
    %2957 = vmatpush1.msra.mxu0 0.0
    %2958 = vmatprep.subr.mxu0 0.0
    %2959 = vmatpush1.msra.mxu0 0.0
    %2960 = vmatprep.subr.mxu0 0.0
    %2961 = vmatpush1.msra.mxu0 0.0
    %2962 = vmatprep.subr.mxu0 0.0
    %2963 = vmatpush1.msra.mxu0 0.0
    %2964 = vmatprep.mubr.f32.mxu0 0.0
    %2965 = vmatmul.mubr.f32.gmra.mrb[0].mxu0 %v2899
    %v2966 = vpop.f32.mrb[0].mxu0
    %v2967 = vadd.f32 0.0, %v2966
    %v2968 = vpop.f32.mrb[0].mxu0
    %2969 = vdwg.mxu0
    %v2971 = vlaneseq
    %v2972 = vshrl.u32 %v2971, 7
    %v2973 = vsub.s32 0, %v2972
    %v2974 = vrot.slane %v2708, %v2973
    %v2976 = vmul.f32 %v2967, %v2974
    %v2978 = vlaneseq
    %v2979 = vshrl.u32 %v2978, 7
    %v2980 = vsub.s32 0, %v2979
    %v2981 = vrot.slane %v2709, %v2980
    %v2983 = vadd.f32 %v2976, %v2981
    %v2984 = vmax.f32 %v2983, 0.0
    %2985 = vmatprep.subr.mxu0 0.0
    %2986 = vmatpush1.msra.mxu0 %v2710
    %2987 = vmatprep.subr.mxu0 0.0
    %2988 = vmatpush1.msra.mxu0 %v2711
    %2989 = vmatprep.subr.mxu0 0.0
    %2990 = vmatpush1.msra.mxu0 %v2712
    %2991 = vmatprep.subr.mxu0 0.0
    %2992 = vmatpush1.msra.mxu0 %v2713
    %2993 = vmatprep.subr.mxu0 0.0
    %2994 = vmatpush1.msra.mxu0 %v2714
    %2995 = vmatprep.subr.mxu0 0.0
    %2996 = vmatpush1.msra.mxu0 %v2715
    %2997 = vmatprep.subr.mxu0 0.0
    %2998 = vmatpush1.msra.mxu0 %v2716
    %2999 = vmatprep.subr.mxu0 0.0
    %3000 = vmatpush1.msra.mxu0 %v2717
    %3001 = vmatprep.subr.mxu0 0.0
    %3002 = vmatpush1.msra.mxu0 %v2718
    %3003 = vmatprep.subr.mxu0 0.0
    %3004 = vmatpush1.msra.mxu0 %v2719
    %3005 = vmatprep.subr.mxu0 0.0
    %3006 = vmatpush1.msra.mxu0 %v2720
    %3007 = vmatprep.subr.mxu0 0.0
    %3008 = vmatpush1.msra.mxu0 %v2721
    %3009 = vmatprep.subr.mxu0 0.0
    %3010 = vmatpush1.msra.mxu0 %v2722
    %3011 = vmatprep.subr.mxu0 0.0
    %3012 = vmatpush1.msra.mxu0 %v2723
    %3013 = vmatprep.subr.mxu0 0.0
    %3014 = vmatpush1.msra.mxu0 %v2724
    %3015 = vmatprep.subr.mxu0 0.0
    %3016 = vmatpush1.msra.mxu0 %v2725
    %3017 = vmatprep.subr.mxu0 0.0
    %3018 = vmatpush1.msra.mxu0 0.0
    %3019 = vmatprep.subr.mxu0 0.0
    %3020 = vmatpush1.msra.mxu0 0.0
    %3021 = vmatprep.subr.mxu0 0.0
    %3022 = vmatpush1.msra.mxu0 0.0
    %3023 = vmatprep.subr.mxu0 0.0
    %3024 = vmatpush1.msra.mxu0 0.0
    %3025 = vmatprep.subr.mxu0 0.0
    %3026 = vmatpush1.msra.mxu0 0.0
    %3027 = vmatprep.subr.mxu0 0.0
    %3028 = vmatpush1.msra.mxu0 0.0
    %3029 = vmatprep.subr.mxu0 0.0
    %3030 = vmatpush1.msra.mxu0 0.0
    %3031 = vmatprep.subr.mxu0 0.0
    %3032 = vmatpush1.msra.mxu0 0.0
    %3033 = vmatprep.subr.mxu0 0.0
    %3034 = vmatpush1.msra.mxu0 0.0
    %3035 = vmatprep.subr.mxu0 0.0
    %3036 = vmatpush1.msra.mxu0 0.0
    %3037 = vmatprep.subr.mxu0 0.0
    %3038 = vmatpush1.msra.mxu0 0.0
    %3039 = vmatprep.subr.mxu0 0.0
    %3040 = vmatpush1.msra.mxu0 0.0
    %3041 = vmatprep.subr.mxu0 0.0
    %3042 = vmatpush1.msra.mxu0 0.0
    %3043 = vmatprep.subr.mxu0 0.0
    %3044 = vmatpush1.msra.mxu0 0.0
    %3045 = vmatprep.subr.mxu0 0.0
    %3046 = vmatpush1.msra.mxu0 0.0
    %3047 = vmatprep.subr.mxu0 0.0
    %3048 = vmatpush1.msra.mxu0 0.0
    %3049 = vmatprep.mubr.f32.mxu0 0.0
    %3050 = vmatmul.mubr.f32.gmra.mrb[0].mxu0 %v2984
    %v3051 = vpop.f32.mrb[0].mxu0
    %v3052 = vadd.f32 0.0, %v3051
    %v3053 = vpop.f32.mrb[0].mxu0
    %3054 = vdwg.mxu0
    %v3056 = vlaneseq
    %v3057 = vshrl.u32 %v3056, 7
    %v3058 = vsub.s32 0, %v3057
    %v3059 = vrot.slane %v2726, %v3058
    %v3061 = vmul.f32 %v3052, %v3059
    %v3063 = vlaneseq
    %v3064 = vshrl.u32 %v3063, 7
    %v3065 = vsub.s32 0, %v3064
    %v3066 = vrot.slane %v2727, %v3065
    %v3068 = vadd.f32 %v3061, %v3066
    %v3069 = vmax.f32 %v3068, 0.0
    %v3070 = vadd.f32 %v2899, %v3069
    %v3072 = vlaneseq
    %v3073 = vshrl.u32 %v3072, 7
    %v3074 = vsub.s32 0, %v3073
    %v3075 = vrot.slane %v2744, %v3074
    %3077 = vmatprep.subr.mxu0 0.0
    %3078 = vmatpush1.msra.mxu0 %v2728
    %3079 = vmatprep.subr.mxu0 0.0
    %3080 = vmatpush1.msra.mxu0 %v2729
    %3081 = vmatprep.subr.mxu0 0.0
    %3082 = vmatpush1.msra.mxu0 %v2730
    %3083 = vmatprep.subr.mxu0 0.0
    %3084 = vmatpush1.msra.mxu0 %v2731
    %3085 = vmatprep.subr.mxu0 0.0
    %3086 = vmatpush1.msra.mxu0 %v2732
    %3087 = vmatprep.subr.mxu0 0.0
    %3088 = vmatpush1.msra.mxu0 %v2733
    %3089 = vmatprep.subr.mxu0 0.0
    %3090 = vmatpush1.msra.mxu0 %v2734
    %3091 = vmatprep.subr.mxu0 0.0
    %3092 = vmatpush1.msra.mxu0 %v2735
    %3093 = vmatprep.subr.mxu0 0.0
    %3094 = vmatpush1.msra.mxu0 %v2736
    %3095 = vmatprep.subr.mxu0 0.0
    %3096 = vmatpush1.msra.mxu0 %v2737
    %3097 = vmatprep.subr.mxu0 0.0
    %3098 = vmatpush1.msra.mxu0 %v2738
    %3099 = vmatprep.subr.mxu0 0.0
    %3100 = vmatpush1.msra.mxu0 %v2739
    %3101 = vmatprep.subr.mxu0 0.0
    %3102 = vmatpush1.msra.mxu0 %v2740
    %3103 = vmatprep.subr.mxu0 0.0
    %3104 = vmatpush1.msra.mxu0 %v2741
    %3105 = vmatprep.subr.mxu0 0.0
    %3106 = vmatpush1.msra.mxu0 %v2742
    %3107 = vmatprep.subr.mxu0 0.0
    %3108 = vmatpush1.msra.mxu0 %v2743
    %3109 = vmatprep.subr.mxu0 0.0
    %3110 = vmatpush1.msra.mxu0 0.0
    %3111 = vmatprep.subr.mxu0 0.0
    %3112 = vmatpush1.msra.mxu0 0.0
    %3113 = vmatprep.subr.mxu0 0.0
    %3114 = vmatpush1.msra.mxu0 0.0
    %3115 = vmatprep.subr.mxu0 0.0
    %3116 = vmatpush1.msra.mxu0 0.0
    %3117 = vmatprep.subr.mxu0 0.0
    %3118 = vmatpush1.msra.mxu0 0.0
    %3119 = vmatprep.subr.mxu0 0.0
    %3120 = vmatpush1.msra.mxu0 0.0
    %3121 = vmatprep.subr.mxu0 0.0
    %3122 = vmatpush1.msra.mxu0 0.0
    %3123 = vmatprep.subr.mxu0 0.0
    %3124 = vmatpush1.msra.mxu0 0.0
    %3125 = vmatprep.subr.mxu0 0.0
    %3126 = vmatpush1.msra.mxu0 0.0
    %3127 = vmatprep.subr.mxu0 0.0
    %3128 = vmatpush1.msra.mxu0 0.0
    %3129 = vmatprep.subr.mxu0 0.0
    %3130 = vmatpush1.msra.mxu0 0.0
    %3131 = vmatprep.subr.mxu0 0.0
    %3132 = vmatpush1.msra.mxu0 0.0
    %3133 = vmatprep.subr.mxu0 0.0
    %3134 = vmatpush1.msra.mxu0 0.0
    %3135 = vmatprep.subr.mxu0 0.0
    %3136 = vmatpush1.msra.mxu0 0.0
    %3137 = vmatprep.subr.mxu0 0.0
    %3138 = vmatpush1.msra.mxu0 0.0
    %3139 = vmatprep.subr.mxu0 0.0
    %3140 = vmatpush1.msra.mxu0 0.0
    %3141 = vmatprep.mubr.f32.mxu0 0.0
    %3142 = vmatmul.mubr.f32.gmra.mrb[0].mxu0 %v3070
    %v3143 = vpop.f32.mrb[0].mxu0
    %v3144 = vadd.f32 %v3075, %v3143
    %v3145 = vpop.f32.mrb[0].mxu0
    %3146 = vdwg.mxu0
    %v3147 = vxor.u32 %v3144, 2147483648
    %v3148 = vmul.f32 %v3147, 1.442695
    %v3149 = vpow.pop %v3148
    %v3150 = vadd.f32 %v3149, 1.0
    %v3151 = vrcp.pop %v3150
    %v3152 = vmul.f32 1.0, %v3151
    %v3153 = vmul.f32 %v2365, %v3152
    %v3154 = vsub.f32 1.0, %v3152
    %v3155 = vmul.f32 %v2655, %v3154
    %v3156 = vadd.f32 %v3153, %v3155
    %v3157 = vld [vmem:[#allocation61] sm:$0xff]
    %v3158 = vld [vmem:[#allocation61 + $0x8] sm:$0xff]
    %v3159 = vld [vmem:[#allocation61 + $0x10] sm:$0xff]
    %v3160 = vld [vmem:[#allocation61 + $0x18] sm:$0xff]
    %v3161 = vld [vmem:[#allocation61 + $0x20] sm:$0xff]
    %v3162 = vld [vmem:[#allocation61 + $0x28] sm:$0xff]
    %v3163 = vld [vmem:[#allocation61 + $0x30] sm:$0xff]
    %v3164 = vld [vmem:[#allocation61 + $0x38] sm:$0xff]
    %v3165 = vld [vmem:[#allocation61 + $0x40] sm:$0xff]
    %v3166 = vld [vmem:[#allocation61 + $0x48] sm:$0xff]
    %v3167 = vld [vmem:[#allocation61 + $0x50] sm:$0xff]
    %v3168 = vld [vmem:[#allocation61 + $0x58] sm:$0xff]
    %v3169 = vld [vmem:[#allocation61 + $0x60] sm:$0xff]
    %v3170 = vld [vmem:[#allocation61 + $0x68] sm:$0xff]
    %v3171 = vld [vmem:[#allocation61 + $0x70] sm:$0xff]
    %v3172 = vld [vmem:[#allocation61 + $0x78] sm:$0xff]
    %v3173 = vld [vmem:[#allocation63] sm:$0xff]
    %v3174 = vld [vmem:[#allocation63 + $0x8] sm:$0xff]
    %v3175 = vld [vmem:[#allocation63 + $0x10] sm:$0xff]
    %v3176 = vld [vmem:[#allocation63 + $0x18] sm:$0xff]
    %v3177 = vld [vmem:[#allocation63 + $0x20] sm:$0xff]
    %v3178 = vld [vmem:[#allocation63 + $0x28] sm:$0xff]
    %v3179 = vld [vmem:[#allocation63 + $0x30] sm:$0xff]
    %v3180 = vld [vmem:[#allocation63 + $0x38] sm:$0xff]
    %v3181 = vld [vmem:[#allocation63 + $0x40] sm:$0xff]
    %v3182 = vld [vmem:[#allocation63 + $0x48] sm:$0xff]
    %v3183 = vld [vmem:[#allocation63 + $0x50] sm:$0xff]
    %v3184 = vld [vmem:[#allocation63 + $0x58] sm:$0xff]
    %v3185 = vld [vmem:[#allocation63 + $0x60] sm:$0xff]
    %v3186 = vld [vmem:[#allocation63 + $0x68] sm:$0xff]
    %v3187 = vld [vmem:[#allocation63 + $0x70] sm:$0xff]
    %v3188 = vld [vmem:[#allocation63 + $0x78] sm:$0xff]
    %v3189 = vld [vmem:[#allocation64] sm:$0x1]
    %v3190 = vld [vmem:[%s97] sm:$0x1]
    %v3191 = vld [vmem:[#allocation66] sm:$0xff]
    %v3192 = vld [vmem:[#allocation66 + $0x8] sm:$0xff]
    %v3193 = vld [vmem:[#allocation66 + $0x10] sm:$0xff]
    %v3194 = vld [vmem:[#allocation66 + $0x18] sm:$0xff]
    %v3195 = vld [vmem:[#allocation66 + $0x20] sm:$0xff]
    %v3196 = vld [vmem:[#allocation66 + $0x28] sm:$0xff]
    %v3197 = vld [vmem:[#allocation66 + $0x30] sm:$0xff]
    %v3198 = vld [vmem:[#allocation66 + $0x38] sm:$0xff]
    %v3199 = vld [vmem:[#allocation66 + $0x40] sm:$0xff]
    %v3200 = vld [vmem:[#allocation66 + $0x48] sm:$0xff]
    %v3201 = vld [vmem:[#allocation66 + $0x50] sm:$0xff]
    %v3202 = vld [vmem:[#allocation66 + $0x58] sm:$0xff]
    %v3203 = vld [vmem:[#allocation66 + $0x60] sm:$0xff]
    %v3204 = vld [vmem:[#allocation66 + $0x68] sm:$0xff]
    %v3205 = vld [vmem:[#allocation66 + $0x70] sm:$0xff]
    %v3206 = vld [vmem:[#allocation66 + $0x78] sm:$0xff]
    %v3207 = vld [vmem:[%s101] sm:$0x1]
    %3208 = vmatprep.subr.mxu0 0.0
    %3209 = vmatpush1.msra.mxu0 %v3157
    %3210 = vmatprep.subr.mxu0 0.0
    %3211 = vmatpush1.msra.mxu0 %v3158
    %3212 = vmatprep.subr.mxu0 0.0
    %3213 = vmatpush1.msra.mxu0 %v3159
    %3214 = vmatprep.subr.mxu0 0.0
    %3215 = vmatpush1.msra.mxu0 %v3160
    %3216 = vmatprep.subr.mxu0 0.0
    %3217 = vmatpush1.msra.mxu0 %v3161
    %3218 = vmatprep.subr.mxu0 0.0
    %3219 = vmatpush1.msra.mxu0 %v3162
    %3220 = vmatprep.subr.mxu0 0.0
    %3221 = vmatpush1.msra.mxu0 %v3163
    %3222 = vmatprep.subr.mxu0 0.0
    %3223 = vmatpush1.msra.mxu0 %v3164
    %3224 = vmatprep.subr.mxu0 0.0
    %3225 = vmatpush1.msra.mxu0 %v3165
    %3226 = vmatprep.subr.mxu0 0.0
    %3227 = vmatpush1.msra.mxu0 %v3166
    %3228 = vmatprep.subr.mxu0 0.0
    %3229 = vmatpush1.msra.mxu0 %v3167
    %3230 = vmatprep.subr.mxu0 0.0
    %3231 = vmatpush1.msra.mxu0 %v3168
    %3232 = vmatprep.subr.mxu0 0.0
    %3233 = vmatpush1.msra.mxu0 %v3169
    %3234 = vmatprep.subr.mxu0 0.0
    %3235 = vmatpush1.msra.mxu0 %v3170
    %3236 = vmatprep.subr.mxu0 0.0
    %3237 = vmatpush1.msra.mxu0 %v3171
    %3238 = vmatprep.subr.mxu0 0.0
    %3239 = vmatpush1.msra.mxu0 %v3172
    %3240 = vmatprep.subr.mxu0 0.0
    %3241 = vmatpush1.msra.mxu0 0.0
    %3242 = vmatprep.subr.mxu0 0.0
    %3243 = vmatpush1.msra.mxu0 0.0
    %3244 = vmatprep.subr.mxu0 0.0
    %3245 = vmatpush1.msra.mxu0 0.0
    %3246 = vmatprep.subr.mxu0 0.0
    %3247 = vmatpush1.msra.mxu0 0.0
    %3248 = vmatprep.subr.mxu0 0.0
    %3249 = vmatpush1.msra.mxu0 0.0
    %3250 = vmatprep.subr.mxu0 0.0
    %3251 = vmatpush1.msra.mxu0 0.0
    %3252 = vmatprep.subr.mxu0 0.0
    %3253 = vmatpush1.msra.mxu0 0.0
    %3254 = vmatprep.subr.mxu0 0.0
    %3255 = vmatpush1.msra.mxu0 0.0
    %3256 = vmatprep.subr.mxu0 0.0
    %3257 = vmatpush1.msra.mxu0 0.0
    %3258 = vmatprep.subr.mxu0 0.0
    %3259 = vmatpush1.msra.mxu0 0.0
    %3260 = vmatprep.subr.mxu0 0.0
    %3261 = vmatpush1.msra.mxu0 0.0
    %3262 = vmatprep.subr.mxu0 0.0
    %3263 = vmatpush1.msra.mxu0 0.0
    %3264 = vmatprep.subr.mxu0 0.0
    %3265 = vmatpush1.msra.mxu0 0.0
    %3266 = vmatprep.subr.mxu0 0.0
    %3267 = vmatpush1.msra.mxu0 0.0
    %3268 = vmatprep.subr.mxu0 0.0
    %3269 = vmatpush1.msra.mxu0 0.0
    %3270 = vmatprep.subr.mxu0 0.0
    %3271 = vmatpush1.msra.mxu0 0.0
    %3272 = vmatprep.mubr.f32.mxu0 0.0
    %3273 = vmatmul.mubr.f32.gmra.mrb[0].mxu0 %v3156
    %v3274 = vpop.f32.mrb[0].mxu0
    %v3275 = vadd.f32 0.0, %v3274
    %v3276 = vpop.f32.mrb[0].mxu0
    %3277 = vdwg.mxu0
    %3278 = vmatprep.subr.mxu0 0.0
    %3279 = vmatpush1.msra.mxu0 %v3173
    %3280 = vmatprep.subr.mxu0 0.0
    %3281 = vmatpush1.msra.mxu0 %v3174
    %3282 = vmatprep.subr.mxu0 0.0
    %3283 = vmatpush1.msra.mxu0 %v3175
    %3284 = vmatprep.subr.mxu0 0.0
    %3285 = vmatpush1.msra.mxu0 %v3176
    %3286 = vmatprep.subr.mxu0 0.0
    %3287 = vmatpush1.msra.mxu0 %v3177
    %3288 = vmatprep.subr.mxu0 0.0
    %3289 = vmatpush1.msra.mxu0 %v3178
    %3290 = vmatprep.subr.mxu0 0.0
    %3291 = vmatpush1.msra.mxu0 %v3179
    %3292 = vmatprep.subr.mxu0 0.0
    %3293 = vmatpush1.msra.mxu0 %v3180
    %3294 = vmatprep.subr.mxu0 0.0
    %3295 = vmatpush1.msra.mxu0 %v3181
    %3296 = vmatprep.subr.mxu0 0.0
    %3297 = vmatpush1.msra.mxu0 %v3182
    %3298 = vmatprep.subr.mxu0 0.0
    %3299 = vmatpush1.msra.mxu0 %v3183
    %3300 = vmatprep.subr.mxu0 0.0
    %3301 = vmatpush1.msra.mxu0 %v3184
    %3302 = vmatprep.subr.mxu0 0.0
    %3303 = vmatpush1.msra.mxu0 %v3185
    %3304 = vmatprep.subr.mxu0 0.0
    %3305 = vmatpush1.msra.mxu0 %v3186
    %3306 = vmatprep.subr.mxu0 0.0
    %3307 = vmatpush1.msra.mxu0 %v3187
    %3308 = vmatprep.subr.mxu0 0.0
    %3309 = vmatpush1.msra.mxu0 %v3188
    %3310 = vmatprep.subr.mxu0 0.0
    %3311 = vmatpush1.msra.mxu0 0.0
    %3312 = vmatprep.subr.mxu0 0.0
    %3313 = vmatpush1.msra.mxu0 0.0
    %3314 = vmatprep.subr.mxu0 0.0
    %3315 = vmatpush1.msra.mxu0 0.0
    %3316 = vmatprep.subr.mxu0 0.0
    %3317 = vmatpush1.msra.mxu0 0.0
    %3318 = vmatprep.subr.mxu0 0.0
    %3319 = vmatpush1.msra.mxu0 0.0
    %3320 = vmatprep.subr.mxu0 0.0
    %3321 = vmatpush1.msra.mxu0 0.0
    %3322 = vmatprep.subr.mxu0 0.0
    %3323 = vmatpush1.msra.mxu0 0.0
    %3324 = vmatprep.subr.mxu0 0.0
    %3325 = vmatpush1.msra.mxu0 0.0
    %3326 = vmatprep.subr.mxu0 0.0
    %3327 = vmatpush1.msra.mxu0 0.0
    %3328 = vmatprep.subr.mxu0 0.0
    %3329 = vmatpush1.msra.mxu0 0.0
    %3330 = vmatprep.subr.mxu0 0.0
    %3331 = vmatpush1.msra.mxu0 0.0
    %3332 = vmatprep.subr.mxu0 0.0
    %3333 = vmatpush1.msra.mxu0 0.0
    %3334 = vmatprep.subr.mxu0 0.0
    %3335 = vmatpush1.msra.mxu0 0.0
    %3336 = vmatprep.subr.mxu0 0.0
    %3337 = vmatpush1.msra.mxu0 0.0
    %3338 = vmatprep.subr.mxu0 0.0
    %3339 = vmatpush1.msra.mxu0 0.0
    %3340 = vmatprep.subr.mxu0 0.0
    %3341 = vmatpush1.msra.mxu0 0.0
    %3342 = vmatprep.mubr.f32.mxu0 0.0
    %3343 = vmatmul.mubr.f32.gmra.mrb[0].mxu0 %v1672
    %v3344 = vpop.f32.mrb[0].mxu0
    %v3345 = vadd.f32 0.0, %v3344
    %v3346 = vpop.f32.mrb[0].mxu0
    %3347 = vdwg.mxu0
    %v3348 = vadd.f32 %v3275, %v3345
    %v3350 = vlaneseq
    %v3351 = vshrl.u32 %v3350, 7
    %v3352 = vsub.s32 0, %v3351
    %v3353 = vrot.slane %v3189, %v3352
    %v3355 = vmul.f32 %v3348, %v3353
    %v3357 = vlaneseq
    %v3358 = vshrl.u32 %v3357, 7
    %v3359 = vsub.s32 0, %v3358
    %v3360 = vrot.slane %v3190, %v3359
    %v3362 = vadd.f32 %v3355, %v3360
    %v3363 = vmax.f32 %v3362, 0.0
    %v3365 = vlaneseq
    %v3366 = vshrl.u32 %v3365, 7
    %v3367 = vsub.s32 0, %v3366
    %v3368 = vrot.slane %v3207, %v3367
    %3370 = vmatprep.subr.mxu0 0.0
    %3371 = vmatpush1.msra.mxu0 %v3191
    %3372 = vmatprep.subr.mxu0 0.0
    %3373 = vmatpush1.msra.mxu0 %v3192
    %3374 = vmatprep.subr.mxu0 0.0
    %3375 = vmatpush1.msra.mxu0 %v3193
    %3376 = vmatprep.subr.mxu0 0.0
    %3377 = vmatpush1.msra.mxu0 %v3194
    %3378 = vmatprep.subr.mxu0 0.0
    %3379 = vmatpush1.msra.mxu0 %v3195
    %3380 = vmatprep.subr.mxu0 0.0
    %3381 = vmatpush1.msra.mxu0 %v3196
    %3382 = vmatprep.subr.mxu0 0.0
    %3383 = vmatpush1.msra.mxu0 %v3197
    %3384 = vmatprep.subr.mxu0 0.0
    %3385 = vmatpush1.msra.mxu0 %v3198
    %3386 = vmatprep.subr.mxu0 0.0
    %3387 = vmatpush1.msra.mxu0 %v3199
    %3388 = vmatprep.subr.mxu0 0.0
    %3389 = vmatpush1.msra.mxu0 %v3200
    %3390 = vmatprep.subr.mxu0 0.0
    %3391 = vmatpush1.msra.mxu0 %v3201
    %3392 = vmatprep.subr.mxu0 0.0
    %3393 = vmatpush1.msra.mxu0 %v3202
    %3394 = vmatprep.subr.mxu0 0.0
    %3395 = vmatpush1.msra.mxu0 %v3203
    %3396 = vmatprep.subr.mxu0 0.0
    %3397 = vmatpush1.msra.mxu0 %v3204
    %3398 = vmatprep.subr.mxu0 0.0
    %3399 = vmatpush1.msra.mxu0 %v3205
    %3400 = vmatprep.subr.mxu0 0.0
    %3401 = vmatpush1.msra.mxu0 %v3206
    %3402 = vmatprep.subr.mxu0 0.0
    %3403 = vmatpush1.msra.mxu0 0.0
    %3404 = vmatprep.subr.mxu0 0.0
    %3405 = vmatpush1.msra.mxu0 0.0
    %3406 = vmatprep.subr.mxu0 0.0
    %3407 = vmatpush1.msra.mxu0 0.0
    %3408 = vmatprep.subr.mxu0 0.0
    %3409 = vmatpush1.msra.mxu0 0.0
    %3410 = vmatprep.subr.mxu0 0.0
    %3411 = vmatpush1.msra.mxu0 0.0
    %3412 = vmatprep.subr.mxu0 0.0
    %3413 = vmatpush1.msra.mxu0 0.0
    %3414 = vmatprep.subr.mxu0 0.0
    %3415 = vmatpush1.msra.mxu0 0.0
    %3416 = vmatprep.subr.mxu0 0.0
    %3417 = vmatpush1.msra.mxu0 0.0
    %3418 = vmatprep.subr.mxu0 0.0
    %3419 = vmatpush1.msra.mxu0 0.0
    %3420 = vmatprep.subr.mxu0 0.0
    %3421 = vmatpush1.msra.mxu0 0.0
    %3422 = vmatprep.subr.mxu0 0.0
    %3423 = vmatpush1.msra.mxu0 0.0
    %3424 = vmatprep.subr.mxu0 0.0
    %3425 = vmatpush1.msra.mxu0 0.0
    %3426 = vmatprep.subr.mxu0 0.0
    %3427 = vmatpush1.msra.mxu0 0.0
    %3428 = vmatprep.subr.mxu0 0.0
    %3429 = vmatpush1.msra.mxu0 0.0
    %3430 = vmatprep.subr.mxu0 0.0
    %3431 = vmatpush1.msra.mxu0 0.0
    %3432 = vmatprep.subr.mxu0 0.0
    %3433 = vmatpush1.msra.mxu0 0.0
    %3434 = vmatprep.mubr.f32.mxu0 0.0
    %3435 = vmatmul.mubr.f32.gmra.mrb[0].mxu0 %v3363
    %v3436 = vpop.f32.mrb[0].mxu0
    %v3437 = vadd.f32 %v3368, %v3436
    %v3438 = vpop.f32.mrb[0].mxu0
    %3439 = vdwg.mxu0
    %3440 = vst [vmem:[%s103] sm:$0x3] %v3437
    %3441 = vmatprep.subr.mxu0 0.0
    %3442 = vmatpush1.msra.mxu0 %v3173
    %3443 = vmatprep.subr.mxu0 0.0
    %3444 = vmatpush1.msra.mxu0 %v3174
    %3445 = vmatprep.subr.mxu0 0.0
    %3446 = vmatpush1.msra.mxu0 %v3175
    %3447 = vmatprep.subr.mxu0 0.0
    %3448 = vmatpush1.msra.mxu0 %v3176
    %3449 = vmatprep.subr.mxu0 0.0
    %3450 = vmatpush1.msra.mxu0 %v3177
    %3451 = vmatprep.subr.mxu0 0.0
    %3452 = vmatpush1.msra.mxu0 %v3178
    %3453 = vmatprep.subr.mxu0 0.0
    %3454 = vmatpush1.msra.mxu0 %v3179
    %3455 = vmatprep.subr.mxu0 0.0
    %3456 = vmatpush1.msra.mxu0 %v3180
    %3457 = vmatprep.subr.mxu0 0.0
    %3458 = vmatpush1.msra.mxu0 %v3181
    %3459 = vmatprep.subr.mxu0 0.0
    %3460 = vmatpush1.msra.mxu0 %v3182
    %3461 = vmatprep.subr.mxu0 0.0
    %3462 = vmatpush1.msra.mxu0 %v3183
    %3463 = vmatprep.subr.mxu0 0.0
    %3464 = vmatpush1.msra.mxu0 %v3184
    %3465 = vmatprep.subr.mxu0 0.0
    %3466 = vmatpush1.msra.mxu0 %v3185
    %3467 = vmatprep.subr.mxu0 0.0
    %3468 = vmatpush1.msra.mxu0 %v3186
    %3469 = vmatprep.subr.mxu0 0.0
    %3470 = vmatpush1.msra.mxu0 %v3187
    %3471 = vmatprep.subr.mxu0 0.0
    %3472 = vmatpush1.msra.mxu0 %v3188
    %3473 = vmatprep.subr.mxu0 0.0
    %3474 = vmatpush1.msra.mxu0 0.0
    %3475 = vmatprep.subr.mxu0 0.0
    %3476 = vmatpush1.msra.mxu0 0.0
    %3477 = vmatprep.subr.mxu0 0.0
    %3478 = vmatpush1.msra.mxu0 0.0
    %3479 = vmatprep.subr.mxu0 0.0
    %3480 = vmatpush1.msra.mxu0 0.0
    %3481 = vmatprep.subr.mxu0 0.0
    %3482 = vmatpush1.msra.mxu0 0.0
    %3483 = vmatprep.subr.mxu0 0.0
    %3484 = vmatpush1.msra.mxu0 0.0
    %3485 = vmatprep.subr.mxu0 0.0
    %3486 = vmatpush1.msra.mxu0 0.0
    %3487 = vmatprep.subr.mxu0 0.0
    %3488 = vmatpush1.msra.mxu0 0.0
    %3489 = vmatprep.subr.mxu0 0.0
    %3490 = vmatpush1.msra.mxu0 0.0
    %3491 = vmatprep.subr.mxu0 0.0
    %3492 = vmatpush1.msra.mxu0 0.0
    %3493 = vmatprep.subr.mxu0 0.0
    %3494 = vmatpush1.msra.mxu0 0.0
    %3495 = vmatprep.subr.mxu0 0.0
    %3496 = vmatpush1.msra.mxu0 0.0
    %3497 = vmatprep.subr.mxu0 0.0
    %3498 = vmatpush1.msra.mxu0 0.0
    %3499 = vmatprep.subr.mxu0 0.0
    %3500 = vmatpush1.msra.mxu0 0.0
    %3501 = vmatprep.subr.mxu0 0.0
    %3502 = vmatpush1.msra.mxu0 0.0
    %3503 = vmatprep.subr.mxu0 0.0
    %3504 = vmatpush1.msra.mxu0 0.0
    %3505 = vmatprep.mubr.f32.mxu0 0.0
    %3506 = vmatmul.mubr.f32.gmra.mrb[0].mxu0 %v1962
    %v3507 = vpop.f32.mrb[0].mxu0
    %v3508 = vadd.f32 0.0, %v3507
    %v3509 = vpop.f32.mrb[0].mxu0
    %3510 = vdwg.mxu0
    %v3511 = vadd.f32 %v3275, %v3508
    %v3512 = vmul.f32 %v3511, %v3353
    %v3513 = vadd.f32 %v3512, %v3360
    %v3514 = vmax.f32 %v3513, 0.0
    %3515 = vmatprep.subr.mxu0 0.0
    %3516 = vmatpush1.msra.mxu0 %v3191
    %3517 = vmatprep.subr.mxu0 0.0
    %3518 = vmatpush1.msra.mxu0 %v3192
    %3519 = vmatprep.subr.mxu0 0.0
    %3520 = vmatpush1.msra.mxu0 %v3193
    %3521 = vmatprep.subr.mxu0 0.0
    %3522 = vmatpush1.msra.mxu0 %v3194
    %3523 = vmatprep.subr.mxu0 0.0
    %3524 = vmatpush1.msra.mxu0 %v3195
    %3525 = vmatprep.subr.mxu0 0.0
    %3526 = vmatpush1.msra.mxu0 %v3196
    %3527 = vmatprep.subr.mxu0 0.0
    %3528 = vmatpush1.msra.mxu0 %v3197
    %3529 = vmatprep.subr.mxu0 0.0
    %3530 = vmatpush1.msra.mxu0 %v3198
    %3531 = vmatprep.subr.mxu0 0.0
    %3532 = vmatpush1.msra.mxu0 %v3199
    %3533 = vmatprep.subr.mxu0 0.0
    %3534 = vmatpush1.msra.mxu0 %v3200
    %3535 = vmatprep.subr.mxu0 0.0
    %3536 = vmatpush1.msra.mxu0 %v3201
    %3537 = vmatprep.subr.mxu0 0.0
    %3538 = vmatpush1.msra.mxu0 %v3202
    %3539 = vmatprep.subr.mxu0 0.0
    %3540 = vmatpush1.msra.mxu0 %v3203
    %3541 = vmatprep.subr.mxu0 0.0
    %3542 = vmatpush1.msra.mxu0 %v3204
    %3543 = vmatprep.subr.mxu0 0.0
    %3544 = vmatpush1.msra.mxu0 %v3205
    %3545 = vmatprep.subr.mxu0 0.0
    %3546 = vmatpush1.msra.mxu0 %v3206
    %3547 = vmatprep.subr.mxu0 0.0
    %3548 = vmatpush1.msra.mxu0 0.0
    %3549 = vmatprep.subr.mxu0 0.0
    %3550 = vmatpush1.msra.mxu0 0.0
    %3551 = vmatprep.subr.mxu0 0.0
    %3552 = vmatpush1.msra.mxu0 0.0
    %3553 = vmatprep.subr.mxu0 0.0
    %3554 = vmatpush1.msra.mxu0 0.0
    %3555 = vmatprep.subr.mxu0 0.0
    %3556 = vmatpush1.msra.mxu0 0.0
    %3557 = vmatprep.subr.mxu0 0.0
    %3558 = vmatpush1.msra.mxu0 0.0
    %3559 = vmatprep.subr.mxu0 0.0
    %3560 = vmatpush1.msra.mxu0 0.0
    %3561 = vmatprep.subr.mxu0 0.0
    %3562 = vmatpush1.msra.mxu0 0.0
    %3563 = vmatprep.subr.mxu0 0.0
    %3564 = vmatpush1.msra.mxu0 0.0
    %3565 = vmatprep.subr.mxu0 0.0
    %3566 = vmatpush1.msra.mxu0 0.0
    %3567 = vmatprep.subr.mxu0 0.0
    %3568 = vmatpush1.msra.mxu0 0.0
    %3569 = vmatprep.subr.mxu0 0.0
    %3570 = vmatpush1.msra.mxu0 0.0
    %3571 = vmatprep.subr.mxu0 0.0
    %3572 = vmatpush1.msra.mxu0 0.0
    %3573 = vmatprep.subr.mxu0 0.0
    %3574 = vmatpush1.msra.mxu0 0.0
    %3575 = vmatprep.subr.mxu0 0.0
    %3576 = vmatpush1.msra.mxu0 0.0
    %3577 = vmatprep.subr.mxu0 0.0
    %3578 = vmatpush1.msra.mxu0 0.0
    %3579 = vmatprep.mubr.f32.mxu0 0.0
    %3580 = vmatmul.mubr.f32.gmra.mrb[0].mxu0 %v3514
    %v3581 = vpop.f32.mrb[0].mxu0
    %v3582 = vadd.f32 %v3368, %v3581
    %v3583 = vpop.f32.mrb[0].mxu0
    %3584 = vdwg.mxu0
    %3585 = vst [vmem:[%s105] sm:$0x3] %v3582
    // Predicated region
    $region378: #{single_multi_view_forward.1} parent=1 // pred_check
      _
    $region379: #{single_multi_view_forward.1} parent=1 // pred_check_branch
      %3587 = sbr.rel (0) target = $region381
    $region380: #{single_multi_view_forward.1} parent=1 // pred_region
      _
    $region381: #{single_multi_view_forward.1} parent=1 // pred_fallthru
      _
    // Predicated region
    $region382: #{single_multi_view_forward.1} parent=1 // pred_check
      _
    $region383: #{single_multi_view_forward.1} parent=1 // pred_check_branch
      %3589 = sbr.rel (0) target = $region385
    $region384: #{single_multi_view_forward.1} parent=1 // pred_region
      _
    $region385: #{single_multi_view_forward.1} parent=1 // pred_fallthru
      _
    // Predicated region
    $region386: #{single_multi_view_forward.1} parent=1 // pred_check
      _
    $region387: #{single_multi_view_forward.1} parent=1 // pred_check_branch
      %3591 = sbr.rel (0) target = $region389
    $region388: #{single_multi_view_forward.1} parent=1 // pred_region
      _
    $region389: #{single_multi_view_forward.1} parent=1 // pred_fallthru
      _
    // Predicated region
    $region390: #{single_multi_view_forward.1} parent=1 // pred_check
      _
    $region391: #{single_multi_view_forward.1} parent=1 // pred_check_branch
      %3593 = sbr.rel (0) target = $region393
    $region392: #{single_multi_view_forward.1} parent=1 // pred_region
      _
    $region393: #{single_multi_view_forward.1} parent=1 // pred_fallthru
      _
    %3594 = vsyncpa [#allocation3], 1
    %3595 = vsyncpa [#allocation5], 1
    %3596 = vsyncpa [#allocation8], 1
    %3597 = vsyncpa [#allocation11], 1
    %3598 = vsyncpa [#allocation14], 1
    %3599 = vsyncpa [#allocation17], 1
    %3600 = vsyncpa [#allocation20], 1
    %3601 = vsyncpa [#allocation23], 1
    %3602 = vsyncpa [#allocation26], 1
    %3603 = vsyncpa [#allocation29], 1
    %3604 = vsyncpa [#allocation32], 1
    %3605 = vsyncpa [#allocation35], 1
    %3606 = vsyncpa [#allocation38], 1
    %3607 = vsyncpa [#allocation41], 1
    %3608 = vsyncpa [#allocation44], 1
    %3609 = vsyncpa [#allocation47], 1
    %3610 = vsyncpa [#allocation50], 1
    %3611 = vsyncpa [#allocation53], 1
    %3612 = vsyncpa [#allocation56], 1
    %3613 = vsyncpa [#allocation59], 1
    %3614 = vsyncpa [#allocation62], 1
    %3615 = vsyncpa [#allocation65], 1

</llo_original>
